<compile_context>
chip_gen: v6e
topology: v6e:2x2x1
jax: 0.10.0
libtpu: 0.0.40
codegen_flags: <defaults>
</compile_context>

<pallas_src>
import functools

import jax
import jax.numpy as jnp
from jax.experimental import pallas as pl
from jax.experimental.pallas import tpu as pltpu

BN_EPS = 1e-5
COMPUTE_DTYPE = jnp.bfloat16   # MXU operand dtype (accumulation stays f32)
OUT_DTYPE = jnp.bfloat16       # kernel output dtype (configurable)
LANES = 128
SUBLANES = 8


def _round_up(x, m):
    return (x + m - 1) // m * m


def sphere_block_kernel(x_ref, w1_ref, b1_ref, w2_ref, b2_ref, o_ref,
                        colw_ref, *, valid_w):
    """Fused SphereBasicBlock forward for one batch element.

    x_ref:    (1, H, Wp, Cp)    input block (bf16; W and C lane-padded)
    w*_ref:   (3, 3*Cp, Cp)     BN-folded weights; w[kh][kw*Cp + cin, cout]
    b*_ref:   (1, Cp)           BN-folded per-channel bias (f32)
    o_ref:    (1, H, Wp, Cp)    output block (OUT_DTYPE), padding kept zero
    colw_ref: ((H+2)*Wp, 3*Cp)  kw-im2col column scratch (bf16); flat row
                                index = padded_image_row * Wp + w, the three
                                Cp-wide lane blocks are the kw = 0/1/2 taps.
    valid_w:  static true (unpadded) image width.
    """
    _, H, Wp, Cp = x_ref.shape
    K3 = 3 * Cp
    M = H * Wp
    cdt = colw_ref.dtype
    f32 = jnp.float32

    # w-coordinate of every element of a flattened (H*Wp, Cp) image slab.
    w_idx = jax.lax.broadcasted_iota(jnp.int32, (H, Wp, Cp), 1).reshape(M, Cp)

    # Zero the two H-halo row groups (padded rows 0 and H+1).  Re-done every
    # grid step on purpose: with a "parallel" batch axis each TensorCore owns
    # its own scratch, so a pl.program_id(0)==0 guard would leave the second
    # core's halo uninitialised.  Cost: 2*Wp rows, <1% of per-step traffic.
    zrow = jnp.zeros((Wp, K3), cdt)
    colw_ref[0:Wp, :] = zrow
    colw_ref[(H + 1) * Wp:(H + 2) * Wp, :] = zrow

    def put_side_slabs(img32):
        # kw=0 slab: value(h, w) = img(h, w-1), zero at w == 0.  The flat
        # sublane roll wraps across image rows, but every wrapped element
        # lands on a masked (zero-padding) position, so the stores stay
        # full-width, lane- and sublane-aligned (no masked vst of the whole
        # tensor, no sublane-offset stores).
        r = pltpu.roll(img32, 1, axis=0)
        colw_ref[Wp:Wp + M, 0:Cp] = jnp.where(w_idx >= 1, r, 0.0).astype(cdt)
        # kw=2 slab: value(h, w) = img(h, w+1), zero at w == Wp-1.
        l = pltpu.roll(img32, M - 1, axis=0)
        colw_ref[Wp:Wp + M, 2 * Cp:K3] = (
            jnp.where(w_idx < Wp - 1, l, 0.0).astype(cdt))

    def conv3x3(w_ref, b_ref):
        # One MXU matmul per kh tap (deep K = 3*Cp), f32 accumulation.  The
        # LHS views are plain row-offset slices of the column buffer
        # (offsets 0, Wp, 2*Wp: sublane-aligned, full lane width).
        acc = jnp.dot(colw_ref[0:M, :], w_ref[0], preferred_element_type=f32)
        acc = acc + jnp.dot(colw_ref[Wp:Wp + M, :], w_ref[1],
                            preferred_element_type=f32)
        acc = acc + jnp.dot(colw_ref[2 * Wp:2 * Wp + M, :], w_ref[2],
                            preferred_element_type=f32)
        return acc + b_ref[...]                        # (M, Cp) f32

    # ---- conv1 (+ folded BN1) -> ReLU ----
    x_img = x_ref[0].reshape(M, Cp)                    # bf16, free reshape
    colw_ref[Wp:Wp + M, Cp:2 * Cp] = x_img             # centre (kw=1) slab
    put_side_slabs(x_img.astype(f32))
    mid = jnp.maximum(conv3x3(w1_ref, b1_ref), 0.0)    # (M, Cp) f32
    if valid_w != Wp:
        # The W-pad columns of the intermediate play the role of conv2's zero
        # padding in the original geometry -> force them to exact zeros.
        mid = jnp.where(w_idx < valid_w, mid, 0.0)

    # ---- conv2 (+ folded BN2) ----
    colw_ref[Wp:Wp + M, Cp:2 * Cp] = mid.astype(cdt)   # centre slab = conv1 out
    put_side_slabs(mid)
    out = conv3x3(w2_ref, b2_ref)

    # ---- residual add -> ReLU ----
    # Residual is taken from the bf16 kernel input (deliberate precision
    # choice; pass an f32 residual separately if bit-tighter matching needed).
    out = jnp.maximum(out + x_ref[0].reshape(M, Cp).astype(f32), 0.0)
    if valid_w != Wp:
        out = jnp.where(w_idx < valid_w, out, 0.0)     # keep W-padding zero
    o_ref[0] = out.reshape(H, Wp, Cp).astype(o_ref.dtype)


def _fold_bn_into_conv(w_oihw, gamma, beta, mean, var, Cp):
    """Fold inference BN into the conv -> (3, 3*Cp, Cp) bf16 weights, (1,Cp) f32 bias.

    Weight row order inside each kh slab is (kw, cin), matching the kernel's
    kw-im2col lane layout.
    """
    c_out, c_in = w_oihw.shape[0], w_oihw.shape[1]
    scale = gamma.astype(jnp.float32) * jax.lax.rsqrt(
        var.astype(jnp.float32) + BN_EPS)                            # (C,)
    w = jnp.transpose(w_oihw, (2, 3, 1, 0)).astype(jnp.float32) * scale  # HWIO
    bias = beta.astype(jnp.float32) - mean.astype(jnp.float32) * scale
    w = jnp.pad(w, ((0, 0), (0, 0), (0, Cp - c_in), (0, Cp - c_out)))
    bias = jnp.pad(bias, (0, Cp - c_out)).reshape(1, Cp)
    return w.reshape(3, 3 * Cp, Cp).astype(COMPUTE_DTYPE), bias


def _const_block_spec(shape):
    """BlockSpec for grid-invariant operands; single-buffered when supported."""
    idx = lambda bi: (0,) * len(shape)
    try:
        return pl.BlockSpec(shape, idx, pipeline_mode=pl.Buffered(1))
    except Exception:   # older pallas without pipeline_mode / Buffered
        return pl.BlockSpec(shape, idx)


def _vmem_limit_bytes():
    # ~3/4 of physical VMEM: ~96 MiB on 128-MiB parts (v5e/v6e), ~48 MiB on
    # 64-MiB parts (v7x).  Falls back to 48 MiB if the query is unavailable.
    try:
        cap = int(pltpu.get_tpu_info().vmem_capacity_bytes)
    except Exception:
        cap = 64 * 1024 * 1024
    return min(cap * 3 // 4, 100 * 1024 * 1024)


@jax.jit
def sphere_basic_block_nhwc(x_nhwc, w1, g1, b1, m1, v1, w2, g2, b2, m2, v2):
    """Fused SphereBasicBlock, NHWC in -> lane/W-padded NHWC out.

    Returns (B, H, Wp, Cp) in OUT_DTYPE with Wp = round_up(W, 8) and
    Cp = round_up(C, 128).  The padded region is exactly zero, so the output
    can be fed straight into the next NHWC block without slicing/transposing.
    """
    B, H, W, C = x_nhwc.shape
    assert w1.shape == (C, C, 3, 3) and w2.shape == (C, C, 3, 3), \
        "residual add without downsample requires inplanes == planes, stride=1"
    Cp = _round_up(max(C, LANES), LANES)
    Wp = _round_up(W, SUBLANES)

    x = jnp.pad(x_nhwc.astype(jnp.float32),
                ((0, 0), (0, 0), (0, Wp - W), (0, Cp - C))).astype(COMPUTE_DTYPE)
    w1p, b1p = _fold_bn_into_conv(w1, g1, b1, m1, v1, Cp)
    w2p, b2p = _fold_bn_into_conv(w2, g2, b2, m2, v2, Cp)

    kernel = functools.partial(sphere_block_kernel, valid_w=W)

    return pl.pallas_call(
        kernel,
        out_shape=jax.ShapeDtypeStruct((B, H, Wp, Cp), OUT_DTYPE),
        grid=(B,),
        in_specs=[
            pl.BlockSpec((1, H, Wp, Cp), lambda bi: (bi, 0, 0, 0)),
            _const_block_spec((3, 3 * Cp, Cp)),
            _const_block_spec((1, Cp)),
            _const_block_spec((3, 3 * Cp, Cp)),
            _const_block_spec((1, Cp)),
        ],
        out_specs=pl.BlockSpec((1, H, Wp, Cp), lambda bi: (bi, 0, 0, 0)),
        scratch_shapes=[
            pltpu.VMEM(((H + 2) * Wp, 3 * Cp), COMPUTE_DTYPE),  # kw-im2col cols
        ],
        compiler_params=pltpu.CompilerParams(
            dimension_semantics=("parallel",),
            vmem_limit_bytes=_vmem_limit_bytes()),
    )(x, w1p, b1p, w2p, b2p)


@jax.jit
def sphere_basic_block(x_nchw, w1, g1, b1, m1, v1, w2, g2, b2, m2, v2):
    """Convenience wrapper: NCHW / OIHW (PyTorch convention) in, f32 NCHW out."""
    B, C, H, W = x_nchw.shape
    out = sphere_basic_block_nhwc(jnp.transpose(x_nchw, (0, 2, 3, 1)),
                                  w1, g1, b1, m1, v1, w2, g2, b2, m2, v2)
    out = out[:, :, :W, :C].astype(jnp.float32)
    return jnp.transpose(out, (0, 3, 1, 2))   # NCHW


# -------------------- pure-JAX reference (for validation) --------------------
def _ref_forward(x_nchw, w1, g1, b1, m1, v1, w2, g2, b2, m2, v2):
    x = jnp.transpose(x_nchw, (0, 2, 3, 1)).astype(jnp.float32)
    w1h = jnp.transpose(w1, (2, 3, 1, 0)).astype(jnp.float32)
    w2h = jnp.transpose(w2, (2, 3, 1, 0)).astype(jnp.float32)

    def conv(a, w):
        return jax.lax.conv_general_dilated(
            a, w, window_strides=(1, 1), padding=[(1, 1), (1, 1)],
            dimension_numbers=("NHWC", "HWIO", "NHWC"))

    def bn(a, g, b, m, v):
        return (a - m) * jax.lax.rsqrt(v + BN_EPS) * g + b

    out = jnp.maximum(bn(conv(x, w1h), g1, b1, m1, v1), 0.0)
    out = bn(conv(out, w2h), g2, b2, m2, v2)
    out = jnp.maximum(out + x, 0.0)
    return jnp.transpose(out, (0, 3, 1, 2))


def _make_params(key, C):
    keys = jax.random.split(key, 11)
    w1 = 0.1 * jax.random.normal(keys[0], (C, C, 3, 3), jnp.float32)
    w2 = 0.1 * jax.random.normal(keys[1], (C, C, 3, 3), jnp.float32)
    g1 = 1.0 + 0.1 * jax.random.normal(keys[2], (C,), jnp.float32)
    b1 = 0.1 * jax.random.normal(keys[3], (C,), jnp.float32)
    m1 = 0.05 * jax.random.normal(keys[4], (C,), jnp.float32)
    v1 = 0.5 + jnp.abs(jax.random.normal(keys[5], (C,), jnp.float32))
    g2 = 1.0 + 0.1 * jax.random.normal(keys[6], (C,), jnp.float32)
    b2 = 0.1 * jax.random.normal(keys[7], (C,), jnp.float32)
    m2 = 0.05 * jax.random.normal(keys[8], (C,), jnp.float32)
    v2 = 0.5 + jnp.abs(jax.random.normal(keys[9], (C,), jnp.float32))
    return (w1, g1, b1, m1, v1, w2, g2, b2, m2, v2)


if __name__ == "__main__":
    key = jax.random.PRNGKey(0)
    kx, kp, kx2 = jax.random.split(key, 3)

    # Primary test: B=2, C=4, 16x16 (inplanes == planes, stride == 1).
    B, C, H, W = 2, 4, 16, 16
    x = jax.random.normal(kx, (B, C, H, W), jnp.float32)
    params = _make_params(kp, C)

    out = jax.block_until_ready(sphere_basic_block(x, *params))
    ref = _ref_forward(x, *params)
    assert out.shape == (B, C, H, W)
    # Tolerance accounts for bf16 MXU operands / intermediates / output
    # (accumulation in f32), compounded over two convs.
    assert jnp.allclose(out, ref, atol=5e-2, rtol=5e-2), \
        f"max abs err = {jnp.max(jnp.abs(out - ref))}"

    # Secondary test: W not a multiple of 8 exercises the W-padding path.
    H2, W2 = 12, 14
    x2 = jax.random.normal(kx2, (B, C, H2, W2), jnp.float32)
    out2 = jax.block_until_ready(sphere_basic_block(x2, *params))
    ref2 = _ref_forward(x2, *params)
    assert out2.shape == (B, C, H2, W2)
    assert jnp.allclose(out2, ref2, atol=5e-2, rtol=5e-2), \
        f"max abs err (padded-W case) = {jnp.max(jnp.abs(out2 - ref2))}"

    print("KERNEL_OK")
</pallas_src>

<mosaic_0001>
module attributes {stable_mosaic.version = 11 : i64} {
  func.func @sphere_block_kernel(%arg0: i32, %arg1: memref<1x16x16x128xbf16, #tpu.memory_space<vmem>>, %arg2: memref<3x384x128xbf16, #tpu.memory_space<vmem>>, %arg3: memref<1x128xf32, #tpu.memory_space<vmem>>, %arg4: memref<3x384x128xbf16, #tpu.memory_space<vmem>>, %arg5: memref<1x128xf32, #tpu.memory_space<vmem>>, %arg6: memref<1x16x16x128xbf16, #tpu.memory_space<vmem>>, %arg7: memref<288x384xbf16, #tpu.memory_space<vmem>>) attributes {dimension_semantics = [#tpu.dimension_semantics<parallel>], iteration_bounds = array<i64: 2>, scalar_prefetch = 0 : i64, scratch_operands = 1 : i64, tpu.core_type = #tpu.core_type<tc>, window_params = [{transform_indices = @transform_0, window_bounds = array<i64: 1, 16, 16, 128>}, {pipeline_mode = #tpu.pipeline_mode<synchronous>, transform_indices = @transform_1, window_bounds = array<i64: 3, 384, 128>}, {pipeline_mode = #tpu.pipeline_mode<synchronous>, transform_indices = @transform_2, window_bounds = array<i64: 1, 128>}, {pipeline_mode = #tpu.pipeline_mode<synchronous>, transform_indices = @transform_3, window_bounds = array<i64: 3, 384, 128>}, {pipeline_mode = #tpu.pipeline_mode<synchronous>, transform_indices = @transform_4, window_bounds = array<i64: 1, 128>}, {transform_indices = @transform_5, window_bounds = array<i64: 1, 16, 16, 128>}]} {
    %0 = tpu.iota {dimensions = array<i32: 1>} : vector<16x16x128xi32>
    %1 = vector.shape_cast %0 : vector<16x16x128xi32> to vector<256x128xi32>
    %cst = arith.constant 0.000000e+00 : bf16
    %2 = vector.broadcast %cst : bf16 to vector<16x384xbf16>
    %c0 = arith.constant 0 : index
    %c0_0 = arith.constant 0 : index
    %3 = vector.load %arg7[%c0, %c0_0] : memref<288x384xbf16, #tpu.memory_space<vmem>>, vector<16x384xbf16>
    tpu.vector_store %arg7[%c0, %c0_0], %2 {strides = array<i32>} : memref<288x384xbf16, #tpu.memory_space<vmem>>, vector<16x384xbf16>,
    %c272 = arith.constant 272 : index
    %c0_1 = arith.constant 0 : index
    %4 = vector.load %arg7[%c272, %c0_1] : memref<288x384xbf16, #tpu.memory_space<vmem>>, vector<16x384xbf16>
    tpu.vector_store %arg7[%c272, %c0_1], %2 {strides = array<i32>} : memref<288x384xbf16, #tpu.memory_space<vmem>>, vector<16x384xbf16>,
    %c0_2 = arith.constant 0 : index
    %c0_3 = arith.constant 0 : index
    %c0_4 = arith.constant 0 : index
    %c0_5 = arith.constant 0 : index
    %5 = vector.load %arg1[%c0_2, %c0_3, %c0_4, %c0_5] : memref<1x16x16x128xbf16, #tpu.memory_space<vmem>>, vector<1x16x16x128xbf16>
    %6 = vector.shape_cast %5 : vector<1x16x16x128xbf16> to vector<16x16x128xbf16>
    %7 = vector.shape_cast %6 : vector<16x16x128xbf16> to vector<256x128xbf16>
    %c16 = arith.constant 16 : index
    %c128 = arith.constant 128 : index
    %8 = vector.load %arg7[%c16, %c128] : memref<288x384xbf16, #tpu.memory_space<vmem>>, vector<256x128xbf16>
    tpu.vector_store %arg7[%c16, %c128], %7 {strides = array<i32>} : memref<288x384xbf16, #tpu.memory_space<vmem>>, vector<256x128xbf16>,
    %9 = arith.extf %7 : vector<256x128xbf16> to vector<256x128xf32>
    %c1_i32 = arith.constant 1 : i32
    %10 = tpu.dynamic_rotate %9 by %c1_i32 dim 0 : vector<256x128xf32>, i32 -> vector<256x128xf32>
    %c1_i32_6 = arith.constant 1 : i32
    %11 = vector.broadcast %c1_i32_6 : i32 to vector<256x128xi32>
    %12 = arith.cmpi sge, %1, %11 : vector<256x128xi32>
    %cst_7 = arith.constant 0.000000e+00 : f32
    %13 = vector.broadcast %cst_7 : f32 to vector<256x128xf32>
    %14 = arith.select %12, %10, %13 : vector<256x128xi1>, vector<256x128xf32>
    %15 = arith.truncf %14 : vector<256x128xf32> to vector<256x128xbf16>
    %c16_8 = arith.constant 16 : index
    %c0_9 = arith.constant 0 : index
    %16 = vector.load %arg7[%c16_8, %c0_9] : memref<288x384xbf16, #tpu.memory_space<vmem>>, vector<256x128xbf16>
    tpu.vector_store %arg7[%c16_8, %c0_9], %15 {strides = array<i32>} : memref<288x384xbf16, #tpu.memory_space<vmem>>, vector<256x128xbf16>,
    %c255_i32 = arith.constant 255 : i32
    %17 = tpu.dynamic_rotate %9 by %c255_i32 dim 0 : vector<256x128xf32>, i32 -> vector<256x128xf32>
    %c15_i32 = arith.constant 15 : i32
    %18 = vector.broadcast %c15_i32 : i32 to vector<256x128xi32>
    %19 = arith.cmpi slt, %1, %18 : vector<256x128xi32>
    %cst_10 = arith.constant 0.000000e+00 : f32
    %20 = vector.broadcast %cst_10 : f32 to vector<256x128xf32>
    %21 = arith.select %19, %17, %20 : vector<256x128xi1>, vector<256x128xf32>
    %22 = arith.truncf %21 : vector<256x128xf32> to vector<256x128xbf16>
    %c16_11 = arith.constant 16 : index
    %c256 = arith.constant 256 : index
    %23 = vector.load %arg7[%c16_11, %c256] : memref<288x384xbf16, #tpu.memory_space<vmem>>, vector<256x128xbf16>
    tpu.vector_store %arg7[%c16_11, %c256], %22 {strides = array<i32>} : memref<288x384xbf16, #tpu.memory_space<vmem>>, vector<256x128xbf16>,
    %c0_12 = arith.constant 0 : index
    %c0_13 = arith.constant 0 : index
    %24 = vector.load %arg7[%c0_12, %c0_13] : memref<288x384xbf16, #tpu.memory_space<vmem>>, vector<256x384xbf16>
    %c0_14 = arith.constant 0 : index
    %c0_15 = arith.constant 0 : index
    %c0_16 = arith.constant 0 : index
    %25 = vector.load %arg2[%c0_14, %c0_15, %c0_16] : memref<3x384x128xbf16, #tpu.memory_space<vmem>>, vector<1x384x128xbf16>
    %26 = vector.shape_cast %25 : vector<1x384x128xbf16> to vector<384x128xbf16>
    %cst_17 = arith.constant dense<0.000000e+00> : vector<256x128xf32>
    %27 = tpu.matmul %24, %26, %cst_17 {dimension_numbers = #tpu.dot_dimension_numbers<[1], [0], [0], [1], [0, 0, 1, 1], [], []>} : vector<256x384xbf16>, vector<384x128xbf16>, vector<256x128xf32> -> vector<256x128xf32>
    %c16_18 = arith.constant 16 : index
    %c0_19 = arith.constant 0 : index
    %28 = vector.load %arg7[%c16_18, %c0_19] : memref<288x384xbf16, #tpu.memory_space<vmem>>, vector<256x384xbf16>
    %c1 = arith.constant 1 : index
    %c0_20 = arith.constant 0 : index
    %c0_21 = arith.constant 0 : index
    %29 = vector.load %arg2[%c1, %c0_20, %c0_21] : memref<3x384x128xbf16, #tpu.memory_space<vmem>>, vector<1x384x128xbf16>
    %30 = vector.shape_cast %29 : vector<1x384x128xbf16> to vector<384x128xbf16>
    %cst_22 = arith.constant dense<0.000000e+00> : vector<256x128xf32>
    %31 = tpu.matmul %28, %30, %cst_22 {dimension_numbers = #tpu.dot_dimension_numbers<[1], [0], [0], [1], [0, 0, 1, 1], [], []>} : vector<256x384xbf16>, vector<384x128xbf16>, vector<256x128xf32> -> vector<256x128xf32>
    %32 = arith.addf %27, %31 : vector<256x128xf32>
    %c32 = arith.constant 32 : index
    %c0_23 = arith.constant 0 : index
    %33 = vector.load %arg7[%c32, %c0_23] : memref<288x384xbf16, #tpu.memory_space<vmem>>, vector<256x384xbf16>
    %c2 = arith.constant 2 : index
    %c0_24 = arith.constant 0 : index
    %c0_25 = arith.constant 0 : index
    %34 = vector.load %arg2[%c2, %c0_24, %c0_25] : memref<3x384x128xbf16, #tpu.memory_space<vmem>>, vector<1x384x128xbf16>
    %35 = vector.shape_cast %34 : vector<1x384x128xbf16> to vector<384x128xbf16>
    %cst_26 = arith.constant dense<0.000000e+00> : vector<256x128xf32>
    %36 = tpu.matmul %33, %35, %cst_26 {dimension_numbers = #tpu.dot_dimension_numbers<[1], [0], [0], [1], [0, 0, 1, 1], [], []>} : vector<256x384xbf16>, vector<384x128xbf16>, vector<256x128xf32> -> vector<256x128xf32>
    %37 = arith.addf %32, %36 : vector<256x128xf32>
    %c0_27 = arith.constant 0 : index
    %c0_28 = arith.constant 0 : index
    %38 = vector.load %arg3[%c0_27, %c0_28] : memref<1x128xf32, #tpu.memory_space<vmem>>, vector<1x128xf32>
    %39 = vector.broadcast %38 : vector<1x128xf32> to vector<256x128xf32>
    %40 = arith.addf %37, %39 : vector<256x128xf32>
    %cst_29 = arith.constant 0.000000e+00 : f32
    %41 = vector.broadcast %cst_29 : f32 to vector<256x128xf32>
    %42 = arith.maximumf %40, %41 : vector<256x128xf32>
    %43 = arith.truncf %42 : vector<256x128xf32> to vector<256x128xbf16>
    %c16_30 = arith.constant 16 : index
    %c128_31 = arith.constant 128 : index
    %44 = vector.load %arg7[%c16_30, %c128_31] : memref<288x384xbf16, #tpu.memory_space<vmem>>, vector<256x128xbf16>
    tpu.vector_store %arg7[%c16_30, %c128_31], %43 {strides = array<i32>} : memref<288x384xbf16, #tpu.memory_space<vmem>>, vector<256x128xbf16>,
    %c1_i32_32 = arith.constant 1 : i32
    %45 = tpu.dynamic_rotate %42 by %c1_i32_32 dim 0 : vector<256x128xf32>, i32 -> vector<256x128xf32>
    %c1_i32_33 = arith.constant 1 : i32
    %46 = vector.broadcast %c1_i32_33 : i32 to vector<256x128xi32>
    %47 = arith.cmpi sge, %1, %46 : vector<256x128xi32>
    %cst_34 = arith.constant 0.000000e+00 : f32
    %48 = vector.broadcast %cst_34 : f32 to vector<256x128xf32>
    %49 = arith.select %47, %45, %48 : vector<256x128xi1>, vector<256x128xf32>
    %50 = arith.truncf %49 : vector<256x128xf32> to vector<256x128xbf16>
    %c16_35 = arith.constant 16 : index
    %c0_36 = arith.constant 0 : index
    %51 = vector.load %arg7[%c16_35, %c0_36] : memref<288x384xbf16, #tpu.memory_space<vmem>>, vector<256x128xbf16>
    tpu.vector_store %arg7[%c16_35, %c0_36], %50 {strides = array<i32>} : memref<288x384xbf16, #tpu.memory_space<vmem>>, vector<256x128xbf16>,
    %c255_i32_37 = arith.constant 255 : i32
    %52 = tpu.dynamic_rotate %42 by %c255_i32_37 dim 0 : vector<256x128xf32>, i32 -> vector<256x128xf32>
    %c15_i32_38 = arith.constant 15 : i32
    %53 = vector.broadcast %c15_i32_38 : i32 to vector<256x128xi32>
    %54 = arith.cmpi slt, %1, %53 : vector<256x128xi32>
    %cst_39 = arith.constant 0.000000e+00 : f32
    %55 = vector.broadcast %cst_39 : f32 to vector<256x128xf32>
    %56 = arith.select %54, %52, %55 : vector<256x128xi1>, vector<256x128xf32>
    %57 = arith.truncf %56 : vector<256x128xf32> to vector<256x128xbf16>
    %c16_40 = arith.constant 16 : index
    %c256_41 = arith.constant 256 : index
    %58 = vector.load %arg7[%c16_40, %c256_41] : memref<288x384xbf16, #tpu.memory_space<vmem>>, vector<256x128xbf16>
    tpu.vector_store %arg7[%c16_40, %c256_41], %57 {strides = array<i32>} : memref<288x384xbf16, #tpu.memory_space<vmem>>, vector<256x128xbf16>,
    %c0_42 = arith.constant 0 : index
    %c0_43 = arith.constant 0 : index
    %59 = vector.load %arg7[%c0_42, %c0_43] : memref<288x384xbf16, #tpu.memory_space<vmem>>, vector<256x384xbf16>
    %c0_44 = arith.constant 0 : index
    %c0_45 = arith.constant 0 : index
    %c0_46 = arith.constant 0 : index
    %60 = vector.load %arg4[%c0_44, %c0_45, %c0_46] : memref<3x384x128xbf16, #tpu.memory_space<vmem>>, vector<1x384x128xbf16>
    %61 = vector.shape_cast %60 : vector<1x384x128xbf16> to vector<384x128xbf16>
    %cst_47 = arith.constant dense<0.000000e+00> : vector<256x128xf32>
    %62 = tpu.matmul %59, %61, %cst_47 {dimension_numbers = #tpu.dot_dimension_numbers<[1], [0], [0], [1], [0, 0, 1, 1], [], []>} : vector<256x384xbf16>, vector<384x128xbf16>, vector<256x128xf32> -> vector<256x128xf32>
    %c16_48 = arith.constant 16 : index
    %c0_49 = arith.constant 0 : index
    %63 = vector.load %arg7[%c16_48, %c0_49] : memref<288x384xbf16, #tpu.memory_space<vmem>>, vector<256x384xbf16>
    %c1_50 = arith.constant 1 : index
    %c0_51 = arith.constant 0 : index
    %c0_52 = arith.constant 0 : index
    %64 = vector.load %arg4[%c1_50, %c0_51, %c0_52] : memref<3x384x128xbf16, #tpu.memory_space<vmem>>, vector<1x384x128xbf16>
    %65 = vector.shape_cast %64 : vector<1x384x128xbf16> to vector<384x128xbf16>
    %cst_53 = arith.constant dense<0.000000e+00> : vector<256x128xf32>
    %66 = tpu.matmul %63, %65, %cst_53 {dimension_numbers = #tpu.dot_dimension_numbers<[1], [0], [0], [1], [0, 0, 1, 1], [], []>} : vector<256x384xbf16>, vector<384x128xbf16>, vector<256x128xf32> -> vector<256x128xf32>
    %67 = arith.addf %62, %66 : vector<256x128xf32>
    %c32_54 = arith.constant 32 : index
    %c0_55 = arith.constant 0 : index
    %68 = vector.load %arg7[%c32_54, %c0_55] : memref<288x384xbf16, #tpu.memory_space<vmem>>, vector<256x384xbf16>
    %c2_56 = arith.constant 2 : index
    %c0_57 = arith.constant 0 : index
    %c0_58 = arith.constant 0 : index
    %69 = vector.load %arg4[%c2_56, %c0_57, %c0_58] : memref<3x384x128xbf16, #tpu.memory_space<vmem>>, vector<1x384x128xbf16>
    %70 = vector.shape_cast %69 : vector<1x384x128xbf16> to vector<384x128xbf16>
    %cst_59 = arith.constant dense<0.000000e+00> : vector<256x128xf32>
    %71 = tpu.matmul %68, %70, %cst_59 {dimension_numbers = #tpu.dot_dimension_numbers<[1], [0], [0], [1], [0, 0, 1, 1], [], []>} : vector<256x384xbf16>, vector<384x128xbf16>, vector<256x128xf32> -> vector<256x128xf32>
    %72 = arith.addf %67, %71 : vector<256x128xf32>
    %c0_60 = arith.constant 0 : index
    %c0_61 = arith.constant 0 : index
    %73 = vector.load %arg5[%c0_60, %c0_61] : memref<1x128xf32, #tpu.memory_space<vmem>>, vector<1x128xf32>
    %74 = vector.broadcast %73 : vector<1x128xf32> to vector<256x128xf32>
    %75 = arith.addf %72, %74 : vector<256x128xf32>
    %c0_62 = arith.constant 0 : index
    %c0_63 = arith.constant 0 : index
    %c0_64 = arith.constant 0 : index
    %c0_65 = arith.constant 0 : index
    %76 = vector.load %arg1[%c0_62, %c0_63, %c0_64, %c0_65] : memref<1x16x16x128xbf16, #tpu.memory_space<vmem>>, vector<1x16x16x128xbf16>
    %77 = vector.shape_cast %76 : vector<1x16x16x128xbf16> to vector<16x16x128xbf16>
    %78 = vector.shape_cast %77 : vector<16x16x128xbf16> to vector<256x128xbf16>
    %79 = arith.extf %78 : vector<256x128xbf16> to vector<256x128xf32>
    %80 = arith.addf %75, %79 : vector<256x128xf32>
    %cst_66 = arith.constant 0.000000e+00 : f32
    %81 = vector.broadcast %cst_66 : f32 to vector<256x128xf32>
    %82 = arith.maximumf %80, %81 : vector<256x128xf32>
    %83 = vector.shape_cast %82 : vector<256x128xf32> to vector<16x16x128xf32>
    %84 = arith.truncf %83 : vector<16x16x128xf32> to vector<16x16x128xbf16>
    %c0_67 = arith.constant 0 : index
    %c0_68 = arith.constant 0 : index
    %c0_69 = arith.constant 0 : index
    %c0_70 = arith.constant 0 : index
    %85 = vector.load %arg6[%c0_67, %c0_68, %c0_69, %c0_70] : memref<1x16x16x128xbf16, #tpu.memory_space<vmem>>, vector<1x16x16x128xbf16>
    %86 = vector.shape_cast %85 : vector<1x16x16x128xbf16> to vector<16x16x128xbf16>
    %87 = vector.shape_cast %84 : vector<16x16x128xbf16> to vector<1x16x16x128xbf16>
    tpu.vector_store %arg6[%c0_67, %c0_68, %c0_69, %c0_70], %87 {strides = array<i32>} : memref<1x16x16x128xbf16, #tpu.memory_space<vmem>>, vector<1x16x16x128xbf16>,
    return
  }
  func.func @transform_0(%arg0: i32) -> (i32, i32, i32, i32) {
    %c0_i32 = arith.constant 0 : i32
    %c0_i32_0 = arith.constant 0 : i32
    %c0_i32_1 = arith.constant 0 : i32
    %c0_i32_2 = arith.constant 0 : i32
    return %arg0, %c0_i32, %c0_i32_0, %c0_i32_1 : i32, i32, i32, i32
  }
  func.func @transform_1(%arg0: i32) -> (i32, i32, i32) {
    %c0_i32 = arith.constant 0 : i32
    %c0_i32_0 = arith.constant 0 : i32
    %c0_i32_1 = arith.constant 0 : i32
    %c0_i32_2 = arith.constant 0 : i32
    return %c0_i32, %c0_i32_0, %c0_i32_1 : i32, i32, i32
  }
  func.func @transform_2(%arg0: i32) -> (i32, i32) {
    %c0_i32 = arith.constant 0 : i32
    %c0_i32_0 = arith.constant 0 : i32
    %c0_i32_1 = arith.constant 0 : i32
    return %c0_i32, %c0_i32_0 : i32, i32
  }
  func.func @transform_3(%arg0: i32) -> (i32, i32, i32) {
    %c0_i32 = arith.constant 0 : i32
    %c0_i32_0 = arith.constant 0 : i32
    %c0_i32_1 = arith.constant 0 : i32
    %c0_i32_2 = arith.constant 0 : i32
    return %c0_i32, %c0_i32_0, %c0_i32_1 : i32, i32, i32
  }
  func.func @transform_4(%arg0: i32) -> (i32, i32) {
    %c0_i32 = arith.constant 0 : i32
    %c0_i32_0 = arith.constant 0 : i32
    %c0_i32_1 = arith.constant 0 : i32
    return %c0_i32, %c0_i32_0 : i32, i32
  }
  func.func @transform_5(%arg0: i32) -> (i32, i32, i32, i32) {
    %c0_i32 = arith.constant 0 : i32
    %c0_i32_0 = arith.constant 0 : i32
    %c0_i32_1 = arith.constant 0 : i32
    %c0_i32_2 = arith.constant 0 : i32
    return %arg0, %c0_i32, %c0_i32_0, %c0_i32_1 : i32, i32, i32, i32
  }
}

</mosaic_0001>

<llo_original>
// kernel: sphere_basic_block_nhwc.1
$region0: #{sphere_basic_block_nhwc.1}
  #allocation0 [shape = 'u32[]', space=smem, size = 0x4, offset = 0x4, fixed_abs, tag = 'smem constant byte address 0x4 - core index']
  #allocation1 [shape = 'u32[144,128]{1,0:T(1,128)}', space=vmem, size = 0x12000, scoped, tag = 'internal scratch']
  #allocation2 [shape = 'bf16[288,384]{1,0:T(8,128)(2,1)}', space=vmem, size = 0x36000, scoped, tag = 'scratch operand']
  %s0 = inlined_call_operand.vmem [shape: bf16[2,16,16,128], index: 0, kind: input, shape index: {}]
  %s1 = inlined_call_operand.vmem [shape: bf16[3,384,128], index: 1, kind: input, shape index: {}]
  %s2 = inlined_call_operand.vmem [shape: f32[1,128], index: 2, kind: input, shape index: {}]
  %s3 = inlined_call_operand.vmem [shape: bf16[3,384,128], index: 3, kind: input, shape index: {}]
  %s4 = inlined_call_operand.vmem [shape: f32[1,128], index: 4, kind: input, shape index: {}]
  %s5 = inlined_call_operand.hbm [shape: bf16[2,16,16,128], index: 5, kind: output, shape index: {}]
  %s6 = sld [smem:[#allocation0]]
  $region53: #{sphere_basic_block_nhwc.1} parent=0
    _
  %s8 = ssub.s32 1, %s6
  %s9 = scalar_select 0, %s8, %s6
  $region1: #{sphere_basic_block_nhwc.1} parent=0
    #allocation3 [shape = 'u8[131072]{0}', space=vmem, size = 0x20000, scoped, tag = 'output window, operand 0']
    #allocation4 [shape = 's32[2]{0}', space=sflag, size = 0x8, scoped, tag = 'scoped memory for sphere_basic_block_nhwc.1']
    %10 = vsyncpa [#allocation4], 0
    %s11 = scalar_lea.sflag [#allocation4], 1
    %12 = vsyncpa %s11, 0
    loop: start=0, step=1, limit=4
    $region2: #{sphere_basic_block_nhwc.1} parent=1 // loop_pre_header
      _
    $region3: #{sphere_basic_block_nhwc.1} parent=1 // loop_header
      %s14 = sphi 0, %s18
      %p15 = scmp.ge.s32.totalorder %s14, 4
      %s24 = sphi 0, %s26
      %s27 = sphi 0, %s24
      %s28 = sphi 0, %s27
      %s44 = sphi 0, %s28
      %s48 = sphi 0, %s48
      %s50 = sphi 0, %s48
      %s51 = sphi 0, %s50
      %s65 = sphi 0, %s51
      %s69 = sphi 0, %s69
      %s71 = sphi 0, %s69
      %s72 = sphi 0, %s71
      %s86 = sphi 0, %s72
      %s90 = sphi 0, %s90
      %s92 = sphi 0, %s90
      %s93 = sphi 0, %s92
      %s107 = sphi 0, %s93
      %s111 = sphi 0, %s111
      %s113 = sphi 0, %s111
      %s114 = sphi 0, %s113
      %s128 = sphi 0, %s114
      %s134 = sphi 0, %s136
      %s137 = sphi 0, %s134
      %s138 = sphi 0, %s137
      %s154 = sphi 0, %s138
    $region4: #{sphere_basic_block_nhwc.1} parent=1 // loop_header_branch
      %17 = sbr.rel (%p15) target = $region8
    $region5: #{sphere_basic_block_nhwc.1} parent=1 // loop_body
      %s19 = ssub.s32 %s14, 1
      %s20 = ssub.s32 %s14, 2
      %s21 = sadd.s32 %s14, 1
      %s22 = ssub.s32 %s14, %s21
      %p23 = scmp.eq.s32.totalorder %s22, 0
      %s25 = sadd.s32 %s24, 1
      %s26 = scalar_select %p23, %s24, %s25
      %p29 = pneg %p23
      %p30 = scmp.eq.s32.totalorder %s14, 1
      %p31 = por %p29, %p30
      %p32 = scmp.ne.s32.totalorder %s24, %s27
      %p33 = scmp.eq.s32.totalorder %s14, 0
      %p34 = por %p32, %p33
      %p35 = scmp.ne.s32.totalorder %s24, %s27
      %p36 = scmp.eq.s32.totalorder %s19, 1
      %p37 = por %p35, %p36
      %p38 = scmp.ne.s32.totalorder %s27, %s28
      %p39 = scmp.eq.s32.totalorder %s19, 0
      %p40 = por %p38, %p39
      %p41 = scmp.ne.s32.totalorder %s27, %s28
      %p42 = scmp.eq.s32.totalorder %s20, 1
      %p43 = por %p41, %p42
      %p45 = scmp.ne.s32.totalorder %s28, %s44
      %p46 = scmp.eq.s32.totalorder %s20, 0
      %p47 = por %p45, %p46
      %s49 = sadd.s32 %s48, 1
      %p52 = scmp.eq.s32.totalorder %s14, 1
      %p53 = scmp.ne.s32.totalorder %s48, %s50
      %p54 = scmp.eq.s32.totalorder %s14, 0
      %p55 = por %p53, %p54
      %p56 = scmp.ne.s32.totalorder %s48, %s50
      %p57 = scmp.eq.s32.totalorder %s19, 1
      %p58 = por %p56, %p57
      %p59 = scmp.ne.s32.totalorder %s50, %s51
      %p60 = scmp.eq.s32.totalorder %s19, 0
      %p61 = por %p59, %p60
      %p62 = scmp.ne.s32.totalorder %s50, %s51
      %p63 = scmp.eq.s32.totalorder %s20, 1
      %p64 = por %p62, %p63
      %p66 = scmp.ne.s32.totalorder %s51, %s65
      %p67 = scmp.eq.s32.totalorder %s20, 0
      %p68 = por %p66, %p67
      %s70 = sadd.s32 %s69, 1
      %p73 = scmp.eq.s32.totalorder %s14, 1
      %p74 = scmp.ne.s32.totalorder %s69, %s71
      %p75 = scmp.eq.s32.totalorder %s14, 0
      %p76 = por %p74, %p75
      %p77 = scmp.ne.s32.totalorder %s69, %s71
      %p78 = scmp.eq.s32.totalorder %s19, 1
      %p79 = por %p77, %p78
      %p80 = scmp.ne.s32.totalorder %s71, %s72
      %p81 = scmp.eq.s32.totalorder %s19, 0
      %p82 = por %p80, %p81
      %p83 = scmp.ne.s32.totalorder %s71, %s72
      %p84 = scmp.eq.s32.totalorder %s20, 1
      %p85 = por %p83, %p84
      %p87 = scmp.ne.s32.totalorder %s72, %s86
      %p88 = scmp.eq.s32.totalorder %s20, 0
      %p89 = por %p87, %p88
      %s91 = sadd.s32 %s90, 1
      %p94 = scmp.eq.s32.totalorder %s14, 1
      %p95 = scmp.ne.s32.totalorder %s90, %s92
      %p96 = scmp.eq.s32.totalorder %s14, 0
      %p97 = por %p95, %p96
      %p98 = scmp.ne.s32.totalorder %s90, %s92
      %p99 = scmp.eq.s32.totalorder %s19, 1
      %p100 = por %p98, %p99
      %p101 = scmp.ne.s32.totalorder %s92, %s93
      %p102 = scmp.eq.s32.totalorder %s19, 0
      %p103 = por %p101, %p102
      %p104 = scmp.ne.s32.totalorder %s92, %s93
      %p105 = scmp.eq.s32.totalorder %s20, 1
      %p106 = por %p104, %p105
      %p108 = scmp.ne.s32.totalorder %s93, %s107
      %p109 = scmp.eq.s32.totalorder %s20, 0
      %p110 = por %p108, %p109
      %s112 = sadd.s32 %s111, 1
      %p115 = scmp.eq.s32.totalorder %s14, 1
      %p116 = scmp.ne.s32.totalorder %s111, %s113
      %p117 = scmp.eq.s32.totalorder %s14, 0
      %p118 = por %p116, %p117
      %p119 = scmp.ne.s32.totalorder %s111, %s113
      %p120 = scmp.eq.s32.totalorder %s19, 1
      %p121 = por %p119, %p120
      %p122 = scmp.ne.s32.totalorder %s113, %s114
      %p123 = scmp.eq.s32.totalorder %s19, 0
      %p124 = por %p122, %p123
      %p125 = scmp.ne.s32.totalorder %s113, %s114
      %p126 = scmp.eq.s32.totalorder %s20, 1
      %p127 = por %p125, %p126
      %p129 = scmp.ne.s32.totalorder %s114, %s128
      %p130 = scmp.eq.s32.totalorder %s20, 0
      %p131 = por %p129, %p130
      %s132 = ssub.s32 %s14, %s21
      %p133 = scmp.eq.s32.totalorder %s132, 0
      %s135 = sadd.s32 %s134, 1
      %s136 = scalar_select %p133, %s134, %s135
      %p139 = pneg %p133
      %p140 = scmp.eq.s32.totalorder %s14, 1
      %p141 = por %p139, %p140
      %p142 = scmp.ne.s32.totalorder %s134, %s137
      %p143 = scmp.eq.s32.totalorder %s14, 0
      %p144 = por %p142, %p143
      %p145 = scmp.ne.s32.totalorder %s134, %s137
      %p146 = scmp.eq.s32.totalorder %s19, 1
      %p147 = por %p145, %p146
      %p148 = scmp.ne.s32.totalorder %s137, %s138
      %p149 = scmp.eq.s32.totalorder %s19, 0
      %p150 = por %p148, %p149
      %p151 = scmp.ne.s32.totalorder %s137, %s138
      %p152 = scmp.eq.s32.totalorder %s20, 1
      %p153 = por %p151, %p152
      %p155 = scmp.ne.s32.totalorder %s138, %s154
      %p156 = scmp.eq.s32.totalorder %s20, 0
      %p157 = por %p155, %p156
      %p158 = scmp.le.s32.totalorder 1, %s14
      %p159 = scmp.lt.s32.totalorder %s14, 3
      %p160 = pnand %p158, %p159
      %p161 = pneg %p160
      // Predicated region
      $region9: #{sphere_basic_block_nhwc.1} parent=5 // pred_check
        _
      $region10: #{sphere_basic_block_nhwc.1} parent=5 // pred_check_branch
        %163 = sbr.rel (%p160) target = $region12
      $region11: #{sphere_basic_block_nhwc.1} parent=5 // pred_region
        %s164 = ssub.s32 %s14, 1
        // Predicated region
        $region13: #{sphere_basic_block_nhwc.1} parent=11 // pred_check
          %p165 = pneg %p61
        $region14: #{sphere_basic_block_nhwc.1} parent=11 // pred_check_branch
          %167 = sbr.rel (%p165) target = $region16
        $region15: #{sphere_basic_block_nhwc.1} parent=11 // pred_region
          _
        $region16: #{sphere_basic_block_nhwc.1} parent=11 // pred_fallthru
          _
        // Predicated region
        $region17: #{sphere_basic_block_nhwc.1} parent=11 // pred_check
          %p168 = pneg %p82
        $region18: #{sphere_basic_block_nhwc.1} parent=11 // pred_check_branch
          %170 = sbr.rel (%p168) target = $region20
        $region19: #{sphere_basic_block_nhwc.1} parent=11 // pred_region
          _
        $region20: #{sphere_basic_block_nhwc.1} parent=11 // pred_fallthru
          _
        // Predicated region
        $region21: #{sphere_basic_block_nhwc.1} parent=11 // pred_check
          %p171 = pneg %p103
        $region22: #{sphere_basic_block_nhwc.1} parent=11 // pred_check_branch
          %173 = sbr.rel (%p171) target = $region24
        $region23: #{sphere_basic_block_nhwc.1} parent=11 // pred_region
          _
        $region24: #{sphere_basic_block_nhwc.1} parent=11 // pred_fallthru
          _
        // Predicated region
        $region25: #{sphere_basic_block_nhwc.1} parent=11 // pred_check
          %p174 = pneg %p124
        $region26: #{sphere_basic_block_nhwc.1} parent=11 // pred_check_branch
          %176 = sbr.rel (%p174) target = $region28
        $region27: #{sphere_basic_block_nhwc.1} parent=11 // pred_region
          _
        $region28: #{sphere_basic_block_nhwc.1} parent=11 // pred_fallthru
          _
      $region12: #{sphere_basic_block_nhwc.1} parent=5 // pred_fallthru
        _
      %p177 = scmp.lt.s32.totalorder %s14, 2
      // Predicated region
      $region29: #{sphere_basic_block_nhwc.1} parent=5 // pred_check
        %p178 = pneg %p177
      $region30: #{sphere_basic_block_nhwc.1} parent=5 // pred_check_branch
        %180 = sbr.rel (%p178) target = $region32
      $region31: #{sphere_basic_block_nhwc.1} parent=5 // pred_region
        // Predicated region
        $region33: #{sphere_basic_block_nhwc.1} parent=31 // pred_check
          %p181 = pneg %p34
        $region34: #{sphere_basic_block_nhwc.1} parent=31 // pred_check_branch
          %183 = sbr.rel (%p181) target = $region36
        $region35: #{sphere_basic_block_nhwc.1} parent=31 // pred_region
          %p184 = scmp.lt.s32.totalorder %s14, 1
          %s185 = scalar_select %p184, %s14, 1
          %s186 = smul.addr %s185, 32
          %s187 = smul.addr %s186, 4
          %s188 = scalar_lea.vmem %s0, %s187
        $region36: #{sphere_basic_block_nhwc.1} parent=31 // pred_fallthru
          _
      $region32: #{sphere_basic_block_nhwc.1} parent=5 // pred_fallthru
        _
      %p189 = scmp.le.s32.totalorder 1, %s14
      %p190 = scmp.lt.s32.totalorder %s14, 3
      %p191 = pnand %p189, %p190
      %p192 = pneg %p191
      // Predicated region
      $region37: #{sphere_basic_block_nhwc.1} parent=5 // pred_check
        _
      $region38: #{sphere_basic_block_nhwc.1} parent=5 // pred_check_branch
        %194 = sbr.rel (%p191) target = $region40
      $region39: #{sphere_basic_block_nhwc.1} parent=5 // pred_region
        %s195 = ssub.s32 %s14, 1
        %p196 = scmp.lt.s32.totalorder %s19, 1
        %s197 = scalar_select %p196, %s19, 1
        %s198 = smul.addr %s197, 32
        %s199 = smul.addr %s198, 4
        %s200 = scalar_lea.vmem %s0, %s199
        %p201 = pneg %p40
        %p202 = pneg %p37
        %p203 = pneg %p61
        %p204 = pneg %p58
        %p205 = pneg %p82
        %p206 = pneg %p79
        %p207 = pneg %p103
        %p208 = pneg %p100
        %p209 = pneg %p124
        %p210 = pneg %p121
        %p211 = pneg %p150
        %p212 = pneg %p147
        %s213 = sand.u32 %s137, 1
        %s214 = scalar_lea.sflag [#allocation4], %s213
        %s215 = sand.u32 %s137, 1
        %s216 = smul.addr %s215, 128
        %s217 = scalar_lea.vmem [#allocation3], %s216
        %p218 = scmp.lt.s32.totalorder %s19, 1
        %s219 = scalar_select %p218, %s19, 1
        %s220 = smul.addr %s219, 32
        %s221 = smul.addr %s220, 4
        %s222 = scalar_lea.vmem %s0, %s221
        %v224 = vlaneseq
        %v225 = vshrl.u32 %v224, 7
        %v226 = vadd.s32 %v225, 8
        %227 = vst [vmem:[#allocation2] sm:$0xff] 0
        %228 = vst [vmem:[#allocation2 + $0x8] sm:$0xf] 0
        %229 = vst [vmem:[#allocation2 + $0xc] sm:$0xff] 0
        %230 = vst [vmem:[#allocation2 + $0x14] sm:$0xf] 0
        %231 = vst [vmem:[#allocation2 + $0x198] sm:$0xff] 0
        %232 = vst [vmem:[#allocation2 + $0x1a0] sm:$0xf] 0
        %233 = vst [vmem:[#allocation2 + $0x1a4] sm:$0xff] 0
        %234 = vst [vmem:[#allocation2 + $0x1ac] sm:$0xf] 0
        %v235 = vld [vmem:[%s222] sm:$0xf]
        %v236 = vld [vmem:[%s222 + $0x4] sm:$0xf]
        %v237 = vld [vmem:[%s222 + $0x8] sm:$0xf]
        %v238 = vld [vmem:[%s222 + $0xc] sm:$0xf]
        %v239 = vld [vmem:[%s222 + $0x10] sm:$0xf]
        %v240 = vld [vmem:[%s222 + $0x14] sm:$0xf]
        %v241 = vld [vmem:[%s222 + $0x18] sm:$0xf]
        %v242 = vld [vmem:[%s222 + $0x1c] sm:$0xf]
        %v243 = vld [vmem:[%s222 + $0x20] sm:$0xf]
        %v244 = vld [vmem:[%s222 + $0x24] sm:$0xf]
        %v245 = vld [vmem:[%s222 + $0x28] sm:$0xf]
        %v246 = vld [vmem:[%s222 + $0x2c] sm:$0xf]
        %v247 = vld [vmem:[%s222 + $0x30] sm:$0xf]
        %v248 = vld [vmem:[%s222 + $0x34] sm:$0xf]
        %v249 = vld [vmem:[%s222 + $0x38] sm:$0xf]
        %v250 = vld [vmem:[%s222 + $0x3c] sm:$0xf]
        %v251 = vld [vmem:[%s222 + $0x40] sm:$0xf]
        %v252 = vld [vmem:[%s222 + $0x44] sm:$0xf]
        %v253 = vld [vmem:[%s222 + $0x48] sm:$0xf]
        %v254 = vld [vmem:[%s222 + $0x4c] sm:$0xf]
        %v255 = vld [vmem:[%s222 + $0x50] sm:$0xf]
        %v256 = vld [vmem:[%s222 + $0x54] sm:$0xf]
        %v257 = vld [vmem:[%s222 + $0x58] sm:$0xf]
        %v258 = vld [vmem:[%s222 + $0x5c] sm:$0xf]
        %v259 = vld [vmem:[%s222 + $0x60] sm:$0xf]
        %v260 = vld [vmem:[%s222 + $0x64] sm:$0xf]
        %v261 = vld [vmem:[%s222 + $0x68] sm:$0xf]
        %v262 = vld [vmem:[%s222 + $0x6c] sm:$0xf]
        %v263 = vld [vmem:[%s222 + $0x70] sm:$0xf]
        %v264 = vld [vmem:[%s222 + $0x74] sm:$0xf]
        %v265 = vld [vmem:[%s222 + $0x78] sm:$0xf]
        %v266 = vld [vmem:[%s222 + $0x7c] sm:$0xf]
        %267 = vst [vmem:[#allocation2 + $0x1c] sm:$0xf] %v235
        %268 = vst [vmem:[#allocation2 + $0x28] sm:$0xf] %v236
        %269 = vst [vmem:[#allocation2 + $0x34] sm:$0xf] %v237
        %270 = vst [vmem:[#allocation2 + $0x40] sm:$0xf] %v238
        %271 = vst [vmem:[#allocation2 + $0x4c] sm:$0xf] %v239
        %272 = vst [vmem:[#allocation2 + $0x58] sm:$0xf] %v240
        %273 = vst [vmem:[#allocation2 + $0x64] sm:$0xf] %v241
        %274 = vst [vmem:[#allocation2 + $0x70] sm:$0xf] %v242
        %275 = vst [vmem:[#allocation2 + $0x7c] sm:$0xf] %v243
        %276 = vst [vmem:[#allocation2 + $0x88] sm:$0xf] %v244
        %277 = vst [vmem:[#allocation2 + $0x94] sm:$0xf] %v245
        %278 = vst [vmem:[#allocation2 + $0xa0] sm:$0xf] %v246
        %279 = vst [vmem:[#allocation2 + $0xac] sm:$0xf] %v247
        %280 = vst [vmem:[#allocation2 + $0xb8] sm:$0xf] %v248
        %281 = vst [vmem:[#allocation2 + $0xc4] sm:$0xf] %v249
        %282 = vst [vmem:[#allocation2 + $0xd0] sm:$0xf] %v250
        %283 = vst [vmem:[#allocation2 + $0xdc] sm:$0xf] %v251
        %284 = vst [vmem:[#allocation2 + $0xe8] sm:$0xf] %v252
        %285 = vst [vmem:[#allocation2 + $0xf4] sm:$0xf] %v253
        %286 = vst [vmem:[#allocation2 + $0x100] sm:$0xf] %v254
        %287 = vst [vmem:[#allocation2 + $0x10c] sm:$0xf] %v255
        %288 = vst [vmem:[#allocation2 + $0x118] sm:$0xf] %v256
        %289 = vst [vmem:[#allocation2 + $0x124] sm:$0xf] %v257
        %290 = vst [vmem:[#allocation2 + $0x130] sm:$0xf] %v258
        %291 = vst [vmem:[#allocation2 + $0x13c] sm:$0xf] %v259
        %292 = vst [vmem:[#allocation2 + $0x148] sm:$0xf] %v260
        %293 = vst [vmem:[#allocation2 + $0x154] sm:$0xf] %v261
        %294 = vst [vmem:[#allocation2 + $0x160] sm:$0xf] %v262
        %295 = vst [vmem:[#allocation2 + $0x16c] sm:$0xf] %v263
        %296 = vst [vmem:[#allocation2 + $0x178] sm:$0xf] %v264
        %297 = vst [vmem:[#allocation2 + $0x184] sm:$0xf] %v265
        %298 = vst [vmem:[#allocation2 + $0x190] sm:$0xf] %v266
        %v299 = vunpack.c.l.bf16 %v235
        %v300 = vunpack.c.l.bf16 %v236
        %v301 = vunpack.c.l.bf16 %v237
        %v302 = vunpack.c.l.bf16 %v238
        %v303 = vunpack.c.l.bf16 %v239
        %v304 = vunpack.c.l.bf16 %v240
        %v305 = vunpack.c.l.bf16 %v241
        %v306 = vunpack.c.l.bf16 %v242
        %v307 = vunpack.c.l.bf16 %v243
        %v308 = vunpack.c.l.bf16 %v244
        %v309 = vunpack.c.l.bf16 %v245
        %v310 = vunpack.c.l.bf16 %v246
        %v311 = vunpack.c.l.bf16 %v247
        %v312 = vunpack.c.l.bf16 %v248
        %v313 = vunpack.c.l.bf16 %v249
        %v314 = vunpack.c.l.bf16 %v250
        %v315 = vunpack.c.l.bf16 %v251
        %v316 = vunpack.c.l.bf16 %v252
        %v317 = vunpack.c.l.bf16 %v253
        %v318 = vunpack.c.l.bf16 %v254
        %v319 = vunpack.c.l.bf16 %v255
        %v320 = vunpack.c.l.bf16 %v256
        %v321 = vunpack.c.l.bf16 %v257
        %v322 = vunpack.c.l.bf16 %v258
        %v323 = vunpack.c.l.bf16 %v259
        %v324 = vunpack.c.l.bf16 %v260
        %v325 = vunpack.c.l.bf16 %v261
        %v326 = vunpack.c.l.bf16 %v262
        %v327 = vunpack.c.l.bf16 %v263
        %v328 = vunpack.c.l.bf16 %v264
        %v329 = vunpack.c.l.bf16 %v265
        %v330 = vunpack.c.l.bf16 %v266
        %v331 = vrot.slane %v299, 7
        %v332 = vrot.slane %v300, 7
        %v333 = vrot.slane %v301, 7
        %v334 = vrot.slane %v302, 7
        %v335 = vrot.slane %v303, 7
        %v336 = vrot.slane %v304, 7
        %v337 = vrot.slane %v305, 7
        %v338 = vrot.slane %v306, 7
        %v339 = vrot.slane %v307, 7
        %v340 = vrot.slane %v308, 7
        %v341 = vrot.slane %v309, 7
        %v342 = vrot.slane %v310, 7
        %v343 = vrot.slane %v311, 7
        %v344 = vrot.slane %v312, 7
        %v345 = vrot.slane %v313, 7
        %v346 = vrot.slane %v314, 7
        %v347 = vrot.slane %v315, 7
        %v348 = vrot.slane %v316, 7
        %v349 = vrot.slane %v317, 7
        %v350 = vrot.slane %v318, 7
        %v351 = vrot.slane %v319, 7
        %v352 = vrot.slane %v320, 7
        %v353 = vrot.slane %v321, 7
        %v354 = vrot.slane %v322, 7
        %v355 = vrot.slane %v323, 7
        %v356 = vrot.slane %v324, 7
        %v357 = vrot.slane %v325, 7
        %v358 = vrot.slane %v326, 7
        %v359 = vrot.slane %v327, 7
        %v360 = vrot.slane %v328, 7
        %v361 = vrot.slane %v329, 7
        %v362 = vrot.slane %v330, 7
        %vm363 = vcmp.lt.s32.totalorder %v225, 1
        %v364 = vsel %vm363, %v361, %v362
        %v365 = vsel %vm363, %v360, %v361
        %v366 = vsel %vm363, %v359, %v360
        %v367 = vsel %vm363, %v358, %v359
        %v368 = vsel %vm363, %v357, %v358
        %v369 = vsel %vm363, %v356, %v357
        %v370 = vsel %vm363, %v355, %v356
        %v371 = vsel %vm363, %v354, %v355
        %v372 = vsel %vm363, %v353, %v354
        %v373 = vsel %vm363, %v352, %v353
        %v374 = vsel %vm363, %v351, %v352
        %v375 = vsel %vm363, %v350, %v351
        %v376 = vsel %vm363, %v349, %v350
        %v377 = vsel %vm363, %v348, %v349
        %v378 = vsel %vm363, %v347, %v348
        %v379 = vsel %vm363, %v346, %v347
        %v380 = vsel %vm363, %v345, %v346
        %v381 = vsel %vm363, %v344, %v345
        %v382 = vsel %vm363, %v343, %v344
        %v383 = vsel %vm363, %v342, %v343
        %v384 = vsel %vm363, %v341, %v342
        %v385 = vsel %vm363, %v340, %v341
        %v386 = vsel %vm363, %v339, %v340
        %v387 = vsel %vm363, %v338, %v339
        %v388 = vsel %vm363, %v337, %v338
        %v389 = vsel %vm363, %v336, %v337
        %v390 = vsel %vm363, %v335, %v336
        %v391 = vsel %vm363, %v334, %v335
        %v392 = vsel %vm363, %v333, %v334
        %v393 = vsel %vm363, %v332, %v333
        %v394 = vsel %vm363, %v331, %v332
        %v395 = vsel %vm363, %v362, %v331
        %vm396 = vcmp.ge.s32.totalorder %v225, 1
        %vm397 = vcmp.ge.s32.totalorder %v226, 1
        %v398 = vsel %vm396, %v395, 0.0
        %v399 = vsel %vm397, %v394, 0.0
        %v400 = vsel %vm396, %v393, 0.0
        %v401 = vsel %vm397, %v392, 0.0
        %v402 = vsel %vm396, %v391, 0.0
        %v403 = vsel %vm397, %v390, 0.0
        %v404 = vsel %vm396, %v389, 0.0
        %v405 = vsel %vm397, %v388, 0.0
        %v406 = vsel %vm396, %v387, 0.0
        %v407 = vsel %vm397, %v386, 0.0
        %v408 = vsel %vm396, %v385, 0.0
        %v409 = vsel %vm397, %v384, 0.0
        %v410 = vsel %vm396, %v383, 0.0
        %v411 = vsel %vm397, %v382, 0.0
        %v412 = vsel %vm396, %v381, 0.0
        %v413 = vsel %vm397, %v380, 0.0
        %v414 = vsel %vm396, %v379, 0.0
        %v415 = vsel %vm397, %v378, 0.0
        %v416 = vsel %vm396, %v377, 0.0
        %v417 = vsel %vm397, %v376, 0.0
        %v418 = vsel %vm396, %v375, 0.0
        %v419 = vsel %vm397, %v374, 0.0
        %v420 = vsel %vm396, %v373, 0.0
        %v421 = vsel %vm397, %v372, 0.0
        %v422 = vsel %vm396, %v371, 0.0
        %v423 = vsel %vm397, %v370, 0.0
        %v424 = vsel %vm396, %v369, 0.0
        %v425 = vsel %vm397, %v368, 0.0
        %v426 = vsel %vm396, %v367, 0.0
        %v427 = vsel %vm397, %v366, 0.0
        %v428 = vsel %vm396, %v365, 0.0
        %v429 = vsel %vm397, %v364, 0.0
        %v430 = vpack.c.bf16 %v399, %v398
        %v431 = vpack.c.bf16 %v401, %v400
        %v432 = vpack.c.bf16 %v403, %v402
        %v433 = vpack.c.bf16 %v405, %v404
        %v434 = vpack.c.bf16 %v407, %v406
        %v435 = vpack.c.bf16 %v409, %v408
        %v436 = vpack.c.bf16 %v411, %v410
        %v437 = vpack.c.bf16 %v413, %v412
        %v438 = vpack.c.bf16 %v415, %v414
        %v439 = vpack.c.bf16 %v417, %v416
        %v440 = vpack.c.bf16 %v419, %v418
        %v441 = vpack.c.bf16 %v421, %v420
        %v442 = vpack.c.bf16 %v423, %v422
        %v443 = vpack.c.bf16 %v425, %v424
        %v444 = vpack.c.bf16 %v427, %v426
        %v445 = vpack.c.bf16 %v429, %v428
        %v462 = vunpack.c.l.b16 %v430
        %v463 = vunpack.c.h.b16 %v430
        %v464 = vunpack.c.l.b16 %v431
        %v465 = vunpack.c.h.b16 %v431
        %v466 = vunpack.c.l.b16 %v432
        %v467 = vunpack.c.h.b16 %v432
        %v468 = vunpack.c.l.b16 %v433
        %v469 = vunpack.c.h.b16 %v433
        %v470 = vunpack.c.l.b16 %v434
        %v471 = vunpack.c.h.b16 %v434
        %v472 = vunpack.c.l.b16 %v435
        %v473 = vunpack.c.h.b16 %v435
        %v474 = vunpack.c.l.b16 %v436
        %v475 = vunpack.c.h.b16 %v436
        %v476 = vunpack.c.l.b16 %v437
        %v477 = vunpack.c.h.b16 %v437
        %v478 = vunpack.c.l.b16 %v438
        %v479 = vunpack.c.h.b16 %v438
        %v480 = vunpack.c.l.b16 %v439
        %v481 = vunpack.c.h.b16 %v439
        %v482 = vunpack.c.l.b16 %v440
        %v483 = vunpack.c.h.b16 %v440
        %v484 = vunpack.c.l.b16 %v441
        %v485 = vunpack.c.h.b16 %v441
        %v486 = vunpack.c.l.b16 %v442
        %v487 = vunpack.c.h.b16 %v442
        %v488 = vunpack.c.l.b16 %v443
        %v489 = vunpack.c.h.b16 %v443
        %v490 = vunpack.c.l.b16 %v444
        %v491 = vunpack.c.h.b16 %v444
        %v492 = vunpack.c.l.b16 %v445
        %v493 = vunpack.c.h.b16 %v445
        %v494 = vpack.c.b16 %v462, %v462
        %v495 = vpack.c.b16 %v463, %v463
        %v496 = vpack.c.b16 %v464, %v464
        %v497 = vpack.c.b16 %v465, %v465
        %v498 = vpack.c.b16 %v466, %v466
        %v499 = vpack.c.b16 %v467, %v467
        %v500 = vpack.c.b16 %v468, %v468
        %v501 = vpack.c.b16 %v469, %v469
        %v502 = vpack.c.b16 %v470, %v470
        %v503 = vpack.c.b16 %v471, %v471
        %v504 = vpack.c.b16 %v472, %v472
        %v505 = vpack.c.b16 %v473, %v473
        %v506 = vpack.c.b16 %v474, %v474
        %v507 = vpack.c.b16 %v475, %v475
        %v508 = vpack.c.b16 %v476, %v476
        %v509 = vpack.c.b16 %v477, %v477
        %v510 = vpack.c.b16 %v478, %v478
        %v511 = vpack.c.b16 %v479, %v479
        %v512 = vpack.c.b16 %v480, %v480
        %v513 = vpack.c.b16 %v481, %v481
        %v514 = vpack.c.b16 %v482, %v482
        %v515 = vpack.c.b16 %v483, %v483
        %v516 = vpack.c.b16 %v484, %v484
        %v517 = vpack.c.b16 %v485, %v485
        %v518 = vpack.c.b16 %v486, %v486
        %v519 = vpack.c.b16 %v487, %v487
        %v520 = vpack.c.b16 %v488, %v488
        %v521 = vpack.c.b16 %v489, %v489
        %v522 = vpack.c.b16 %v490, %v490
        %v523 = vpack.c.b16 %v491, %v491
        %v524 = vpack.c.b16 %v492, %v492
        %v525 = vpack.c.b16 %v493, %v493
        %558 = vst [vmem:[#allocation2 + $0x18] sm:$0xf] %v494
        %559 = vst [vmem:[#allocation2 + $0x24] sm:$0xf] %v495
        %560 = vst [vmem:[#allocation2 + $0x30] sm:$0xf] %v496
        %561 = vst [vmem:[#allocation2 + $0x3c] sm:$0xf] %v497
        %562 = vst [vmem:[#allocation2 + $0x48] sm:$0xf] %v498
        %563 = vst [vmem:[#allocation2 + $0x54] sm:$0xf] %v499
        %564 = vst [vmem:[#allocation2 + $0x60] sm:$0xf] %v500
        %565 = vst [vmem:[#allocation2 + $0x6c] sm:$0xf] %v501
        %566 = vst [vmem:[#allocation2 + $0x78] sm:$0xf] %v502
        %567 = vst [vmem:[#allocation2 + $0x84] sm:$0xf] %v503
        %568 = vst [vmem:[#allocation2 + $0x90] sm:$0xf] %v504
        %569 = vst [vmem:[#allocation2 + $0x9c] sm:$0xf] %v505
        %570 = vst [vmem:[#allocation2 + $0xa8] sm:$0xf] %v506
        %571 = vst [vmem:[#allocation2 + $0xb4] sm:$0xf] %v507
        %572 = vst [vmem:[#allocation2 + $0xc0] sm:$0xf] %v508
        %573 = vst [vmem:[#allocation2 + $0xcc] sm:$0xf] %v509
        %574 = vst [vmem:[#allocation2 + $0xd8] sm:$0xf] %v510
        %575 = vst [vmem:[#allocation2 + $0xe4] sm:$0xf] %v511
        %576 = vst [vmem:[#allocation2 + $0xf0] sm:$0xf] %v512
        %577 = vst [vmem:[#allocation2 + $0xfc] sm:$0xf] %v513
        %578 = vst [vmem:[#allocation2 + $0x108] sm:$0xf] %v514
        %579 = vst [vmem:[#allocation2 + $0x114] sm:$0xf] %v515
        %580 = vst [vmem:[#allocation2 + $0x120] sm:$0xf] %v516
        %581 = vst [vmem:[#allocation2 + $0x12c] sm:$0xf] %v517
        %582 = vst [vmem:[#allocation2 + $0x138] sm:$0xf] %v518
        %583 = vst [vmem:[#allocation2 + $0x144] sm:$0xf] %v519
        %584 = vst [vmem:[#allocation2 + $0x150] sm:$0xf] %v520
        %585 = vst [vmem:[#allocation2 + $0x15c] sm:$0xf] %v521
        %586 = vst [vmem:[#allocation2 + $0x168] sm:$0xf] %v522
        %587 = vst [vmem:[#allocation2 + $0x174] sm:$0xf] %v523
        %588 = vst [vmem:[#allocation2 + $0x180] sm:$0xf] %v524
        %589 = vst [vmem:[#allocation2 + $0x18c] sm:$0xf] %v525
        %v590 = vrot.slane %v299, 1
        %v591 = vrot.slane %v300, 1
        %v592 = vrot.slane %v301, 1
        %v593 = vrot.slane %v302, 1
        %v594 = vrot.slane %v303, 1
        %v595 = vrot.slane %v304, 1
        %v596 = vrot.slane %v305, 1
        %v597 = vrot.slane %v306, 1
        %v598 = vrot.slane %v307, 1
        %v599 = vrot.slane %v308, 1
        %v600 = vrot.slane %v309, 1
        %v601 = vrot.slane %v310, 1
        %v602 = vrot.slane %v311, 1
        %v603 = vrot.slane %v312, 1
        %v604 = vrot.slane %v313, 1
        %v605 = vrot.slane %v314, 1
        %v606 = vrot.slane %v315, 1
        %v607 = vrot.slane %v316, 1
        %v608 = vrot.slane %v317, 1
        %v609 = vrot.slane %v318, 1
        %v610 = vrot.slane %v319, 1
        %v611 = vrot.slane %v320, 1
        %v612 = vrot.slane %v321, 1
        %v613 = vrot.slane %v322, 1
        %v614 = vrot.slane %v323, 1
        %v615 = vrot.slane %v324, 1
        %v616 = vrot.slane %v325, 1
        %v617 = vrot.slane %v326, 1
        %v618 = vrot.slane %v327, 1
        %v619 = vrot.slane %v328, 1
        %v620 = vrot.slane %v329, 1
        %v621 = vrot.slane %v330, 1
        %vm622 = vcmp.lt.s32.totalorder %v225, 7
        %v623 = vsel %vm622, %v620, %v621
        %v624 = vsel %vm622, %v619, %v620
        %v625 = vsel %vm622, %v618, %v619
        %v626 = vsel %vm622, %v617, %v618
        %v627 = vsel %vm622, %v616, %v617
        %v628 = vsel %vm622, %v615, %v616
        %v629 = vsel %vm622, %v614, %v615
        %v630 = vsel %vm622, %v613, %v614
        %v631 = vsel %vm622, %v612, %v613
        %v632 = vsel %vm622, %v611, %v612
        %v633 = vsel %vm622, %v610, %v611
        %v634 = vsel %vm622, %v609, %v610
        %v635 = vsel %vm622, %v608, %v609
        %v636 = vsel %vm622, %v607, %v608
        %v637 = vsel %vm622, %v606, %v607
        %v638 = vsel %vm622, %v605, %v606
        %v639 = vsel %vm622, %v604, %v605
        %v640 = vsel %vm622, %v603, %v604
        %v641 = vsel %vm622, %v602, %v603
        %v642 = vsel %vm622, %v601, %v602
        %v643 = vsel %vm622, %v600, %v601
        %v644 = vsel %vm622, %v599, %v600
        %v645 = vsel %vm622, %v598, %v599
        %v646 = vsel %vm622, %v597, %v598
        %v647 = vsel %vm622, %v596, %v597
        %v648 = vsel %vm622, %v595, %v596
        %v649 = vsel %vm622, %v594, %v595
        %v650 = vsel %vm622, %v593, %v594
        %v651 = vsel %vm622, %v592, %v593
        %v652 = vsel %vm622, %v591, %v592
        %v653 = vsel %vm622, %v590, %v591
        %v654 = vsel %vm622, %v621, %v590
        %vm655 = vcmp.lt.s32.totalorder %v225, 15
        %vm656 = vcmp.lt.s32.totalorder %v226, 15
        %v657 = vsel %vm655, %v653, 0.0
        %v658 = vsel %vm656, %v652, 0.0
        %v659 = vsel %vm655, %v651, 0.0
        %v660 = vsel %vm656, %v650, 0.0
        %v661 = vsel %vm655, %v649, 0.0
        %v662 = vsel %vm656, %v648, 0.0
        %v663 = vsel %vm655, %v647, 0.0
        %v664 = vsel %vm656, %v646, 0.0
        %v665 = vsel %vm655, %v645, 0.0
        %v666 = vsel %vm656, %v644, 0.0
        %v667 = vsel %vm655, %v643, 0.0
        %v668 = vsel %vm656, %v642, 0.0
        %v669 = vsel %vm655, %v641, 0.0
        %v670 = vsel %vm656, %v640, 0.0
        %v671 = vsel %vm655, %v639, 0.0
        %v672 = vsel %vm656, %v638, 0.0
        %v673 = vsel %vm655, %v637, 0.0
        %v674 = vsel %vm656, %v636, 0.0
        %v675 = vsel %vm655, %v635, 0.0
        %v676 = vsel %vm656, %v634, 0.0
        %v677 = vsel %vm655, %v633, 0.0
        %v678 = vsel %vm656, %v632, 0.0
        %v679 = vsel %vm655, %v631, 0.0
        %v680 = vsel %vm656, %v630, 0.0
        %v681 = vsel %vm655, %v629, 0.0
        %v682 = vsel %vm656, %v628, 0.0
        %v683 = vsel %vm655, %v627, 0.0
        %v684 = vsel %vm656, %v626, 0.0
        %v685 = vsel %vm655, %v625, 0.0
        %v686 = vsel %vm656, %v624, 0.0
        %v687 = vsel %vm655, %v623, 0.0
        %v688 = vsel %vm656, %v654, 0.0
        %v689 = vpack.c.bf16 %v658, %v657
        %v690 = vpack.c.bf16 %v660, %v659
        %v691 = vpack.c.bf16 %v662, %v661
        %v692 = vpack.c.bf16 %v664, %v663
        %v693 = vpack.c.bf16 %v666, %v665
        %v694 = vpack.c.bf16 %v668, %v667
        %v695 = vpack.c.bf16 %v670, %v669
        %v696 = vpack.c.bf16 %v672, %v671
        %v697 = vpack.c.bf16 %v674, %v673
        %v698 = vpack.c.bf16 %v676, %v675
        %v699 = vpack.c.bf16 %v678, %v677
        %v700 = vpack.c.bf16 %v680, %v679
        %v701 = vpack.c.bf16 %v682, %v681
        %v702 = vpack.c.bf16 %v684, %v683
        %v703 = vpack.c.bf16 %v686, %v685
        %v704 = vpack.c.bf16 %v688, %v687
        %v721 = vunpack.c.l.b16 %v689
        %v722 = vunpack.c.h.b16 %v689
        %v723 = vunpack.c.l.b16 %v690
        %v724 = vunpack.c.h.b16 %v690
        %v725 = vunpack.c.l.b16 %v691
        %v726 = vunpack.c.h.b16 %v691
        %v727 = vunpack.c.l.b16 %v692
        %v728 = vunpack.c.h.b16 %v692
        %v729 = vunpack.c.l.b16 %v693
        %v730 = vunpack.c.h.b16 %v693
        %v731 = vunpack.c.l.b16 %v694
        %v732 = vunpack.c.h.b16 %v694
        %v733 = vunpack.c.l.b16 %v695
        %v734 = vunpack.c.h.b16 %v695
        %v735 = vunpack.c.l.b16 %v696
        %v736 = vunpack.c.h.b16 %v696
        %v737 = vunpack.c.l.b16 %v697
        %v738 = vunpack.c.h.b16 %v697
        %v739 = vunpack.c.l.b16 %v698
        %v740 = vunpack.c.h.b16 %v698
        %v741 = vunpack.c.l.b16 %v699
        %v742 = vunpack.c.h.b16 %v699
        %v743 = vunpack.c.l.b16 %v700
        %v744 = vunpack.c.h.b16 %v700
        %v745 = vunpack.c.l.b16 %v701
        %v746 = vunpack.c.h.b16 %v701
        %v747 = vunpack.c.l.b16 %v702
        %v748 = vunpack.c.h.b16 %v702
        %v749 = vunpack.c.l.b16 %v703
        %v750 = vunpack.c.h.b16 %v703
        %v751 = vunpack.c.l.b16 %v704
        %v752 = vunpack.c.h.b16 %v704
        %v753 = vpack.c.b16 %v721, %v721
        %v754 = vpack.c.b16 %v722, %v722
        %v755 = vpack.c.b16 %v723, %v723
        %v756 = vpack.c.b16 %v724, %v724
        %v757 = vpack.c.b16 %v725, %v725
        %v758 = vpack.c.b16 %v726, %v726
        %v759 = vpack.c.b16 %v727, %v727
        %v760 = vpack.c.b16 %v728, %v728
        %v761 = vpack.c.b16 %v729, %v729
        %v762 = vpack.c.b16 %v730, %v730
        %v763 = vpack.c.b16 %v731, %v731
        %v764 = vpack.c.b16 %v732, %v732
        %v765 = vpack.c.b16 %v733, %v733
        %v766 = vpack.c.b16 %v734, %v734
        %v767 = vpack.c.b16 %v735, %v735
        %v768 = vpack.c.b16 %v736, %v736
        %v769 = vpack.c.b16 %v737, %v737
        %v770 = vpack.c.b16 %v738, %v738
        %v771 = vpack.c.b16 %v739, %v739
        %v772 = vpack.c.b16 %v740, %v740
        %v773 = vpack.c.b16 %v741, %v741
        %v774 = vpack.c.b16 %v742, %v742
        %v775 = vpack.c.b16 %v743, %v743
        %v776 = vpack.c.b16 %v744, %v744
        %v777 = vpack.c.b16 %v745, %v745
        %v778 = vpack.c.b16 %v746, %v746
        %v779 = vpack.c.b16 %v747, %v747
        %v780 = vpack.c.b16 %v748, %v748
        %v781 = vpack.c.b16 %v749, %v749
        %v782 = vpack.c.b16 %v750, %v750
        %v783 = vpack.c.b16 %v751, %v751
        %v784 = vpack.c.b16 %v752, %v752
        %817 = vst [vmem:[#allocation2 + $0x20] sm:$0xf] %v753
        %818 = vst [vmem:[#allocation2 + $0x2c] sm:$0xf] %v754
        %819 = vst [vmem:[#allocation2 + $0x38] sm:$0xf] %v755
        %820 = vst [vmem:[#allocation2 + $0x44] sm:$0xf] %v756
        %821 = vst [vmem:[#allocation2 + $0x50] sm:$0xf] %v757
        %822 = vst [vmem:[#allocation2 + $0x5c] sm:$0xf] %v758
        %823 = vst [vmem:[#allocation2 + $0x68] sm:$0xf] %v759
        %824 = vst [vmem:[#allocation2 + $0x74] sm:$0xf] %v760
        %825 = vst [vmem:[#allocation2 + $0x80] sm:$0xf] %v761
        %826 = vst [vmem:[#allocation2 + $0x8c] sm:$0xf] %v762
        %827 = vst [vmem:[#allocation2 + $0x98] sm:$0xf] %v763
        %828 = vst [vmem:[#allocation2 + $0xa4] sm:$0xf] %v764
        %829 = vst [vmem:[#allocation2 + $0xb0] sm:$0xf] %v765
        %830 = vst [vmem:[#allocation2 + $0xbc] sm:$0xf] %v766
        %831 = vst [vmem:[#allocation2 + $0xc8] sm:$0xf] %v767
        %832 = vst [vmem:[#allocation2 + $0xd4] sm:$0xf] %v768
        %833 = vst [vmem:[#allocation2 + $0xe0] sm:$0xf] %v769
        %834 = vst [vmem:[#allocation2 + $0xec] sm:$0xf] %v770
        %835 = vst [vmem:[#allocation2 + $0xf8] sm:$0xf] %v771
        %836 = vst [vmem:[#allocation2 + $0x104] sm:$0xf] %v772
        %837 = vst [vmem:[#allocation2 + $0x110] sm:$0xf] %v773
        %838 = vst [vmem:[#allocation2 + $0x11c] sm:$0xf] %v774
        %839 = vst [vmem:[#allocation2 + $0x128] sm:$0xf] %v775
        %840 = vst [vmem:[#allocation2 + $0x134] sm:$0xf] %v776
        %841 = vst [vmem:[#allocation2 + $0x140] sm:$0xf] %v777
        %842 = vst [vmem:[#allocation2 + $0x14c] sm:$0xf] %v778
        %843 = vst [vmem:[#allocation2 + $0x158] sm:$0xf] %v779
        %844 = vst [vmem:[#allocation2 + $0x164] sm:$0xf] %v780
        %845 = vst [vmem:[#allocation2 + $0x170] sm:$0xf] %v781
        %846 = vst [vmem:[#allocation2 + $0x17c] sm:$0xf] %v782
        %847 = vst [vmem:[#allocation2 + $0x188] sm:$0xf] %v783
        %848 = vst [vmem:[#allocation2 + $0x194] sm:$0xf] %v784
        %v849 = vld [vmem:[#allocation2] sm:$0xff]
        %v850 = vld [vmem:[#allocation2 + $0x8] sm:$0xf]
        %v851 = vld [vmem:[#allocation2 + $0xc] sm:$0xff]
        %v852 = vld [vmem:[#allocation2 + $0x14] sm:$0xf]
        %v853 = vld [vmem:[#allocation2 + $0x18] sm:$0xff]
        %v854 = vld [vmem:[#allocation2 + $0x20] sm:$0xf]
        %v855 = vld [vmem:[#allocation2 + $0x24] sm:$0xff]
        %v856 = vld [vmem:[#allocation2 + $0x2c] sm:$0xf]
        %v857 = vld [vmem:[#allocation2 + $0x30] sm:$0xff]
        %v858 = vld [vmem:[#allocation2 + $0x38] sm:$0xf]
        %v859 = vld [vmem:[#allocation2 + $0x3c] sm:$0xff]
        %v860 = vld [vmem:[#allocation2 + $0x44] sm:$0xf]
        %v861 = vld [vmem:[#allocation2 + $0x48] sm:$0xff]
        %v862 = vld [vmem:[#allocation2 + $0x50] sm:$0xf]
        %v863 = vld [vmem:[#allocation2 + $0x54] sm:$0xff]
        %v864 = vld [vmem:[#allocation2 + $0x5c] sm:$0xf]
        %v865 = vld [vmem:[#allocation2 + $0x60] sm:$0xff]
        %v866 = vld [vmem:[#allocation2 + $0x68] sm:$0xf]
        %v867 = vld [vmem:[#allocation2 + $0x6c] sm:$0xff]
        %v868 = vld [vmem:[#allocation2 + $0x74] sm:$0xf]
        %v869 = vld [vmem:[#allocation2 + $0x78] sm:$0xff]
        %v870 = vld [vmem:[#allocation2 + $0x80] sm:$0xf]
        %v871 = vld [vmem:[#allocation2 + $0x84] sm:$0xff]
        %v872 = vld [vmem:[#allocation2 + $0x8c] sm:$0xf]
        %v873 = vld [vmem:[#allocation2 + $0x90] sm:$0xff]
        %v874 = vld [vmem:[#allocation2 + $0x98] sm:$0xf]
        %v875 = vld [vmem:[#allocation2 + $0x9c] sm:$0xff]
        %v876 = vld [vmem:[#allocation2 + $0xa4] sm:$0xf]
        %v877 = vld [vmem:[#allocation2 + $0xa8] sm:$0xff]
        %v878 = vld [vmem:[#allocation2 + $0xb0] sm:$0xf]
        %v879 = vld [vmem:[#allocation2 + $0xb4] sm:$0xff]
        %v880 = vld [vmem:[#allocation2 + $0xbc] sm:$0xf]
        %v881 = vld [vmem:[#allocation2 + $0xc0] sm:$0xff]
        %v882 = vld [vmem:[#allocation2 + $0xc8] sm:$0xf]
        %v883 = vld [vmem:[#allocation2 + $0xcc] sm:$0xff]
        %v884 = vld [vmem:[#allocation2 + $0xd4] sm:$0xf]
        %v885 = vld [vmem:[#allocation2 + $0xd8] sm:$0xff]
        %v886 = vld [vmem:[#allocation2 + $0xe0] sm:$0xf]
        %v887 = vld [vmem:[#allocation2 + $0xe4] sm:$0xff]
        %v888 = vld [vmem:[#allocation2 + $0xec] sm:$0xf]
        %v889 = vld [vmem:[#allocation2 + $0xf0] sm:$0xff]
        %v890 = vld [vmem:[#allocation2 + $0xf8] sm:$0xf]
        %v891 = vld [vmem:[#allocation2 + $0xfc] sm:$0xff]
        %v892 = vld [vmem:[#allocation2 + $0x104] sm:$0xf]
        %v893 = vld [vmem:[#allocation2 + $0x108] sm:$0xff]
        %v894 = vld [vmem:[#allocation2 + $0x110] sm:$0xf]
        %v895 = vld [vmem:[#allocation2 + $0x114] sm:$0xff]
        %v896 = vld [vmem:[#allocation2 + $0x11c] sm:$0xf]
        %v897 = vld [vmem:[#allocation2 + $0x120] sm:$0xff]
        %v898 = vld [vmem:[#allocation2 + $0x128] sm:$0xf]
        %v899 = vld [vmem:[#allocation2 + $0x12c] sm:$0xff]
        %v900 = vld [vmem:[#allocation2 + $0x134] sm:$0xf]
        %v901 = vld [vmem:[#allocation2 + $0x138] sm:$0xff]
        %v902 = vld [vmem:[#allocation2 + $0x140] sm:$0xf]
        %v903 = vld [vmem:[#allocation2 + $0x144] sm:$0xff]
        %v904 = vld [vmem:[#allocation2 + $0x14c] sm:$0xf]
        %v905 = vld [vmem:[#allocation2 + $0x150] sm:$0xff]
        %v906 = vld [vmem:[#allocation2 + $0x158] sm:$0xf]
        %v907 = vld [vmem:[#allocation2 + $0x15c] sm:$0xff]
        %v908 = vld [vmem:[#allocation2 + $0x164] sm:$0xf]
        %v909 = vld [vmem:[#allocation2 + $0x168] sm:$0xff]
        %v910 = vld [vmem:[#allocation2 + $0x170] sm:$0xf]
        %v911 = vld [vmem:[#allocation2 + $0x174] sm:$0xff]
        %v912 = vld [vmem:[#allocation2 + $0x17c] sm:$0xf]
        %v913 = vld [vmem:[%s1] sm:$0xf]
        %v914 = vld [vmem:[%s1 + $0x4] sm:$0xf]
        %v915 = vld [vmem:[%s1 + $0x8] sm:$0xf]
        %v916 = vld [vmem:[%s1 + $0xc] sm:$0xf]
        %v917 = vld [vmem:[%s1 + $0x10] sm:$0xf]
        %v918 = vld [vmem:[%s1 + $0x14] sm:$0xf]
        %v919 = vld [vmem:[%s1 + $0x18] sm:$0xf]
        %v920 = vld [vmem:[%s1 + $0x1c] sm:$0xf]
        %v921 = vld [vmem:[%s1 + $0x20] sm:$0xf]
        %v922 = vld [vmem:[%s1 + $0x24] sm:$0xf]
        %v923 = vld [vmem:[%s1 + $0x28] sm:$0xf]
        %v924 = vld [vmem:[%s1 + $0x2c] sm:$0xf]
        %v925 = vld [vmem:[%s1 + $0x30] sm:$0xf]
        %v926 = vld [vmem:[%s1 + $0x34] sm:$0xf]
        %v927 = vld [vmem:[%s1 + $0x38] sm:$0xf]
        %v928 = vld [vmem:[%s1 + $0x3c] sm:$0xf]
        %v929 = vld [vmem:[%s1 + $0x40] sm:$0xf]
        %v930 = vld [vmem:[%s1 + $0x44] sm:$0xf]
        %v931 = vld [vmem:[%s1 + $0x48] sm:$0xf]
        %v932 = vld [vmem:[%s1 + $0x4c] sm:$0xf]
        %v933 = vld [vmem:[%s1 + $0x50] sm:$0xf]
        %v934 = vld [vmem:[%s1 + $0x54] sm:$0xf]
        %v935 = vld [vmem:[%s1 + $0x58] sm:$0xf]
        %v936 = vld [vmem:[%s1 + $0x5c] sm:$0xf]
        %v937 = vld [vmem:[%s1 + $0x60] sm:$0xf]
        %v938 = vld [vmem:[%s1 + $0x64] sm:$0xf]
        %v939 = vld [vmem:[%s1 + $0x68] sm:$0xf]
        %v940 = vld [vmem:[%s1 + $0x6c] sm:$0xf]
        %v941 = vld [vmem:[%s1 + $0x70] sm:$0xf]
        %v942 = vld [vmem:[%s1 + $0x74] sm:$0xf]
        %v943 = vld [vmem:[%s1 + $0x78] sm:$0xf]
        %v944 = vld [vmem:[%s1 + $0x7c] sm:$0xf]
        %v945 = vld [vmem:[%s1 + $0x80] sm:$0xf]
        %v946 = vld [vmem:[%s1 + $0x84] sm:$0xf]
        %v947 = vld [vmem:[%s1 + $0x88] sm:$0xf]
        %v948 = vld [vmem:[%s1 + $0x8c] sm:$0xf]
        %v949 = vld [vmem:[%s1 + $0x90] sm:$0xf]
        %v950 = vld [vmem:[%s1 + $0x94] sm:$0xf]
        %v951 = vld [vmem:[%s1 + $0x98] sm:$0xf]
        %v952 = vld [vmem:[%s1 + $0x9c] sm:$0xf]
        %v953 = vld [vmem:[%s1 + $0xa0] sm:$0xf]
        %v954 = vld [vmem:[%s1 + $0xa4] sm:$0xf]
        %v955 = vld [vmem:[%s1 + $0xa8] sm:$0xf]
        %v956 = vld [vmem:[%s1 + $0xac] sm:$0xf]
        %v957 = vld [vmem:[%s1 + $0xb0] sm:$0xf]
        %v958 = vld [vmem:[%s1 + $0xb4] sm:$0xf]
        %v959 = vld [vmem:[%s1 + $0xb8] sm:$0xf]
        %v960 = vld [vmem:[%s1 + $0xbc] sm:$0xf]
        %v961 = vld [vmem:[#allocation2 + $0x180] sm:$0xff]
        %v962 = vld [vmem:[#allocation2 + $0x188] sm:$0xf]
        %v963 = vld [vmem:[#allocation2 + $0x18c] sm:$0xff]
        %v964 = vld [vmem:[#allocation2 + $0x194] sm:$0xf]
        %s965 = scalar_lea.vmem %s1, 192
        %v966 = vld [vmem:[%s965] sm:$0xf]
        %v967 = vld [vmem:[%s965 + $0x4] sm:$0xf]
        %v968 = vld [vmem:[%s965 + $0x8] sm:$0xf]
        %v969 = vld [vmem:[%s965 + $0xc] sm:$0xf]
        %v970 = vld [vmem:[%s965 + $0x10] sm:$0xf]
        %v971 = vld [vmem:[%s965 + $0x14] sm:$0xf]
        %v972 = vld [vmem:[%s965 + $0x18] sm:$0xf]
        %v973 = vld [vmem:[%s965 + $0x1c] sm:$0xf]
        %v974 = vld [vmem:[%s965 + $0x20] sm:$0xf]
        %v975 = vld [vmem:[%s965 + $0x24] sm:$0xf]
        %v976 = vld [vmem:[%s965 + $0x28] sm:$0xf]
        %v977 = vld [vmem:[%s965 + $0x2c] sm:$0xf]
        %v978 = vld [vmem:[%s965 + $0x30] sm:$0xf]
        %v979 = vld [vmem:[%s965 + $0x34] sm:$0xf]
        %v980 = vld [vmem:[%s965 + $0x38] sm:$0xf]
        %v981 = vld [vmem:[%s965 + $0x3c] sm:$0xf]
        %v982 = vld [vmem:[%s965 + $0x40] sm:$0xf]
        %v983 = vld [vmem:[%s965 + $0x44] sm:$0xf]
        %v984 = vld [vmem:[%s965 + $0x48] sm:$0xf]
        %v985 = vld [vmem:[%s965 + $0x4c] sm:$0xf]
        %v986 = vld [vmem:[%s965 + $0x50] sm:$0xf]
        %v987 = vld [vmem:[%s965 + $0x54] sm:$0xf]
        %v988 = vld [vmem:[%s965 + $0x58] sm:$0xf]
        %v989 = vld [vmem:[%s965 + $0x5c] sm:$0xf]
        %v990 = vld [vmem:[%s965 + $0x60] sm:$0xf]
        %v991 = vld [vmem:[%s965 + $0x64] sm:$0xf]
        %v992 = vld [vmem:[%s965 + $0x68] sm:$0xf]
        %v993 = vld [vmem:[%s965 + $0x6c] sm:$0xf]
        %v994 = vld [vmem:[%s965 + $0x70] sm:$0xf]
        %v995 = vld [vmem:[%s965 + $0x74] sm:$0xf]
        %v996 = vld [vmem:[%s965 + $0x78] sm:$0xf]
        %v997 = vld [vmem:[%s965 + $0x7c] sm:$0xf]
        %v998 = vld [vmem:[%s965 + $0x80] sm:$0xf]
        %v999 = vld [vmem:[%s965 + $0x84] sm:$0xf]
        %v1000 = vld [vmem:[%s965 + $0x88] sm:$0xf]
        %v1001 = vld [vmem:[%s965 + $0x8c] sm:$0xf]
        %v1002 = vld [vmem:[%s965 + $0x90] sm:$0xf]
        %v1003 = vld [vmem:[%s965 + $0x94] sm:$0xf]
        %v1004 = vld [vmem:[%s965 + $0x98] sm:$0xf]
        %v1005 = vld [vmem:[%s965 + $0x9c] sm:$0xf]
        %v1006 = vld [vmem:[%s965 + $0xa0] sm:$0xf]
        %v1007 = vld [vmem:[%s965 + $0xa4] sm:$0xf]
        %v1008 = vld [vmem:[%s965 + $0xa8] sm:$0xf]
        %v1009 = vld [vmem:[%s965 + $0xac] sm:$0xf]
        %v1010 = vld [vmem:[%s965 + $0xb0] sm:$0xf]
        %v1011 = vld [vmem:[%s965 + $0xb4] sm:$0xf]
        %v1012 = vld [vmem:[%s965 + $0xb8] sm:$0xf]
        %v1013 = vld [vmem:[%s965 + $0xbc] sm:$0xf]
        %v1078 = vunpack.c.l.b16 %v853
        %v1079 = vunpack.c.h.b16 %v853
        %v1080 = vunpack.c.l.b16 %v854
        %v1081 = vunpack.c.l.b16 %v855
        %v1082 = vunpack.c.h.b16 %v855
        %v1083 = vunpack.c.l.b16 %v856
        %v1084 = vunpack.c.l.b16 %v857
        %v1085 = vunpack.c.h.b16 %v857
        %v1086 = vunpack.c.l.b16 %v858
        %v1087 = vunpack.c.l.b16 %v859
        %v1088 = vunpack.c.h.b16 %v859
        %v1089 = vunpack.c.l.b16 %v860
        %v1090 = vunpack.c.l.b16 %v861
        %v1091 = vunpack.c.h.b16 %v861
        %v1092 = vunpack.c.l.b16 %v862
        %v1093 = vunpack.c.l.b16 %v863
        %v1094 = vunpack.c.h.b16 %v863
        %v1095 = vunpack.c.l.b16 %v864
        %v1096 = vunpack.c.l.b16 %v865
        %v1097 = vunpack.c.h.b16 %v865
        %v1098 = vunpack.c.l.b16 %v866
        %v1099 = vunpack.c.l.b16 %v867
        %v1100 = vunpack.c.h.b16 %v867
        %v1101 = vunpack.c.l.b16 %v868
        %v1102 = vunpack.c.l.b16 %v869
        %v1103 = vunpack.c.h.b16 %v869
        %v1104 = vunpack.c.l.b16 %v870
        %v1105 = vunpack.c.l.b16 %v871
        %v1106 = vunpack.c.h.b16 %v871
        %v1107 = vunpack.c.l.b16 %v872
        %v1108 = vunpack.c.l.b16 %v873
        %v1109 = vunpack.c.h.b16 %v873
        %v1110 = vunpack.c.l.b16 %v874
        %v1111 = vunpack.c.l.b16 %v875
        %v1112 = vunpack.c.h.b16 %v875
        %v1113 = vunpack.c.l.b16 %v876
        %v1114 = vunpack.c.l.b16 %v877
        %v1115 = vunpack.c.h.b16 %v877
        %v1116 = vunpack.c.l.b16 %v878
        %v1117 = vunpack.c.l.b16 %v879
        %v1118 = vunpack.c.h.b16 %v879
        %v1119 = vunpack.c.l.b16 %v880
        %v1120 = vunpack.c.l.b16 %v881
        %v1121 = vunpack.c.h.b16 %v881
        %v1122 = vunpack.c.l.b16 %v882
        %v1123 = vunpack.c.l.b16 %v883
        %v1124 = vunpack.c.h.b16 %v883
        %v1125 = vunpack.c.l.b16 %v884
        %v1126 = vunpack.c.l.b16 %v885
        %v1127 = vunpack.c.h.b16 %v885
        %v1128 = vunpack.c.l.b16 %v886
        %v1129 = vunpack.c.l.b16 %v887
        %v1130 = vunpack.c.h.b16 %v887
        %v1131 = vunpack.c.l.b16 %v888
        %v1132 = vunpack.c.l.b16 %v889
        %v1133 = vunpack.c.h.b16 %v889
        %v1134 = vunpack.c.l.b16 %v890
        %v1135 = vunpack.c.l.b16 %v891
        %v1136 = vunpack.c.h.b16 %v891
        %v1137 = vunpack.c.l.b16 %v892
        %v1138 = vunpack.c.l.b16 %v893
        %v1139 = vunpack.c.h.b16 %v893
        %v1140 = vunpack.c.l.b16 %v894
        %v1141 = vunpack.c.l.b16 %v895
        %v1142 = vunpack.c.h.b16 %v895
        %v1143 = vunpack.c.l.b16 %v896
        %v1144 = vunpack.c.l.b16 %v897
        %v1145 = vunpack.c.h.b16 %v897
        %v1146 = vunpack.c.l.b16 %v898
        %v1147 = vunpack.c.l.b16 %v899
        %v1148 = vunpack.c.h.b16 %v899
        %v1149 = vunpack.c.l.b16 %v900
        %v1150 = vunpack.c.l.b16 %v901
        %v1151 = vunpack.c.h.b16 %v901
        %v1152 = vunpack.c.l.b16 %v902
        %v1153 = vunpack.c.l.b16 %v903
        %v1154 = vunpack.c.h.b16 %v903
        %v1155 = vunpack.c.l.b16 %v904
        %v1156 = vunpack.c.l.b16 %v905
        %v1157 = vunpack.c.h.b16 %v905
        %v1158 = vunpack.c.l.b16 %v906
        %v1159 = vunpack.c.l.b16 %v907
        %v1160 = vunpack.c.h.b16 %v907
        %v1161 = vunpack.c.l.b16 %v908
        %v1162 = vunpack.c.l.b16 %v909
        %v1163 = vunpack.c.h.b16 %v909
        %v1164 = vunpack.c.l.b16 %v910
        %v1165 = vunpack.c.l.b16 %v911
        %v1166 = vunpack.c.h.b16 %v911
        %v1167 = vunpack.c.l.b16 %v912
        %v1168 = vunpack.c.l.b16 %v961
        %v1169 = vunpack.c.h.b16 %v961
        %v1170 = vunpack.c.l.b16 %v962
        %v1171 = vunpack.c.l.b16 %v963
        %v1172 = vunpack.c.h.b16 %v963
        %v1173 = vunpack.c.l.b16 %v964
        %v1174 = vpack.c.b16 %v1081, %v1078
        %v1175 = vpack.c.b16 %v1082, %v1079
        %v1176 = vpack.c.b16 %v1083, %v1080
        %v1177 = vpack.c.b16 %v1087, %v1084
        %v1178 = vpack.c.b16 %v1088, %v1085
        %v1179 = vpack.c.b16 %v1089, %v1086
        %v1180 = vpack.c.b16 %v1093, %v1090
        %v1181 = vpack.c.b16 %v1094, %v1091
        %v1182 = vpack.c.b16 %v1095, %v1092
        %v1183 = vpack.c.b16 %v1099, %v1096
        %v1184 = vpack.c.b16 %v1100, %v1097
        %v1185 = vpack.c.b16 %v1101, %v1098
        %v1186 = vpack.c.b16 %v1105, %v1102
        %v1187 = vpack.c.b16 %v1106, %v1103
        %v1188 = vpack.c.b16 %v1107, %v1104
        %v1189 = vpack.c.b16 %v1111, %v1108
        %v1190 = vpack.c.b16 %v1112, %v1109
        %v1191 = vpack.c.b16 %v1113, %v1110
        %v1192 = vpack.c.b16 %v1117, %v1114
        %v1193 = vpack.c.b16 %v1118, %v1115
        %v1194 = vpack.c.b16 %v1119, %v1116
        %v1195 = vpack.c.b16 %v1123, %v1120
        %v1196 = vpack.c.b16 %v1124, %v1121
        %v1197 = vpack.c.b16 %v1125, %v1122
        %v1198 = vpack.c.b16 %v1129, %v1126
        %v1199 = vpack.c.b16 %v1130, %v1127
        %v1200 = vpack.c.b16 %v1131, %v1128
        %v1201 = vpack.c.b16 %v1135, %v1132
        %v1202 = vpack.c.b16 %v1136, %v1133
        %v1203 = vpack.c.b16 %v1137, %v1134
        %v1204 = vpack.c.b16 %v1141, %v1138
        %v1205 = vpack.c.b16 %v1142, %v1139
        %v1206 = vpack.c.b16 %v1143, %v1140
        %v1207 = vpack.c.b16 %v1147, %v1144
        %v1208 = vpack.c.b16 %v1148, %v1145
        %v1209 = vpack.c.b16 %v1149, %v1146
        %v1210 = vpack.c.b16 %v1153, %v1150
        %v1211 = vpack.c.b16 %v1154, %v1151
        %v1212 = vpack.c.b16 %v1155, %v1152
        %v1213 = vpack.c.b16 %v1159, %v1156
        %v1214 = vpack.c.b16 %v1160, %v1157
        %v1215 = vpack.c.b16 %v1161, %v1158
        %v1216 = vpack.c.b16 %v1165, %v1162
        %v1217 = vpack.c.b16 %v1166, %v1163
        %v1218 = vpack.c.b16 %v1167, %v1164
        %v1219 = vpack.c.b16 %v1171, %v1168
        %v1220 = vpack.c.b16 %v1172, %v1169
        %v1221 = vpack.c.b16 %v1173, %v1170
        %v1318 = vunpack.c.l.b16 %v966
        %v1319 = vunpack.c.l.b16 %v967
        %v1320 = vunpack.c.l.b16 %v968
        %v1321 = vunpack.c.l.b16 %v969
        %v1322 = vunpack.c.l.b16 %v970
        %v1323 = vunpack.c.l.b16 %v971
        %v1324 = vunpack.c.l.b16 %v972
        %v1325 = vunpack.c.l.b16 %v973
        %v1326 = vunpack.c.l.b16 %v974
        %v1327 = vunpack.c.l.b16 %v975
        %v1328 = vunpack.c.l.b16 %v976
        %v1329 = vunpack.c.l.b16 %v977
        %v1330 = vunpack.c.l.b16 %v978
        %v1331 = vunpack.c.l.b16 %v979
        %v1332 = vunpack.c.l.b16 %v980
        %v1333 = vunpack.c.l.b16 %v981
        %v1334 = vunpack.c.l.b16 %v982
        %v1335 = vunpack.c.l.b16 %v983
        %v1336 = vunpack.c.l.b16 %v984
        %v1337 = vunpack.c.l.b16 %v985
        %v1338 = vunpack.c.l.b16 %v986
        %v1339 = vunpack.c.l.b16 %v987
        %v1340 = vunpack.c.l.b16 %v988
        %v1341 = vunpack.c.l.b16 %v989
        %v1342 = vunpack.c.l.b16 %v990
        %v1343 = vunpack.c.l.b16 %v991
        %v1344 = vunpack.c.l.b16 %v992
        %v1345 = vunpack.c.l.b16 %v993
        %v1346 = vunpack.c.l.b16 %v994
        %v1347 = vunpack.c.l.b16 %v995
        %v1348 = vunpack.c.l.b16 %v996
        %v1349 = vunpack.c.l.b16 %v997
        %v1350 = vunpack.c.l.b16 %v998
        %v1351 = vunpack.c.l.b16 %v999
        %v1352 = vunpack.c.l.b16 %v1000
        %v1353 = vunpack.c.l.b16 %v1001
        %v1354 = vunpack.c.l.b16 %v1002
        %v1355 = vunpack.c.l.b16 %v1003
        %v1356 = vunpack.c.l.b16 %v1004
        %v1357 = vunpack.c.l.b16 %v1005
        %v1358 = vunpack.c.l.b16 %v1006
        %v1359 = vunpack.c.l.b16 %v1007
        %v1360 = vunpack.c.l.b16 %v1008
        %v1361 = vunpack.c.l.b16 %v1009
        %v1362 = vunpack.c.l.b16 %v1010
        %v1363 = vunpack.c.l.b16 %v1011
        %v1364 = vunpack.c.l.b16 %v1012
        %v1365 = vunpack.c.l.b16 %v1013
        %v1366 = vpack.c.b16 %v1319, %v1318
        %v1367 = vpack.c.b16 %v1321, %v1320
        %v1368 = vpack.c.b16 %v1323, %v1322
        %v1369 = vpack.c.b16 %v1325, %v1324
        %v1370 = vpack.c.b16 %v1327, %v1326
        %v1371 = vpack.c.b16 %v1329, %v1328
        %v1372 = vpack.c.b16 %v1331, %v1330
        %v1373 = vpack.c.b16 %v1333, %v1332
        %v1374 = vpack.c.b16 %v1335, %v1334
        %v1375 = vpack.c.b16 %v1337, %v1336
        %v1376 = vpack.c.b16 %v1339, %v1338
        %v1377 = vpack.c.b16 %v1341, %v1340
        %v1378 = vpack.c.b16 %v1343, %v1342
        %v1379 = vpack.c.b16 %v1345, %v1344
        %v1380 = vpack.c.b16 %v1347, %v1346
        %v1381 = vpack.c.b16 %v1349, %v1348
        %v1382 = vpack.c.b16 %v1351, %v1350
        %v1383 = vpack.c.b16 %v1353, %v1352
        %v1384 = vpack.c.b16 %v1355, %v1354
        %v1385 = vpack.c.b16 %v1357, %v1356
        %v1386 = vpack.c.b16 %v1359, %v1358
        %v1387 = vpack.c.b16 %v1361, %v1360
        %v1388 = vpack.c.b16 %v1363, %v1362
        %v1389 = vpack.c.b16 %v1365, %v1364
        %1414 = vmatprep.subr.bf16.mxu0 0
        %1415 = vmatpush1.bf16.msra.mxu0 %v1373
        %1416 = vmatprep.subr.bf16.mxu0 0
        %1417 = vmatpush1.bf16.msra.mxu0 %v1372
        %1418 = vmatprep.subr.bf16.mxu0 0
        %1419 = vmatpush1.bf16.msra.mxu0 %v1371
        %1420 = vmatprep.subr.bf16.mxu0 0
        %1421 = vmatpush1.bf16.msra.mxu0 %v1370
        %1422 = vmatprep.subr.bf16.mxu0 0
        %1423 = vmatpush1.bf16.msra.mxu0 %v1369
        %1424 = vmatprep.subr.bf16.mxu0 0
        %1425 = vmatpush1.bf16.msra.mxu0 %v1368
        %1426 = vmatprep.subr.bf16.mxu0 0
        %1427 = vmatpush1.bf16.msra.mxu0 %v1367
        %1428 = vmatprep.subr.bf16.mxu0 0
        %1429 = vmatpush1.bf16.msra.mxu0 %v1366
        %1430 = vmatprep.subr.bf16.mxu0 0
        %1431 = vmatpush2.bf16.msra.mxu0 %v1381
        %1432 = vmatprep.subr.bf16.mxu0 0
        %1433 = vmatpush2.bf16.msra.mxu0 %v1380
        %1434 = vmatprep.subr.bf16.mxu0 0
        %1435 = vmatpush2.bf16.msra.mxu0 %v1379
        %1436 = vmatprep.subr.bf16.mxu0 0
        %1437 = vmatpush2.bf16.msra.mxu0 %v1378
        %1438 = vmatprep.subr.bf16.mxu0 0
        %1439 = vmatpush2.bf16.msra.mxu0 %v1377
        %1440 = vmatprep.subr.bf16.mxu0 0
        %1441 = vmatpush2.bf16.msra.mxu0 %v1376
        %1442 = vmatprep.subr.bf16.mxu0 0
        %1443 = vmatpush2.bf16.msra.mxu0 %v1375
        %1444 = vmatprep.subr.bf16.mxu0 0
        %1445 = vmatpush2.bf16.msra.mxu0 %v1374
        %1446 = vmatprep.mubr.bf16.mxu0 %v1175
        %1447 = vmatmul.mubr.bf16.gmra.mxu0 %v1174
        %v1448 = vpop.f32.mrf.mxu0
        %v1449 = vadd.f32 0.0, %v1448
        %v1450 = vpop.f32.mrf.mxu0
        %v1451 = vpop.f32.mrf.mxu0
        %v1452 = vadd.f32 0.0, %v1451
        %v1453 = vpop.f32.mrf.mxu0
        %1454 = vmatprep.mubr.bf16.mxu0 %v1178
        %1455 = vmatmul.mubr.bf16.gmra.mxu0 %v1177
        %v1456 = vpop.f32.mrf.mxu0
        %v1457 = vadd.f32 0.0, %v1456
        %v1458 = vpop.f32.mrf.mxu0
        %v1459 = vpop.f32.mrf.mxu0
        %v1460 = vadd.f32 0.0, %v1459
        %v1461 = vpop.f32.mrf.mxu0
        %1462 = vmatprep.mubr.bf16.mxu0 %v1181
        %1463 = vmatmul.mubr.bf16.gmra.mxu0 %v1180
        %v1464 = vpop.f32.mrf.mxu0
        %v1465 = vadd.f32 0.0, %v1464
        %v1466 = vpop.f32.mrf.mxu0
        %v1467 = vpop.f32.mrf.mxu0
        %v1468 = vadd.f32 0.0, %v1467
        %v1469 = vpop.f32.mrf.mxu0
        %1470 = vmatprep.mubr.bf16.mxu0 %v1184
        %1471 = vmatmul.mubr.bf16.gmra.mxu0 %v1183
        %v1472 = vpop.f32.mrf.mxu0
        %v1473 = vadd.f32 0.0, %v1472
        %v1474 = vpop.f32.mrf.mxu0
        %v1475 = vpop.f32.mrf.mxu0
        %v1476 = vadd.f32 0.0, %v1475
        %v1477 = vpop.f32.mrf.mxu0
        %1478 = vmatprep.mubr.bf16.mxu0 %v1187
        %1479 = vmatmul.mubr.bf16.gmra.mxu0 %v1186
        %v1480 = vpop.f32.mrf.mxu0
        %v1481 = vadd.f32 0.0, %v1480
        %v1482 = vpop.f32.mrf.mxu0
        %v1483 = vpop.f32.mrf.mxu0
        %v1484 = vadd.f32 0.0, %v1483
        %v1485 = vpop.f32.mrf.mxu0
        %1486 = vmatprep.mubr.bf16.mxu0 %v1190
        %1487 = vmatmul.mubr.bf16.gmra.mxu0 %v1189
        %v1488 = vpop.f32.mrf.mxu0
        %v1489 = vadd.f32 0.0, %v1488
        %v1490 = vpop.f32.mrf.mxu0
        %v1491 = vpop.f32.mrf.mxu0
        %v1492 = vadd.f32 0.0, %v1491
        %v1493 = vpop.f32.mrf.mxu0
        %1494 = vmatprep.mubr.bf16.mxu0 %v1193
        %1495 = vmatmul.mubr.bf16.gmra.mxu0 %v1192
        %v1496 = vpop.f32.mrf.mxu0
        %v1497 = vadd.f32 0.0, %v1496
        %v1498 = vpop.f32.mrf.mxu0
        %v1499 = vpop.f32.mrf.mxu0
        %v1500 = vadd.f32 0.0, %v1499
        %v1501 = vpop.f32.mrf.mxu0
        %1502 = vmatprep.mubr.bf16.mxu0 %v1196
        %1503 = vmatmul.mubr.bf16.gmra.mxu0 %v1195
        %v1504 = vpop.f32.mrf.mxu0
        %v1505 = vadd.f32 0.0, %v1504
        %v1506 = vpop.f32.mrf.mxu0
        %v1507 = vpop.f32.mrf.mxu0
        %v1508 = vadd.f32 0.0, %v1507
        %v1509 = vpop.f32.mrf.mxu0
        %1510 = vmatprep.mubr.bf16.mxu0 %v1199
        %1511 = vmatmul.mubr.bf16.gmra.mxu0 %v1198
        %v1512 = vpop.f32.mrf.mxu0
        %v1513 = vadd.f32 0.0, %v1512
        %v1514 = vpop.f32.mrf.mxu0
        %v1515 = vpop.f32.mrf.mxu0
        %v1516 = vadd.f32 0.0, %v1515
        %v1517 = vpop.f32.mrf.mxu0
        %1518 = vmatprep.mubr.bf16.mxu0 %v1202
        %1519 = vmatmul.mubr.bf16.gmra.mxu0 %v1201
        %v1520 = vpop.f32.mrf.mxu0
        %v1521 = vadd.f32 0.0, %v1520
        %v1522 = vpop.f32.mrf.mxu0
        %v1523 = vpop.f32.mrf.mxu0
        %v1524 = vadd.f32 0.0, %v1523
        %v1525 = vpop.f32.mrf.mxu0
        %1526 = vmatprep.mubr.bf16.mxu0 %v1205
        %1527 = vmatmul.mubr.bf16.gmra.mxu0 %v1204
        %v1528 = vpop.f32.mrf.mxu0
        %v1529 = vadd.f32 0.0, %v1528
        %v1530 = vpop.f32.mrf.mxu0
        %v1531 = vpop.f32.mrf.mxu0
        %v1532 = vadd.f32 0.0, %v1531
        %v1533 = vpop.f32.mrf.mxu0
        %1534 = vmatprep.mubr.bf16.mxu0 %v1208
        %1535 = vmatmul.mubr.bf16.gmra.mxu0 %v1207
        %v1536 = vpop.f32.mrf.mxu0
        %v1537 = vadd.f32 0.0, %v1536
        %v1538 = vpop.f32.mrf.mxu0
        %v1539 = vpop.f32.mrf.mxu0
        %v1540 = vadd.f32 0.0, %v1539
        %v1541 = vpop.f32.mrf.mxu0
        %1542 = vmatprep.mubr.bf16.mxu0 %v1211
        %1543 = vmatmul.mubr.bf16.gmra.mxu0 %v1210
        %v1544 = vpop.f32.mrf.mxu0
        %v1545 = vadd.f32 0.0, %v1544
        %v1546 = vpop.f32.mrf.mxu0
        %v1547 = vpop.f32.mrf.mxu0
        %v1548 = vadd.f32 0.0, %v1547
        %v1549 = vpop.f32.mrf.mxu0
        %1550 = vmatprep.mubr.bf16.mxu0 %v1214
        %1551 = vmatmul.mubr.bf16.gmra.mxu0 %v1213
        %v1552 = vpop.f32.mrf.mxu0
        %v1553 = vadd.f32 0.0, %v1552
        %v1554 = vpop.f32.mrf.mxu0
        %v1555 = vpop.f32.mrf.mxu0
        %v1556 = vadd.f32 0.0, %v1555
        %v1557 = vpop.f32.mrf.mxu0
        %1558 = vmatprep.mubr.bf16.mxu0 %v1217
        %1559 = vmatmul.mubr.bf16.gmra.mxu0 %v1216
        %v1560 = vpop.f32.mrf.mxu0
        %v1561 = vadd.f32 0.0, %v1560
        %v1562 = vpop.f32.mrf.mxu0
        %v1563 = vpop.f32.mrf.mxu0
        %v1564 = vadd.f32 0.0, %v1563
        %v1565 = vpop.f32.mrf.mxu0
        %1566 = vmatprep.mubr.bf16.mxu0 %v1220
        %1567 = vmatmul.mubr.bf16.gmra.mxu0 %v1219
        %v1568 = vpop.f32.mrf.mxu0
        %v1569 = vadd.f32 0.0, %v1568
        %v1570 = vpop.f32.mrf.mxu0
        %v1571 = vpop.f32.mrf.mxu0
        %v1572 = vadd.f32 0.0, %v1571
        %v1573 = vpop.f32.mrf.mxu0
        %1574 = vdwg.mxu0
        %1575 = vmatprep.subr.bf16.mxu0 0
        %1576 = vmatpush1.bf16.msra.mxu0 %v1389
        %1577 = vmatprep.subr.bf16.mxu0 0
        %1578 = vmatpush1.bf16.msra.mxu0 %v1388
        %1579 = vmatprep.subr.bf16.mxu0 0
        %1580 = vmatpush1.bf16.msra.mxu0 %v1387
        %1581 = vmatprep.subr.bf16.mxu0 0
        %1582 = vmatpush1.bf16.msra.mxu0 %v1386
        %1583 = vmatprep.subr.bf16.mxu0 0
        %1584 = vmatpush1.bf16.msra.mxu0 %v1385
        %1585 = vmatprep.subr.bf16.mxu0 0
        %1586 = vmatpush1.bf16.msra.mxu0 %v1384
        %1587 = vmatprep.subr.bf16.mxu0 0
        %1588 = vmatpush1.bf16.msra.mxu0 %v1383
        %1589 = vmatprep.subr.bf16.mxu0 0
        %1590 = vmatpush1.bf16.msra.mxu0 %v1382
        %1591 = vmatprep.subr.bf16.mxu0 0
        %1592 = vmatpush2.bf16.msra.mxu0 0
        %1593 = vmatprep.subr.bf16.mxu0 0
        %1594 = vmatpush2.bf16.msra.mxu0 0
        %1595 = vmatprep.subr.bf16.mxu0 0
        %1596 = vmatpush2.bf16.msra.mxu0 0
        %1597 = vmatprep.subr.bf16.mxu0 0
        %1598 = vmatpush2.bf16.msra.mxu0 0
        %1599 = vmatprep.subr.bf16.mxu0 0
        %1600 = vmatpush2.bf16.msra.mxu0 0
        %1601 = vmatprep.subr.bf16.mxu0 0
        %1602 = vmatpush2.bf16.msra.mxu0 0
        %1603 = vmatprep.subr.bf16.mxu0 0
        %1604 = vmatpush2.bf16.msra.mxu0 0
        %1605 = vmatprep.subr.bf16.mxu0 0
        %1606 = vmatpush2.bf16.msra.mxu0 0
        %1607 = vmatprep.mubr.bf16.mxu0 0
        %1608 = vmatmul.mubr.bf16.gmra.mxu0 %v1176
        %v1609 = vpop.f32.mrf.mxu0
        %v1610 = vadd.f32 %v1449, %v1609
        %v1611 = vpop.f32.mrf.mxu0
        %v1612 = vpop.f32.mrf.mxu0
        %v1613 = vadd.f32 %v1452, %v1612
        %v1614 = vpop.f32.mrf.mxu0
        %1615 = vmatprep.mubr.bf16.mxu0 0
        %1616 = vmatmul.mubr.bf16.gmra.mxu0 %v1179
        %v1617 = vpop.f32.mrf.mxu0
        %v1618 = vadd.f32 %v1457, %v1617
        %v1619 = vpop.f32.mrf.mxu0
        %v1620 = vpop.f32.mrf.mxu0
        %v1621 = vadd.f32 %v1460, %v1620
        %v1622 = vpop.f32.mrf.mxu0
        %1623 = vmatprep.mubr.bf16.mxu0 0
        %1624 = vmatmul.mubr.bf16.gmra.mxu0 %v1182
        %v1625 = vpop.f32.mrf.mxu0
        %v1626 = vadd.f32 %v1465, %v1625
        %v1627 = vpop.f32.mrf.mxu0
        %v1628 = vpop.f32.mrf.mxu0
        %v1629 = vadd.f32 %v1468, %v1628
        %v1630 = vpop.f32.mrf.mxu0
        %1631 = vmatprep.mubr.bf16.mxu0 0
        %1632 = vmatmul.mubr.bf16.gmra.mxu0 %v1185
        %v1633 = vpop.f32.mrf.mxu0
        %v1634 = vadd.f32 %v1473, %v1633
        %v1635 = vpop.f32.mrf.mxu0
        %v1636 = vpop.f32.mrf.mxu0
        %v1637 = vadd.f32 %v1476, %v1636
        %v1638 = vpop.f32.mrf.mxu0
        %1639 = vmatprep.mubr.bf16.mxu0 0
        %1640 = vmatmul.mubr.bf16.gmra.mxu0 %v1188
        %v1641 = vpop.f32.mrf.mxu0
        %v1642 = vadd.f32 %v1481, %v1641
        %v1643 = vpop.f32.mrf.mxu0
        %v1644 = vpop.f32.mrf.mxu0
        %v1645 = vadd.f32 %v1484, %v1644
        %v1646 = vpop.f32.mrf.mxu0
        %1647 = vmatprep.mubr.bf16.mxu0 0
        %1648 = vmatmul.mubr.bf16.gmra.mxu0 %v1191
        %v1649 = vpop.f32.mrf.mxu0
        %v1650 = vadd.f32 %v1489, %v1649
        %v1651 = vpop.f32.mrf.mxu0
        %v1652 = vpop.f32.mrf.mxu0
        %v1653 = vadd.f32 %v1492, %v1652
        %v1654 = vpop.f32.mrf.mxu0
        %1655 = vmatprep.mubr.bf16.mxu0 0
        %1656 = vmatmul.mubr.bf16.gmra.mxu0 %v1194
        %v1657 = vpop.f32.mrf.mxu0
        %v1658 = vadd.f32 %v1497, %v1657
        %v1659 = vpop.f32.mrf.mxu0
        %v1660 = vpop.f32.mrf.mxu0
        %v1661 = vadd.f32 %v1500, %v1660
        %v1662 = vpop.f32.mrf.mxu0
        %1663 = vmatprep.mubr.bf16.mxu0 0
        %1664 = vmatmul.mubr.bf16.gmra.mxu0 %v1197
        %v1665 = vpop.f32.mrf.mxu0
        %v1666 = vadd.f32 %v1505, %v1665
        %v1667 = vpop.f32.mrf.mxu0
        %v1668 = vpop.f32.mrf.mxu0
        %v1669 = vadd.f32 %v1508, %v1668
        %v1670 = vpop.f32.mrf.mxu0
        %1671 = vmatprep.mubr.bf16.mxu0 0
        %1672 = vmatmul.mubr.bf16.gmra.mxu0 %v1200
        %v1673 = vpop.f32.mrf.mxu0
        %v1674 = vadd.f32 %v1513, %v1673
        %v1675 = vpop.f32.mrf.mxu0
        %v1676 = vpop.f32.mrf.mxu0
        %v1677 = vadd.f32 %v1516, %v1676
        %v1678 = vpop.f32.mrf.mxu0
        %1679 = vmatprep.mubr.bf16.mxu0 0
        %1680 = vmatmul.mubr.bf16.gmra.mxu0 %v1203
        %v1681 = vpop.f32.mrf.mxu0
        %v1682 = vadd.f32 %v1521, %v1681
        %v1683 = vpop.f32.mrf.mxu0
        %v1684 = vpop.f32.mrf.mxu0
        %v1685 = vadd.f32 %v1524, %v1684
        %v1686 = vpop.f32.mrf.mxu0
        %1687 = vmatprep.mubr.bf16.mxu0 0
        %1688 = vmatmul.mubr.bf16.gmra.mxu0 %v1206
        %v1689 = vpop.f32.mrf.mxu0
        %v1690 = vadd.f32 %v1529, %v1689
        %v1691 = vpop.f32.mrf.mxu0
        %v1692 = vpop.f32.mrf.mxu0
        %v1693 = vadd.f32 %v1532, %v1692
        %v1694 = vpop.f32.mrf.mxu0
        %1695 = vmatprep.mubr.bf16.mxu0 0
        %1696 = vmatmul.mubr.bf16.gmra.mxu0 %v1209
        %v1697 = vpop.f32.mrf.mxu0
        %v1698 = vadd.f32 %v1537, %v1697
        %v1699 = vpop.f32.mrf.mxu0
        %v1700 = vpop.f32.mrf.mxu0
        %v1701 = vadd.f32 %v1540, %v1700
        %v1702 = vpop.f32.mrf.mxu0
        %1703 = vmatprep.mubr.bf16.mxu0 0
        %1704 = vmatmul.mubr.bf16.gmra.mxu0 %v1212
        %v1705 = vpop.f32.mrf.mxu0
        %v1706 = vadd.f32 %v1545, %v1705
        %v1707 = vpop.f32.mrf.mxu0
        %v1708 = vpop.f32.mrf.mxu0
        %v1709 = vadd.f32 %v1548, %v1708
        %v1710 = vpop.f32.mrf.mxu0
        %1711 = vmatprep.mubr.bf16.mxu0 0
        %1712 = vmatmul.mubr.bf16.gmra.mxu0 %v1215
        %v1713 = vpop.f32.mrf.mxu0
        %v1714 = vadd.f32 %v1553, %v1713
        %v1715 = vpop.f32.mrf.mxu0
        %v1716 = vpop.f32.mrf.mxu0
        %v1717 = vadd.f32 %v1556, %v1716
        %v1718 = vpop.f32.mrf.mxu0
        %1719 = vmatprep.mubr.bf16.mxu0 0
        %1720 = vmatmul.mubr.bf16.gmra.mxu0 %v1218
        %v1721 = vpop.f32.mrf.mxu0
        %v1722 = vadd.f32 %v1561, %v1721
        %v1723 = vpop.f32.mrf.mxu0
        %v1724 = vpop.f32.mrf.mxu0
        %v1725 = vadd.f32 %v1564, %v1724
        %v1726 = vpop.f32.mrf.mxu0
        %1727 = vmatprep.mubr.bf16.mxu0 0
        %1728 = vmatmul.mubr.bf16.gmra.mxu0 %v1221
        %v1729 = vpop.f32.mrf.mxu0
        %v1730 = vadd.f32 %v1569, %v1729
        %v1731 = vpop.f32.mrf.mxu0
        %v1732 = vpop.f32.mrf.mxu0
        %v1733 = vadd.f32 %v1572, %v1732
        %v1734 = vpop.f32.mrf.mxu0
        %1735 = vdwg.mxu0
        %v1740 = vunpack.c.l.b16 %v849
        %v1741 = vunpack.c.h.b16 %v849
        %v1742 = vunpack.c.l.b16 %v850
        %v1743 = vunpack.c.l.b16 %v851
        %v1744 = vunpack.c.h.b16 %v851
        %v1745 = vunpack.c.l.b16 %v852
        %v1746 = vpack.c.b16 %v1743, %v1740
        %v1747 = vpack.c.b16 %v1744, %v1741
        %v1748 = vpack.c.b16 %v1745, %v1742
        %v1800 = vunpack.c.l.b16 %v913
        %v1801 = vunpack.c.l.b16 %v914
        %v1802 = vunpack.c.l.b16 %v915
        %v1803 = vunpack.c.l.b16 %v916
        %v1804 = vunpack.c.l.b16 %v917
        %v1805 = vunpack.c.l.b16 %v918
        %v1806 = vunpack.c.l.b16 %v919
        %v1807 = vunpack.c.l.b16 %v920
        %v1808 = vunpack.c.l.b16 %v921
        %v1809 = vunpack.c.l.b16 %v922
        %v1810 = vunpack.c.l.b16 %v923
        %v1811 = vunpack.c.l.b16 %v924
        %v1812 = vunpack.c.l.b16 %v925
        %v1813 = vunpack.c.l.b16 %v926
        %v1814 = vunpack.c.l.b16 %v927
        %v1815 = vunpack.c.l.b16 %v928
        %v1816 = vunpack.c.l.b16 %v929
        %v1817 = vunpack.c.l.b16 %v930
        %v1818 = vunpack.c.l.b16 %v931
        %v1819 = vunpack.c.l.b16 %v932
        %v1820 = vunpack.c.l.b16 %v933
        %v1821 = vunpack.c.l.b16 %v934
        %v1822 = vunpack.c.l.b16 %v935
        %v1823 = vunpack.c.l.b16 %v936
        %v1824 = vunpack.c.l.b16 %v937
        %v1825 = vunpack.c.l.b16 %v938
        %v1826 = vunpack.c.l.b16 %v939
        %v1827 = vunpack.c.l.b16 %v940
        %v1828 = vunpack.c.l.b16 %v941
        %v1829 = vunpack.c.l.b16 %v942
        %v1830 = vunpack.c.l.b16 %v943
        %v1831 = vunpack.c.l.b16 %v944
        %v1832 = vunpack.c.l.b16 %v945
        %v1833 = vunpack.c.l.b16 %v946
        %v1834 = vunpack.c.l.b16 %v947
        %v1835 = vunpack.c.l.b16 %v948
        %v1836 = vunpack.c.l.b16 %v949
        %v1837 = vunpack.c.l.b16 %v950
        %v1838 = vunpack.c.l.b16 %v951
        %v1839 = vunpack.c.l.b16 %v952
        %v1840 = vunpack.c.l.b16 %v953
        %v1841 = vunpack.c.l.b16 %v954
        %v1842 = vunpack.c.l.b16 %v955
        %v1843 = vunpack.c.l.b16 %v956
        %v1844 = vunpack.c.l.b16 %v957
        %v1845 = vunpack.c.l.b16 %v958
        %v1846 = vunpack.c.l.b16 %v959
        %v1847 = vunpack.c.l.b16 %v960
        %v1848 = vpack.c.b16 %v1801, %v1800
        %v1849 = vpack.c.b16 %v1803, %v1802
        %v1850 = vpack.c.b16 %v1805, %v1804
        %v1851 = vpack.c.b16 %v1807, %v1806
        %v1852 = vpack.c.b16 %v1809, %v1808
        %v1853 = vpack.c.b16 %v1811, %v1810
        %v1854 = vpack.c.b16 %v1813, %v1812
        %v1855 = vpack.c.b16 %v1815, %v1814
        %v1856 = vpack.c.b16 %v1817, %v1816
        %v1857 = vpack.c.b16 %v1819, %v1818
        %v1858 = vpack.c.b16 %v1821, %v1820
        %v1859 = vpack.c.b16 %v1823, %v1822
        %v1860 = vpack.c.b16 %v1825, %v1824
        %v1861 = vpack.c.b16 %v1827, %v1826
        %v1862 = vpack.c.b16 %v1829, %v1828
        %v1863 = vpack.c.b16 %v1831, %v1830
        %v1864 = vpack.c.b16 %v1833, %v1832
        %v1865 = vpack.c.b16 %v1835, %v1834
        %v1866 = vpack.c.b16 %v1837, %v1836
        %v1867 = vpack.c.b16 %v1839, %v1838
        %v1868 = vpack.c.b16 %v1841, %v1840
        %v1869 = vpack.c.b16 %v1843, %v1842
        %v1870 = vpack.c.b16 %v1845, %v1844
        %v1871 = vpack.c.b16 %v1847, %v1846
        %1896 = vmatprep.subr.bf16.mxu0 0
        %1897 = vmatpush1.bf16.msra.mxu0 %v1855
        %1898 = vmatprep.subr.bf16.mxu0 0
        %1899 = vmatpush1.bf16.msra.mxu0 %v1854
        %1900 = vmatprep.subr.bf16.mxu0 0
        %1901 = vmatpush1.bf16.msra.mxu0 %v1853
        %1902 = vmatprep.subr.bf16.mxu0 0
        %1903 = vmatpush1.bf16.msra.mxu0 %v1852
        %1904 = vmatprep.subr.bf16.mxu0 0
        %1905 = vmatpush1.bf16.msra.mxu0 %v1851
        %1906 = vmatprep.subr.bf16.mxu0 0
        %1907 = vmatpush1.bf16.msra.mxu0 %v1850
        %1908 = vmatprep.subr.bf16.mxu0 0
        %1909 = vmatpush1.bf16.msra.mxu0 %v1849
        %1910 = vmatprep.subr.bf16.mxu0 0
        %1911 = vmatpush1.bf16.msra.mxu0 %v1848
        %1912 = vmatprep.subr.bf16.mxu0 0
        %1913 = vmatpush2.bf16.msra.mxu0 %v1863
        %1914 = vmatprep.subr.bf16.mxu0 0
        %1915 = vmatpush2.bf16.msra.mxu0 %v1862
        %1916 = vmatprep.subr.bf16.mxu0 0
        %1917 = vmatpush2.bf16.msra.mxu0 %v1861
        %1918 = vmatprep.subr.bf16.mxu0 0
        %1919 = vmatpush2.bf16.msra.mxu0 %v1860
        %1920 = vmatprep.subr.bf16.mxu0 0
        %1921 = vmatpush2.bf16.msra.mxu0 %v1859
        %1922 = vmatprep.subr.bf16.mxu0 0
        %1923 = vmatpush2.bf16.msra.mxu0 %v1858
        %1924 = vmatprep.subr.bf16.mxu0 0
        %1925 = vmatpush2.bf16.msra.mxu0 %v1857
        %1926 = vmatprep.subr.bf16.mxu0 0
        %1927 = vmatpush2.bf16.msra.mxu0 %v1856
        %1928 = vmatprep.mubr.bf16.mxu0 %v1747
        %1929 = vmatmul.mubr.bf16.gmra.mxu0 %v1746
        %v1930 = vpop.f32.mrf.mxu0
        %v1931 = vadd.f32 %v1610, %v1930
        %v1932 = vpop.f32.mrf.mxu0
        %v1933 = vpop.f32.mrf.mxu0
        %v1934 = vadd.f32 %v1613, %v1933
        %v1935 = vpop.f32.mrf.mxu0
        %1936 = vmatprep.mubr.bf16.mxu0 %v1175
        %1937 = vmatmul.mubr.bf16.gmra.mxu0 %v1174
        %v1938 = vpop.f32.mrf.mxu0
        %v1939 = vadd.f32 %v1618, %v1938
        %v1940 = vpop.f32.mrf.mxu0
        %v1941 = vpop.f32.mrf.mxu0
        %v1942 = vadd.f32 %v1621, %v1941
        %v1943 = vpop.f32.mrf.mxu0
        %1944 = vmatprep.mubr.bf16.mxu0 %v1178
        %1945 = vmatmul.mubr.bf16.gmra.mxu0 %v1177
        %v1946 = vpop.f32.mrf.mxu0
        %v1947 = vadd.f32 %v1626, %v1946
        %v1948 = vpop.f32.mrf.mxu0
        %v1949 = vpop.f32.mrf.mxu0
        %v1950 = vadd.f32 %v1629, %v1949
        %v1951 = vpop.f32.mrf.mxu0
        %1952 = vmatprep.mubr.bf16.mxu0 %v1181
        %1953 = vmatmul.mubr.bf16.gmra.mxu0 %v1180
        %v1954 = vpop.f32.mrf.mxu0
        %v1955 = vadd.f32 %v1634, %v1954
        %v1956 = vpop.f32.mrf.mxu0
        %v1957 = vpop.f32.mrf.mxu0
        %v1958 = vadd.f32 %v1637, %v1957
        %v1959 = vpop.f32.mrf.mxu0
        %1960 = vmatprep.mubr.bf16.mxu0 %v1184
        %1961 = vmatmul.mubr.bf16.gmra.mxu0 %v1183
        %v1962 = vpop.f32.mrf.mxu0
        %v1963 = vadd.f32 %v1642, %v1962
        %v1964 = vpop.f32.mrf.mxu0
        %v1965 = vpop.f32.mrf.mxu0
        %v1966 = vadd.f32 %v1645, %v1965
        %v1967 = vpop.f32.mrf.mxu0
        %1968 = vmatprep.mubr.bf16.mxu0 %v1187
        %1969 = vmatmul.mubr.bf16.gmra.mxu0 %v1186
        %v1970 = vpop.f32.mrf.mxu0
        %v1971 = vadd.f32 %v1650, %v1970
        %v1972 = vpop.f32.mrf.mxu0
        %v1973 = vpop.f32.mrf.mxu0
        %v1974 = vadd.f32 %v1653, %v1973
        %v1975 = vpop.f32.mrf.mxu0
        %1976 = vmatprep.mubr.bf16.mxu0 %v1190
        %1977 = vmatmul.mubr.bf16.gmra.mxu0 %v1189
        %v1978 = vpop.f32.mrf.mxu0
        %v1979 = vadd.f32 %v1658, %v1978
        %v1980 = vpop.f32.mrf.mxu0
        %v1981 = vpop.f32.mrf.mxu0
        %v1982 = vadd.f32 %v1661, %v1981
        %v1983 = vpop.f32.mrf.mxu0
        %1984 = vmatprep.mubr.bf16.mxu0 %v1193
        %1985 = vmatmul.mubr.bf16.gmra.mxu0 %v1192
        %v1986 = vpop.f32.mrf.mxu0
        %v1987 = vadd.f32 %v1666, %v1986
        %v1988 = vpop.f32.mrf.mxu0
        %v1989 = vpop.f32.mrf.mxu0
        %v1990 = vadd.f32 %v1669, %v1989
        %v1991 = vpop.f32.mrf.mxu0
        %1992 = vmatprep.mubr.bf16.mxu0 %v1196
        %1993 = vmatmul.mubr.bf16.gmra.mxu0 %v1195
        %v1994 = vpop.f32.mrf.mxu0
        %v1995 = vadd.f32 %v1674, %v1994
        %v1996 = vpop.f32.mrf.mxu0
        %v1997 = vpop.f32.mrf.mxu0
        %v1998 = vadd.f32 %v1677, %v1997
        %v1999 = vpop.f32.mrf.mxu0
        %2000 = vmatprep.mubr.bf16.mxu0 %v1199
        %2001 = vmatmul.mubr.bf16.gmra.mxu0 %v1198
        %v2002 = vpop.f32.mrf.mxu0
        %v2003 = vadd.f32 %v1682, %v2002
        %v2004 = vpop.f32.mrf.mxu0
        %v2005 = vpop.f32.mrf.mxu0
        %v2006 = vadd.f32 %v1685, %v2005
        %v2007 = vpop.f32.mrf.mxu0
        %2008 = vmatprep.mubr.bf16.mxu0 %v1202
        %2009 = vmatmul.mubr.bf16.gmra.mxu0 %v1201
        %v2010 = vpop.f32.mrf.mxu0
        %v2011 = vadd.f32 %v1690, %v2010
        %v2012 = vpop.f32.mrf.mxu0
        %v2013 = vpop.f32.mrf.mxu0
        %v2014 = vadd.f32 %v1693, %v2013
        %v2015 = vpop.f32.mrf.mxu0
        %2016 = vmatprep.mubr.bf16.mxu0 %v1205
        %2017 = vmatmul.mubr.bf16.gmra.mxu0 %v1204
        %v2018 = vpop.f32.mrf.mxu0
        %v2019 = vadd.f32 %v1698, %v2018
        %v2020 = vpop.f32.mrf.mxu0
        %v2021 = vpop.f32.mrf.mxu0
        %v2022 = vadd.f32 %v1701, %v2021
        %v2023 = vpop.f32.mrf.mxu0
        %2024 = vmatprep.mubr.bf16.mxu0 %v1208
        %2025 = vmatmul.mubr.bf16.gmra.mxu0 %v1207
        %v2026 = vpop.f32.mrf.mxu0
        %v2027 = vadd.f32 %v1706, %v2026
        %v2028 = vpop.f32.mrf.mxu0
        %v2029 = vpop.f32.mrf.mxu0
        %v2030 = vadd.f32 %v1709, %v2029
        %v2031 = vpop.f32.mrf.mxu0
        %2032 = vmatprep.mubr.bf16.mxu0 %v1211
        %2033 = vmatmul.mubr.bf16.gmra.mxu0 %v1210
        %v2034 = vpop.f32.mrf.mxu0
        %v2035 = vadd.f32 %v1714, %v2034
        %v2036 = vpop.f32.mrf.mxu0
        %v2037 = vpop.f32.mrf.mxu0
        %v2038 = vadd.f32 %v1717, %v2037
        %v2039 = vpop.f32.mrf.mxu0
        %2040 = vmatprep.mubr.bf16.mxu0 %v1214
        %2041 = vmatmul.mubr.bf16.gmra.mxu0 %v1213
        %v2042 = vpop.f32.mrf.mxu0
        %v2043 = vadd.f32 %v1722, %v2042
        %v2044 = vpop.f32.mrf.mxu0
        %v2045 = vpop.f32.mrf.mxu0
        %v2046 = vadd.f32 %v1725, %v2045
        %v2047 = vpop.f32.mrf.mxu0
        %2048 = vmatprep.mubr.bf16.mxu0 %v1217
        %2049 = vmatmul.mubr.bf16.gmra.mxu0 %v1216
        %v2050 = vpop.f32.mrf.mxu0
        %v2051 = vadd.f32 %v1730, %v2050
        %v2052 = vpop.f32.mrf.mxu0
        %v2053 = vpop.f32.mrf.mxu0
        %v2054 = vadd.f32 %v1733, %v2053
        %v2055 = vpop.f32.mrf.mxu0
        %2056 = vdwg.mxu0
        %2057 = vmatprep.subr.bf16.mxu0 0
        %2058 = vmatpush1.bf16.msra.mxu0 %v1871
        %2059 = vmatprep.subr.bf16.mxu0 0
        %2060 = vmatpush1.bf16.msra.mxu0 %v1870
        %2061 = vmatprep.subr.bf16.mxu0 0
        %2062 = vmatpush1.bf16.msra.mxu0 %v1869
        %2063 = vmatprep.subr.bf16.mxu0 0
        %2064 = vmatpush1.bf16.msra.mxu0 %v1868
        %2065 = vmatprep.subr.bf16.mxu0 0
        %2066 = vmatpush1.bf16.msra.mxu0 %v1867
        %2067 = vmatprep.subr.bf16.mxu0 0
        %2068 = vmatpush1.bf16.msra.mxu0 %v1866
        %2069 = vmatprep.subr.bf16.mxu0 0
        %2070 = vmatpush1.bf16.msra.mxu0 %v1865
        %2071 = vmatprep.subr.bf16.mxu0 0
        %2072 = vmatpush1.bf16.msra.mxu0 %v1864
        %2073 = vmatprep.subr.bf16.mxu0 0
        %2074 = vmatpush2.bf16.msra.mxu0 0
        %2075 = vmatprep.subr.bf16.mxu0 0
        %2076 = vmatpush2.bf16.msra.mxu0 0
        %2077 = vmatprep.subr.bf16.mxu0 0
        %2078 = vmatpush2.bf16.msra.mxu0 0
        %2079 = vmatprep.subr.bf16.mxu0 0
        %2080 = vmatpush2.bf16.msra.mxu0 0
        %2081 = vmatprep.subr.bf16.mxu0 0
        %2082 = vmatpush2.bf16.msra.mxu0 0
        %2083 = vmatprep.subr.bf16.mxu0 0
        %2084 = vmatpush2.bf16.msra.mxu0 0
        %2085 = vmatprep.subr.bf16.mxu0 0
        %2086 = vmatpush2.bf16.msra.mxu0 0
        %2087 = vmatprep.subr.bf16.mxu0 0
        %2088 = vmatpush2.bf16.msra.mxu0 0
        %2089 = vmatprep.mubr.bf16.mxu0 0
        %2090 = vmatmul.mubr.bf16.gmra.mxu0 %v1748
        %v2091 = vpop.f32.mrf.mxu0
        %v2092 = vadd.f32 %v1931, %v2091
        %v2093 = vpop.f32.mrf.mxu0
        %v2094 = vpop.f32.mrf.mxu0
        %v2095 = vadd.f32 %v1934, %v2094
        %v2096 = vpop.f32.mrf.mxu0
        %2097 = vmatprep.mubr.bf16.mxu0 0
        %2098 = vmatmul.mubr.bf16.gmra.mxu0 %v1176
        %v2099 = vpop.f32.mrf.mxu0
        %v2100 = vadd.f32 %v1939, %v2099
        %v2101 = vpop.f32.mrf.mxu0
        %v2102 = vpop.f32.mrf.mxu0
        %v2103 = vadd.f32 %v1942, %v2102
        %v2104 = vpop.f32.mrf.mxu0
        %2105 = vmatprep.mubr.bf16.mxu0 0
        %2106 = vmatmul.mubr.bf16.gmra.mxu0 %v1179
        %v2107 = vpop.f32.mrf.mxu0
        %v2108 = vadd.f32 %v1947, %v2107
        %v2109 = vpop.f32.mrf.mxu0
        %v2110 = vpop.f32.mrf.mxu0
        %v2111 = vadd.f32 %v1950, %v2110
        %v2112 = vpop.f32.mrf.mxu0
        %2113 = vmatprep.mubr.bf16.mxu0 0
        %2114 = vmatmul.mubr.bf16.gmra.mxu0 %v1182
        %v2115 = vpop.f32.mrf.mxu0
        %v2116 = vadd.f32 %v1955, %v2115
        %v2117 = vpop.f32.mrf.mxu0
        %v2118 = vpop.f32.mrf.mxu0
        %v2119 = vadd.f32 %v1958, %v2118
        %v2120 = vpop.f32.mrf.mxu0
        %2121 = vmatprep.mubr.bf16.mxu0 0
        %2122 = vmatmul.mubr.bf16.gmra.mxu0 %v1185
        %v2123 = vpop.f32.mrf.mxu0
        %v2124 = vadd.f32 %v1963, %v2123
        %v2125 = vpop.f32.mrf.mxu0
        %v2126 = vpop.f32.mrf.mxu0
        %v2127 = vadd.f32 %v1966, %v2126
        %v2128 = vpop.f32.mrf.mxu0
        %2129 = vmatprep.mubr.bf16.mxu0 0
        %2130 = vmatmul.mubr.bf16.gmra.mxu0 %v1188
        %v2131 = vpop.f32.mrf.mxu0
        %v2132 = vadd.f32 %v1971, %v2131
        %v2133 = vpop.f32.mrf.mxu0
        %v2134 = vpop.f32.mrf.mxu0
        %v2135 = vadd.f32 %v1974, %v2134
        %v2136 = vpop.f32.mrf.mxu0
        %2137 = vmatprep.mubr.bf16.mxu0 0
        %2138 = vmatmul.mubr.bf16.gmra.mxu0 %v1191
        %v2139 = vpop.f32.mrf.mxu0
        %v2140 = vadd.f32 %v1979, %v2139
        %v2141 = vpop.f32.mrf.mxu0
        %v2142 = vpop.f32.mrf.mxu0
        %v2143 = vadd.f32 %v1982, %v2142
        %v2144 = vpop.f32.mrf.mxu0
        %2145 = vmatprep.mubr.bf16.mxu0 0
        %2146 = vmatmul.mubr.bf16.gmra.mxu0 %v1194
        %v2147 = vpop.f32.mrf.mxu0
        %v2148 = vadd.f32 %v1987, %v2147
        %v2149 = vpop.f32.mrf.mxu0
        %v2150 = vpop.f32.mrf.mxu0
        %v2151 = vadd.f32 %v1990, %v2150
        %v2152 = vpop.f32.mrf.mxu0
        %2153 = vmatprep.mubr.bf16.mxu0 0
        %2154 = vmatmul.mubr.bf16.gmra.mxu0 %v1197
        %v2155 = vpop.f32.mrf.mxu0
        %v2156 = vadd.f32 %v1995, %v2155
        %v2157 = vpop.f32.mrf.mxu0
        %v2158 = vpop.f32.mrf.mxu0
        %v2159 = vadd.f32 %v1998, %v2158
        %v2160 = vpop.f32.mrf.mxu0
        %2161 = vmatprep.mubr.bf16.mxu0 0
        %2162 = vmatmul.mubr.bf16.gmra.mxu0 %v1200
        %v2163 = vpop.f32.mrf.mxu0
        %v2164 = vadd.f32 %v2003, %v2163
        %v2165 = vpop.f32.mrf.mxu0
        %v2166 = vpop.f32.mrf.mxu0
        %v2167 = vadd.f32 %v2006, %v2166
        %v2168 = vpop.f32.mrf.mxu0
        %2169 = vmatprep.mubr.bf16.mxu0 0
        %2170 = vmatmul.mubr.bf16.gmra.mxu0 %v1203
        %v2171 = vpop.f32.mrf.mxu0
        %v2172 = vadd.f32 %v2011, %v2171
        %v2173 = vpop.f32.mrf.mxu0
        %v2174 = vpop.f32.mrf.mxu0
        %v2175 = vadd.f32 %v2014, %v2174
        %v2176 = vpop.f32.mrf.mxu0
        %2177 = vmatprep.mubr.bf16.mxu0 0
        %2178 = vmatmul.mubr.bf16.gmra.mxu0 %v1206
        %v2179 = vpop.f32.mrf.mxu0
        %v2180 = vadd.f32 %v2019, %v2179
        %v2181 = vpop.f32.mrf.mxu0
        %v2182 = vpop.f32.mrf.mxu0
        %v2183 = vadd.f32 %v2022, %v2182
        %v2184 = vpop.f32.mrf.mxu0
        %2185 = vmatprep.mubr.bf16.mxu0 0
        %2186 = vmatmul.mubr.bf16.gmra.mxu0 %v1209
        %v2187 = vpop.f32.mrf.mxu0
        %v2188 = vadd.f32 %v2027, %v2187
        %v2189 = vpop.f32.mrf.mxu0
        %v2190 = vpop.f32.mrf.mxu0
        %v2191 = vadd.f32 %v2030, %v2190
        %v2192 = vpop.f32.mrf.mxu0
        %2193 = vmatprep.mubr.bf16.mxu0 0
        %2194 = vmatmul.mubr.bf16.gmra.mxu0 %v1212
        %v2195 = vpop.f32.mrf.mxu0
        %v2196 = vadd.f32 %v2035, %v2195
        %v2197 = vpop.f32.mrf.mxu0
        %v2198 = vpop.f32.mrf.mxu0
        %v2199 = vadd.f32 %v2038, %v2198
        %v2200 = vpop.f32.mrf.mxu0
        %2201 = vmatprep.mubr.bf16.mxu0 0
        %2202 = vmatmul.mubr.bf16.gmra.mxu0 %v1215
        %v2203 = vpop.f32.mrf.mxu0
        %v2204 = vadd.f32 %v2043, %v2203
        %v2205 = vpop.f32.mrf.mxu0
        %v2206 = vpop.f32.mrf.mxu0
        %v2207 = vadd.f32 %v2046, %v2206
        %v2208 = vpop.f32.mrf.mxu0
        %2209 = vmatprep.mubr.bf16.mxu0 0
        %2210 = vmatmul.mubr.bf16.gmra.mxu0 %v1218
        %v2211 = vpop.f32.mrf.mxu0
        %v2212 = vadd.f32 %v2051, %v2211
        %v2213 = vpop.f32.mrf.mxu0
        %v2214 = vpop.f32.mrf.mxu0
        %v2215 = vadd.f32 %v2054, %v2214
        %v2216 = vpop.f32.mrf.mxu0
        %2217 = vdwg.mxu0
        %v2218 = vld [vmem:[#allocation2 + $0x30] sm:$0xff]
        %v2219 = vld [vmem:[#allocation2 + $0x38] sm:$0xf]
        %v2220 = vld [vmem:[#allocation2 + $0x3c] sm:$0xff]
        %v2221 = vld [vmem:[#allocation2 + $0x44] sm:$0xf]
        %v2222 = vld [vmem:[#allocation2 + $0x48] sm:$0xff]
        %v2223 = vld [vmem:[#allocation2 + $0x50] sm:$0xf]
        %v2224 = vld [vmem:[#allocation2 + $0x54] sm:$0xff]
        %v2225 = vld [vmem:[#allocation2 + $0x5c] sm:$0xf]
        %v2226 = vld [vmem:[#allocation2 + $0x60] sm:$0xff]
        %v2227 = vld [vmem:[#allocation2 + $0x68] sm:$0xf]
        %v2228 = vld [vmem:[#allocation2 + $0x6c] sm:$0xff]
        %v2229 = vld [vmem:[#allocation2 + $0x74] sm:$0xf]
        %v2230 = vld [vmem:[#allocation2 + $0x78] sm:$0xff]
        %v2231 = vld [vmem:[#allocation2 + $0x80] sm:$0xf]
        %v2232 = vld [vmem:[#allocation2 + $0x84] sm:$0xff]
        %v2233 = vld [vmem:[#allocation2 + $0x8c] sm:$0xf]
        %v2234 = vld [vmem:[#allocation2 + $0x90] sm:$0xff]
        %v2235 = vld [vmem:[#allocation2 + $0x98] sm:$0xf]
        %v2236 = vld [vmem:[#allocation2 + $0x9c] sm:$0xff]
        %v2237 = vld [vmem:[#allocation2 + $0xa4] sm:$0xf]
        %v2238 = vld [vmem:[#allocation2 + $0xa8] sm:$0xff]
        %v2239 = vld [vmem:[#allocation2 + $0xb0] sm:$0xf]
        %v2240 = vld [vmem:[#allocation2 + $0xb4] sm:$0xff]
        %v2241 = vld [vmem:[#allocation2 + $0xbc] sm:$0xf]
        %v2242 = vld [vmem:[#allocation2 + $0xc0] sm:$0xff]
        %v2243 = vld [vmem:[#allocation2 + $0xc8] sm:$0xf]
        %v2244 = vld [vmem:[#allocation2 + $0xcc] sm:$0xff]
        %v2245 = vld [vmem:[#allocation2 + $0xd4] sm:$0xf]
        %v2246 = vld [vmem:[#allocation2 + $0xd8] sm:$0xff]
        %v2247 = vld [vmem:[#allocation2 + $0xe0] sm:$0xf]
        %v2248 = vld [vmem:[#allocation2 + $0xe4] sm:$0xff]
        %v2249 = vld [vmem:[#allocation2 + $0xec] sm:$0xf]
        %v2250 = vld [vmem:[#allocation2 + $0xf0] sm:$0xff]
        %v2251 = vld [vmem:[#allocation2 + $0xf8] sm:$0xf]
        %v2252 = vld [vmem:[#allocation2 + $0xfc] sm:$0xff]
        %v2253 = vld [vmem:[#allocation2 + $0x104] sm:$0xf]
        %v2254 = vld [vmem:[#allocation2 + $0x108] sm:$0xff]
        %v2255 = vld [vmem:[#allocation2 + $0x110] sm:$0xf]
        %v2256 = vld [vmem:[#allocation2 + $0x114] sm:$0xff]
        %v2257 = vld [vmem:[#allocation2 + $0x11c] sm:$0xf]
        %v2258 = vld [vmem:[#allocation2 + $0x120] sm:$0xff]
        %v2259 = vld [vmem:[#allocation2 + $0x128] sm:$0xf]
        %v2260 = vld [vmem:[#allocation2 + $0x12c] sm:$0xff]
        %v2261 = vld [vmem:[#allocation2 + $0x134] sm:$0xf]
        %v2262 = vld [vmem:[#allocation2 + $0x138] sm:$0xff]
        %v2263 = vld [vmem:[#allocation2 + $0x140] sm:$0xf]
        %v2264 = vld [vmem:[#allocation2 + $0x144] sm:$0xff]
        %v2265 = vld [vmem:[#allocation2 + $0x14c] sm:$0xf]
        %v2266 = vld [vmem:[#allocation2 + $0x150] sm:$0xff]
        %v2267 = vld [vmem:[#allocation2 + $0x158] sm:$0xf]
        %v2268 = vld [vmem:[#allocation2 + $0x15c] sm:$0xff]
        %v2269 = vld [vmem:[#allocation2 + $0x164] sm:$0xf]
        %v2270 = vld [vmem:[#allocation2 + $0x168] sm:$0xff]
        %v2271 = vld [vmem:[#allocation2 + $0x170] sm:$0xf]
        %v2272 = vld [vmem:[#allocation2 + $0x174] sm:$0xff]
        %v2273 = vld [vmem:[#allocation2 + $0x17c] sm:$0xf]
        %v2274 = vld [vmem:[#allocation2 + $0x180] sm:$0xff]
        %v2275 = vld [vmem:[#allocation2 + $0x188] sm:$0xf]
        %v2276 = vld [vmem:[#allocation2 + $0x18c] sm:$0xff]
        %v2277 = vld [vmem:[#allocation2 + $0x194] sm:$0xf]
        %v2278 = vld [vmem:[#allocation2 + $0x198] sm:$0xff]
        %v2279 = vld [vmem:[#allocation2 + $0x1a0] sm:$0xf]
        %v2280 = vld [vmem:[#allocation2 + $0x1a4] sm:$0xff]
        %v2281 = vld [vmem:[#allocation2 + $0x1ac] sm:$0xf]
        %s2282 = scalar_lea.vmem %s1, 384
        %v2283 = vld [vmem:[%s2282] sm:$0xf]
        %v2284 = vld [vmem:[%s2282 + $0x4] sm:$0xf]
        %v2285 = vld [vmem:[%s2282 + $0x8] sm:$0xf]
        %v2286 = vld [vmem:[%s2282 + $0xc] sm:$0xf]
        %v2287 = vld [vmem:[%s2282 + $0x10] sm:$0xf]
        %v2288 = vld [vmem:[%s2282 + $0x14] sm:$0xf]
        %v2289 = vld [vmem:[%s2282 + $0x18] sm:$0xf]
        %v2290 = vld [vmem:[%s2282 + $0x1c] sm:$0xf]
        %v2291 = vld [vmem:[%s2282 + $0x20] sm:$0xf]
        %v2292 = vld [vmem:[%s2282 + $0x24] sm:$0xf]
        %v2293 = vld [vmem:[%s2282 + $0x28] sm:$0xf]
        %v2294 = vld [vmem:[%s2282 + $0x2c] sm:$0xf]
        %v2295 = vld [vmem:[%s2282 + $0x30] sm:$0xf]
        %v2296 = vld [vmem:[%s2282 + $0x34] sm:$0xf]
        %v2297 = vld [vmem:[%s2282 + $0x38] sm:$0xf]
        %v2298 = vld [vmem:[%s2282 + $0x3c] sm:$0xf]
        %v2299 = vld [vmem:[%s2282 + $0x40] sm:$0xf]
        %v2300 = vld [vmem:[%s2282 + $0x44] sm:$0xf]
        %v2301 = vld [vmem:[%s2282 + $0x48] sm:$0xf]
        %v2302 = vld [vmem:[%s2282 + $0x4c] sm:$0xf]
        %v2303 = vld [vmem:[%s2282 + $0x50] sm:$0xf]
        %v2304 = vld [vmem:[%s2282 + $0x54] sm:$0xf]
        %v2305 = vld [vmem:[%s2282 + $0x58] sm:$0xf]
        %v2306 = vld [vmem:[%s2282 + $0x5c] sm:$0xf]
        %v2307 = vld [vmem:[%s2282 + $0x60] sm:$0xf]
        %v2308 = vld [vmem:[%s2282 + $0x64] sm:$0xf]
        %v2309 = vld [vmem:[%s2282 + $0x68] sm:$0xf]
        %v2310 = vld [vmem:[%s2282 + $0x6c] sm:$0xf]
        %v2311 = vld [vmem:[%s2282 + $0x70] sm:$0xf]
        %v2312 = vld [vmem:[%s2282 + $0x74] sm:$0xf]
        %v2313 = vld [vmem:[%s2282 + $0x78] sm:$0xf]
        %v2314 = vld [vmem:[%s2282 + $0x7c] sm:$0xf]
        %v2315 = vld [vmem:[%s2282 + $0x80] sm:$0xf]
        %v2316 = vld [vmem:[%s2282 + $0x84] sm:$0xf]
        %v2317 = vld [vmem:[%s2282 + $0x88] sm:$0xf]
        %v2318 = vld [vmem:[%s2282 + $0x8c] sm:$0xf]
        %v2319 = vld [vmem:[%s2282 + $0x90] sm:$0xf]
        %v2320 = vld [vmem:[%s2282 + $0x94] sm:$0xf]
        %v2321 = vld [vmem:[%s2282 + $0x98] sm:$0xf]
        %v2322 = vld [vmem:[%s2282 + $0x9c] sm:$0xf]
        %v2323 = vld [vmem:[%s2282 + $0xa0] sm:$0xf]
        %v2324 = vld [vmem:[%s2282 + $0xa4] sm:$0xf]
        %v2325 = vld [vmem:[%s2282 + $0xa8] sm:$0xf]
        %v2326 = vld [vmem:[%s2282 + $0xac] sm:$0xf]
        %v2327 = vld [vmem:[%s2282 + $0xb0] sm:$0xf]
        %v2328 = vld [vmem:[%s2282 + $0xb4] sm:$0xf]
        %v2329 = vld [vmem:[%s2282 + $0xb8] sm:$0xf]
        %v2330 = vld [vmem:[%s2282 + $0xbc] sm:$0xf]
        %v2395 = vunpack.c.l.b16 %v2218
        %v2396 = vunpack.c.h.b16 %v2218
        %v2397 = vunpack.c.l.b16 %v2219
        %v2398 = vunpack.c.l.b16 %v2220
        %v2399 = vunpack.c.h.b16 %v2220
        %v2400 = vunpack.c.l.b16 %v2221
        %v2401 = vunpack.c.l.b16 %v2222
        %v2402 = vunpack.c.h.b16 %v2222
        %v2403 = vunpack.c.l.b16 %v2223
        %v2404 = vunpack.c.l.b16 %v2224
        %v2405 = vunpack.c.h.b16 %v2224
        %v2406 = vunpack.c.l.b16 %v2225
        %v2407 = vunpack.c.l.b16 %v2226
        %v2408 = vunpack.c.h.b16 %v2226
        %v2409 = vunpack.c.l.b16 %v2227
        %v2410 = vunpack.c.l.b16 %v2228
        %v2411 = vunpack.c.h.b16 %v2228
        %v2412 = vunpack.c.l.b16 %v2229
        %v2413 = vunpack.c.l.b16 %v2230
        %v2414 = vunpack.c.h.b16 %v2230
        %v2415 = vunpack.c.l.b16 %v2231
        %v2416 = vunpack.c.l.b16 %v2232
        %v2417 = vunpack.c.h.b16 %v2232
        %v2418 = vunpack.c.l.b16 %v2233
        %v2419 = vunpack.c.l.b16 %v2234
        %v2420 = vunpack.c.h.b16 %v2234
        %v2421 = vunpack.c.l.b16 %v2235
        %v2422 = vunpack.c.l.b16 %v2236
        %v2423 = vunpack.c.h.b16 %v2236
        %v2424 = vunpack.c.l.b16 %v2237
        %v2425 = vunpack.c.l.b16 %v2238
        %v2426 = vunpack.c.h.b16 %v2238
        %v2427 = vunpack.c.l.b16 %v2239
        %v2428 = vunpack.c.l.b16 %v2240
        %v2429 = vunpack.c.h.b16 %v2240
        %v2430 = vunpack.c.l.b16 %v2241
        %v2431 = vunpack.c.l.b16 %v2242
        %v2432 = vunpack.c.h.b16 %v2242
        %v2433 = vunpack.c.l.b16 %v2243
        %v2434 = vunpack.c.l.b16 %v2244
        %v2435 = vunpack.c.h.b16 %v2244
        %v2436 = vunpack.c.l.b16 %v2245
        %v2437 = vunpack.c.l.b16 %v2246
        %v2438 = vunpack.c.h.b16 %v2246
        %v2439 = vunpack.c.l.b16 %v2247
        %v2440 = vunpack.c.l.b16 %v2248
        %v2441 = vunpack.c.h.b16 %v2248
        %v2442 = vunpack.c.l.b16 %v2249
        %v2443 = vunpack.c.l.b16 %v2250
        %v2444 = vunpack.c.h.b16 %v2250
        %v2445 = vunpack.c.l.b16 %v2251
        %v2446 = vunpack.c.l.b16 %v2252
        %v2447 = vunpack.c.h.b16 %v2252
        %v2448 = vunpack.c.l.b16 %v2253
        %v2449 = vunpack.c.l.b16 %v2254
        %v2450 = vunpack.c.h.b16 %v2254
        %v2451 = vunpack.c.l.b16 %v2255
        %v2452 = vunpack.c.l.b16 %v2256
        %v2453 = vunpack.c.h.b16 %v2256
        %v2454 = vunpack.c.l.b16 %v2257
        %v2455 = vunpack.c.l.b16 %v2258
        %v2456 = vunpack.c.h.b16 %v2258
        %v2457 = vunpack.c.l.b16 %v2259
        %v2458 = vunpack.c.l.b16 %v2260
        %v2459 = vunpack.c.h.b16 %v2260
        %v2460 = vunpack.c.l.b16 %v2261
        %v2461 = vunpack.c.l.b16 %v2262
        %v2462 = vunpack.c.h.b16 %v2262
        %v2463 = vunpack.c.l.b16 %v2263
        %v2464 = vunpack.c.l.b16 %v2264
        %v2465 = vunpack.c.h.b16 %v2264
        %v2466 = vunpack.c.l.b16 %v2265
        %v2467 = vunpack.c.l.b16 %v2266
        %v2468 = vunpack.c.h.b16 %v2266
        %v2469 = vunpack.c.l.b16 %v2267
        %v2470 = vunpack.c.l.b16 %v2268
        %v2471 = vunpack.c.h.b16 %v2268
        %v2472 = vunpack.c.l.b16 %v2269
        %v2473 = vunpack.c.l.b16 %v2270
        %v2474 = vunpack.c.h.b16 %v2270
        %v2475 = vunpack.c.l.b16 %v2271
        %v2476 = vunpack.c.l.b16 %v2272
        %v2477 = vunpack.c.h.b16 %v2272
        %v2478 = vunpack.c.l.b16 %v2273
        %v2479 = vunpack.c.l.b16 %v2274
        %v2480 = vunpack.c.h.b16 %v2274
        %v2481 = vunpack.c.l.b16 %v2275
        %v2482 = vunpack.c.l.b16 %v2276
        %v2483 = vunpack.c.h.b16 %v2276
        %v2484 = vunpack.c.l.b16 %v2277
        %v2485 = vunpack.c.l.b16 %v2278
        %v2486 = vunpack.c.h.b16 %v2278
        %v2487 = vunpack.c.l.b16 %v2279
        %v2488 = vunpack.c.l.b16 %v2280
        %v2489 = vunpack.c.h.b16 %v2280
        %v2490 = vunpack.c.l.b16 %v2281
        %v2491 = vpack.c.b16 %v2398, %v2395
        %v2492 = vpack.c.b16 %v2399, %v2396
        %v2493 = vpack.c.b16 %v2400, %v2397
        %v2494 = vpack.c.b16 %v2404, %v2401
        %v2495 = vpack.c.b16 %v2405, %v2402
        %v2496 = vpack.c.b16 %v2406, %v2403
        %v2497 = vpack.c.b16 %v2410, %v2407
        %v2498 = vpack.c.b16 %v2411, %v2408
        %v2499 = vpack.c.b16 %v2412, %v2409
        %v2500 = vpack.c.b16 %v2416, %v2413
        %v2501 = vpack.c.b16 %v2417, %v2414
        %v2502 = vpack.c.b16 %v2418, %v2415
        %v2503 = vpack.c.b16 %v2422, %v2419
        %v2504 = vpack.c.b16 %v2423, %v2420
        %v2505 = vpack.c.b16 %v2424, %v2421
        %v2506 = vpack.c.b16 %v2428, %v2425
        %v2507 = vpack.c.b16 %v2429, %v2426
        %v2508 = vpack.c.b16 %v2430, %v2427
        %v2509 = vpack.c.b16 %v2434, %v2431
        %v2510 = vpack.c.b16 %v2435, %v2432
        %v2511 = vpack.c.b16 %v2436, %v2433
        %v2512 = vpack.c.b16 %v2440, %v2437
        %v2513 = vpack.c.b16 %v2441, %v2438
        %v2514 = vpack.c.b16 %v2442, %v2439
        %v2515 = vpack.c.b16 %v2446, %v2443
        %v2516 = vpack.c.b16 %v2447, %v2444
        %v2517 = vpack.c.b16 %v2448, %v2445
        %v2518 = vpack.c.b16 %v2452, %v2449
        %v2519 = vpack.c.b16 %v2453, %v2450
        %v2520 = vpack.c.b16 %v2454, %v2451
        %v2521 = vpack.c.b16 %v2458, %v2455
        %v2522 = vpack.c.b16 %v2459, %v2456
        %v2523 = vpack.c.b16 %v2460, %v2457
        %v2524 = vpack.c.b16 %v2464, %v2461
        %v2525 = vpack.c.b16 %v2465, %v2462
        %v2526 = vpack.c.b16 %v2466, %v2463
        %v2527 = vpack.c.b16 %v2470, %v2467
        %v2528 = vpack.c.b16 %v2471, %v2468
        %v2529 = vpack.c.b16 %v2472, %v2469
        %v2530 = vpack.c.b16 %v2476, %v2473
        %v2531 = vpack.c.b16 %v2477, %v2474
        %v2532 = vpack.c.b16 %v2478, %v2475
        %v2533 = vpack.c.b16 %v2482, %v2479
        %v2534 = vpack.c.b16 %v2483, %v2480
        %v2535 = vpack.c.b16 %v2484, %v2481
        %v2536 = vpack.c.b16 %v2488, %v2485
        %v2537 = vpack.c.b16 %v2489, %v2486
        %v2538 = vpack.c.b16 %v2490, %v2487
        %v2635 = vunpack.c.l.b16 %v2283
        %v2636 = vunpack.c.l.b16 %v2284
        %v2637 = vunpack.c.l.b16 %v2285
        %v2638 = vunpack.c.l.b16 %v2286
        %v2639 = vunpack.c.l.b16 %v2287
        %v2640 = vunpack.c.l.b16 %v2288
        %v2641 = vunpack.c.l.b16 %v2289
        %v2642 = vunpack.c.l.b16 %v2290
        %v2643 = vunpack.c.l.b16 %v2291
        %v2644 = vunpack.c.l.b16 %v2292
        %v2645 = vunpack.c.l.b16 %v2293
        %v2646 = vunpack.c.l.b16 %v2294
        %v2647 = vunpack.c.l.b16 %v2295
        %v2648 = vunpack.c.l.b16 %v2296
        %v2649 = vunpack.c.l.b16 %v2297
        %v2650 = vunpack.c.l.b16 %v2298
        %v2651 = vunpack.c.l.b16 %v2299
        %v2652 = vunpack.c.l.b16 %v2300
        %v2653 = vunpack.c.l.b16 %v2301
        %v2654 = vunpack.c.l.b16 %v2302
        %v2655 = vunpack.c.l.b16 %v2303
        %v2656 = vunpack.c.l.b16 %v2304
        %v2657 = vunpack.c.l.b16 %v2305
        %v2658 = vunpack.c.l.b16 %v2306
        %v2659 = vunpack.c.l.b16 %v2307
        %v2660 = vunpack.c.l.b16 %v2308
        %v2661 = vunpack.c.l.b16 %v2309
        %v2662 = vunpack.c.l.b16 %v2310
        %v2663 = vunpack.c.l.b16 %v2311
        %v2664 = vunpack.c.l.b16 %v2312
        %v2665 = vunpack.c.l.b16 %v2313
        %v2666 = vunpack.c.l.b16 %v2314
        %v2667 = vunpack.c.l.b16 %v2315
        %v2668 = vunpack.c.l.b16 %v2316
        %v2669 = vunpack.c.l.b16 %v2317
        %v2670 = vunpack.c.l.b16 %v2318
        %v2671 = vunpack.c.l.b16 %v2319
        %v2672 = vunpack.c.l.b16 %v2320
        %v2673 = vunpack.c.l.b16 %v2321
        %v2674 = vunpack.c.l.b16 %v2322
        %v2675 = vunpack.c.l.b16 %v2323
        %v2676 = vunpack.c.l.b16 %v2324
        %v2677 = vunpack.c.l.b16 %v2325
        %v2678 = vunpack.c.l.b16 %v2326
        %v2679 = vunpack.c.l.b16 %v2327
        %v2680 = vunpack.c.l.b16 %v2328
        %v2681 = vunpack.c.l.b16 %v2329
        %v2682 = vunpack.c.l.b16 %v2330
        %v2683 = vpack.c.b16 %v2636, %v2635
        %v2684 = vpack.c.b16 %v2638, %v2637
        %v2685 = vpack.c.b16 %v2640, %v2639
        %v2686 = vpack.c.b16 %v2642, %v2641
        %v2687 = vpack.c.b16 %v2644, %v2643
        %v2688 = vpack.c.b16 %v2646, %v2645
        %v2689 = vpack.c.b16 %v2648, %v2647
        %v2690 = vpack.c.b16 %v2650, %v2649
        %v2691 = vpack.c.b16 %v2652, %v2651
        %v2692 = vpack.c.b16 %v2654, %v2653
        %v2693 = vpack.c.b16 %v2656, %v2655
        %v2694 = vpack.c.b16 %v2658, %v2657
        %v2695 = vpack.c.b16 %v2660, %v2659
        %v2696 = vpack.c.b16 %v2662, %v2661
        %v2697 = vpack.c.b16 %v2664, %v2663
        %v2698 = vpack.c.b16 %v2666, %v2665
        %v2699 = vpack.c.b16 %v2668, %v2667
        %v2700 = vpack.c.b16 %v2670, %v2669
        %v2701 = vpack.c.b16 %v2672, %v2671
        %v2702 = vpack.c.b16 %v2674, %v2673
        %v2703 = vpack.c.b16 %v2676, %v2675
        %v2704 = vpack.c.b16 %v2678, %v2677
        %v2705 = vpack.c.b16 %v2680, %v2679
        %v2706 = vpack.c.b16 %v2682, %v2681
        %2731 = vmatprep.subr.bf16.mxu0 0
        %2732 = vmatpush1.bf16.msra.mxu0 %v2690
        %2733 = vmatprep.subr.bf16.mxu0 0
        %2734 = vmatpush1.bf16.msra.mxu0 %v2689
        %2735 = vmatprep.subr.bf16.mxu0 0
        %2736 = vmatpush1.bf16.msra.mxu0 %v2688
        %2737 = vmatprep.subr.bf16.mxu0 0
        %2738 = vmatpush1.bf16.msra.mxu0 %v2687
        %2739 = vmatprep.subr.bf16.mxu0 0
        %2740 = vmatpush1.bf16.msra.mxu0 %v2686
        %2741 = vmatprep.subr.bf16.mxu0 0
        %2742 = vmatpush1.bf16.msra.mxu0 %v2685
        %2743 = vmatprep.subr.bf16.mxu0 0
        %2744 = vmatpush1.bf16.msra.mxu0 %v2684
        %2745 = vmatprep.subr.bf16.mxu0 0
        %2746 = vmatpush1.bf16.msra.mxu0 %v2683
        %2747 = vmatprep.subr.bf16.mxu0 0
        %2748 = vmatpush2.bf16.msra.mxu0 %v2698
        %2749 = vmatprep.subr.bf16.mxu0 0
        %2750 = vmatpush2.bf16.msra.mxu0 %v2697
        %2751 = vmatprep.subr.bf16.mxu0 0
        %2752 = vmatpush2.bf16.msra.mxu0 %v2696
        %2753 = vmatprep.subr.bf16.mxu0 0
        %2754 = vmatpush2.bf16.msra.mxu0 %v2695
        %2755 = vmatprep.subr.bf16.mxu0 0
        %2756 = vmatpush2.bf16.msra.mxu0 %v2694
        %2757 = vmatprep.subr.bf16.mxu0 0
        %2758 = vmatpush2.bf16.msra.mxu0 %v2693
        %2759 = vmatprep.subr.bf16.mxu0 0
        %2760 = vmatpush2.bf16.msra.mxu0 %v2692
        %2761 = vmatprep.subr.bf16.mxu0 0
        %2762 = vmatpush2.bf16.msra.mxu0 %v2691
        %2763 = vmatprep.mubr.bf16.mxu0 %v2492
        %2764 = vmatmul.mubr.bf16.gmra.mxu0 %v2491
        %v2765 = vpop.f32.mrf.mxu0
        %v2766 = vadd.f32 0.0, %v2765
        %v2767 = vpop.f32.mrf.mxu0
        %v2768 = vpop.f32.mrf.mxu0
        %v2769 = vadd.f32 0.0, %v2768
        %v2770 = vpop.f32.mrf.mxu0
        %2771 = vmatprep.mubr.bf16.mxu0 %v2495
        %2772 = vmatmul.mubr.bf16.gmra.mxu0 %v2494
        %v2773 = vpop.f32.mrf.mxu0
        %v2774 = vadd.f32 0.0, %v2773
        %v2775 = vpop.f32.mrf.mxu0
        %v2776 = vpop.f32.mrf.mxu0
        %v2777 = vadd.f32 0.0, %v2776
        %v2778 = vpop.f32.mrf.mxu0
        %2779 = vmatprep.mubr.bf16.mxu0 %v2498
        %2780 = vmatmul.mubr.bf16.gmra.mxu0 %v2497
        %v2781 = vpop.f32.mrf.mxu0
        %v2782 = vadd.f32 0.0, %v2781
        %v2783 = vpop.f32.mrf.mxu0
        %v2784 = vpop.f32.mrf.mxu0
        %v2785 = vadd.f32 0.0, %v2784
        %v2786 = vpop.f32.mrf.mxu0
        %2787 = vmatprep.mubr.bf16.mxu0 %v2501
        %2788 = vmatmul.mubr.bf16.gmra.mxu0 %v2500
        %v2789 = vpop.f32.mrf.mxu0
        %v2790 = vadd.f32 0.0, %v2789
        %v2791 = vpop.f32.mrf.mxu0
        %v2792 = vpop.f32.mrf.mxu0
        %v2793 = vadd.f32 0.0, %v2792
        %v2794 = vpop.f32.mrf.mxu0
        %2795 = vmatprep.mubr.bf16.mxu0 %v2504
        %2796 = vmatmul.mubr.bf16.gmra.mxu0 %v2503
        %v2797 = vpop.f32.mrf.mxu0
        %v2798 = vadd.f32 0.0, %v2797
        %v2799 = vpop.f32.mrf.mxu0
        %v2800 = vpop.f32.mrf.mxu0
        %v2801 = vadd.f32 0.0, %v2800
        %v2802 = vpop.f32.mrf.mxu0
        %2803 = vmatprep.mubr.bf16.mxu0 %v2507
        %2804 = vmatmul.mubr.bf16.gmra.mxu0 %v2506
        %v2805 = vpop.f32.mrf.mxu0
        %v2806 = vadd.f32 0.0, %v2805
        %v2807 = vpop.f32.mrf.mxu0
        %v2808 = vpop.f32.mrf.mxu0
        %v2809 = vadd.f32 0.0, %v2808
        %v2810 = vpop.f32.mrf.mxu0
        %2811 = vmatprep.mubr.bf16.mxu0 %v2510
        %2812 = vmatmul.mubr.bf16.gmra.mxu0 %v2509
        %v2813 = vpop.f32.mrf.mxu0
        %v2814 = vadd.f32 0.0, %v2813
        %v2815 = vpop.f32.mrf.mxu0
        %v2816 = vpop.f32.mrf.mxu0
        %v2817 = vadd.f32 0.0, %v2816
        %v2818 = vpop.f32.mrf.mxu0
        %2819 = vmatprep.mubr.bf16.mxu0 %v2513
        %2820 = vmatmul.mubr.bf16.gmra.mxu0 %v2512
        %v2821 = vpop.f32.mrf.mxu0
        %v2822 = vadd.f32 0.0, %v2821
        %v2823 = vpop.f32.mrf.mxu0
        %v2824 = vpop.f32.mrf.mxu0
        %v2825 = vadd.f32 0.0, %v2824
        %v2826 = vpop.f32.mrf.mxu0
        %2827 = vmatprep.mubr.bf16.mxu0 %v2516
        %2828 = vmatmul.mubr.bf16.gmra.mxu0 %v2515
        %v2829 = vpop.f32.mrf.mxu0
        %v2830 = vadd.f32 0.0, %v2829
        %v2831 = vpop.f32.mrf.mxu0
        %v2832 = vpop.f32.mrf.mxu0
        %v2833 = vadd.f32 0.0, %v2832
        %v2834 = vpop.f32.mrf.mxu0
        %2835 = vmatprep.mubr.bf16.mxu0 %v2519
        %2836 = vmatmul.mubr.bf16.gmra.mxu0 %v2518
        %v2837 = vpop.f32.mrf.mxu0
        %v2838 = vadd.f32 0.0, %v2837
        %v2839 = vpop.f32.mrf.mxu0
        %v2840 = vpop.f32.mrf.mxu0
        %v2841 = vadd.f32 0.0, %v2840
        %v2842 = vpop.f32.mrf.mxu0
        %2843 = vmatprep.mubr.bf16.mxu0 %v2522
        %2844 = vmatmul.mubr.bf16.gmra.mxu0 %v2521
        %v2845 = vpop.f32.mrf.mxu0
        %v2846 = vadd.f32 0.0, %v2845
        %v2847 = vpop.f32.mrf.mxu0
        %v2848 = vpop.f32.mrf.mxu0
        %v2849 = vadd.f32 0.0, %v2848
        %v2850 = vpop.f32.mrf.mxu0
        %2851 = vmatprep.mubr.bf16.mxu0 %v2525
        %2852 = vmatmul.mubr.bf16.gmra.mxu0 %v2524
        %v2853 = vpop.f32.mrf.mxu0
        %v2854 = vadd.f32 0.0, %v2853
        %v2855 = vpop.f32.mrf.mxu0
        %v2856 = vpop.f32.mrf.mxu0
        %v2857 = vadd.f32 0.0, %v2856
        %v2858 = vpop.f32.mrf.mxu0
        %2859 = vmatprep.mubr.bf16.mxu0 %v2528
        %2860 = vmatmul.mubr.bf16.gmra.mxu0 %v2527
        %v2861 = vpop.f32.mrf.mxu0
        %v2862 = vadd.f32 0.0, %v2861
        %v2863 = vpop.f32.mrf.mxu0
        %v2864 = vpop.f32.mrf.mxu0
        %v2865 = vadd.f32 0.0, %v2864
        %v2866 = vpop.f32.mrf.mxu0
        %2867 = vmatprep.mubr.bf16.mxu0 %v2531
        %2868 = vmatmul.mubr.bf16.gmra.mxu0 %v2530
        %v2869 = vpop.f32.mrf.mxu0
        %v2870 = vadd.f32 0.0, %v2869
        %v2871 = vpop.f32.mrf.mxu0
        %v2872 = vpop.f32.mrf.mxu0
        %v2873 = vadd.f32 0.0, %v2872
        %v2874 = vpop.f32.mrf.mxu0
        %2875 = vmatprep.mubr.bf16.mxu0 %v2534
        %2876 = vmatmul.mubr.bf16.gmra.mxu0 %v2533
        %v2877 = vpop.f32.mrf.mxu0
        %v2878 = vadd.f32 0.0, %v2877
        %v2879 = vpop.f32.mrf.mxu0
        %v2880 = vpop.f32.mrf.mxu0
        %v2881 = vadd.f32 0.0, %v2880
        %v2882 = vpop.f32.mrf.mxu0
        %2883 = vmatprep.mubr.bf16.mxu0 %v2537
        %2884 = vmatmul.mubr.bf16.gmra.mxu0 %v2536
        %v2885 = vpop.f32.mrf.mxu0
        %v2886 = vadd.f32 0.0, %v2885
        %v2887 = vpop.f32.mrf.mxu0
        %v2888 = vpop.f32.mrf.mxu0
        %v2889 = vadd.f32 0.0, %v2888
        %v2890 = vpop.f32.mrf.mxu0
        %2891 = vdwg.mxu0
        %2892 = vmatprep.subr.bf16.mxu0 0
        %2893 = vmatpush1.bf16.msra.mxu0 %v2706
        %2894 = vmatprep.subr.bf16.mxu0 0
        %2895 = vmatpush1.bf16.msra.mxu0 %v2705
        %2896 = vmatprep.subr.bf16.mxu0 0
        %2897 = vmatpush1.bf16.msra.mxu0 %v2704
        %2898 = vmatprep.subr.bf16.mxu0 0
        %2899 = vmatpush1.bf16.msra.mxu0 %v2703
        %2900 = vmatprep.subr.bf16.mxu0 0
        %2901 = vmatpush1.bf16.msra.mxu0 %v2702
        %2902 = vmatprep.subr.bf16.mxu0 0
        %2903 = vmatpush1.bf16.msra.mxu0 %v2701
        %2904 = vmatprep.subr.bf16.mxu0 0
        %2905 = vmatpush1.bf16.msra.mxu0 %v2700
        %2906 = vmatprep.subr.bf16.mxu0 0
        %2907 = vmatpush1.bf16.msra.mxu0 %v2699
        %2908 = vmatprep.subr.bf16.mxu0 0
        %2909 = vmatpush2.bf16.msra.mxu0 0
        %2910 = vmatprep.subr.bf16.mxu0 0
        %2911 = vmatpush2.bf16.msra.mxu0 0
        %2912 = vmatprep.subr.bf16.mxu0 0
        %2913 = vmatpush2.bf16.msra.mxu0 0
        %2914 = vmatprep.subr.bf16.mxu0 0
        %2915 = vmatpush2.bf16.msra.mxu0 0
        %2916 = vmatprep.subr.bf16.mxu0 0
        %2917 = vmatpush2.bf16.msra.mxu0 0
        %2918 = vmatprep.subr.bf16.mxu0 0
        %2919 = vmatpush2.bf16.msra.mxu0 0
        %2920 = vmatprep.subr.bf16.mxu0 0
        %2921 = vmatpush2.bf16.msra.mxu0 0
        %2922 = vmatprep.subr.bf16.mxu0 0
        %2923 = vmatpush2.bf16.msra.mxu0 0
        %2924 = vmatprep.mubr.bf16.mxu0 0
        %2925 = vmatmul.mubr.bf16.gmra.mxu0 %v2493
        %v2926 = vpop.f32.mrf.mxu0
        %v2927 = vadd.f32 %v2766, %v2926
        %v2928 = vpop.f32.mrf.mxu0
        %v2929 = vpop.f32.mrf.mxu0
        %v2930 = vadd.f32 %v2769, %v2929
        %v2931 = vpop.f32.mrf.mxu0
        %2932 = vmatprep.mubr.bf16.mxu0 0
        %2933 = vmatmul.mubr.bf16.gmra.mxu0 %v2496
        %v2934 = vpop.f32.mrf.mxu0
        %v2935 = vadd.f32 %v2774, %v2934
        %v2936 = vpop.f32.mrf.mxu0
        %v2937 = vpop.f32.mrf.mxu0
        %v2938 = vadd.f32 %v2777, %v2937
        %v2939 = vpop.f32.mrf.mxu0
        %2940 = vmatprep.mubr.bf16.mxu0 0
        %2941 = vmatmul.mubr.bf16.gmra.mxu0 %v2499
        %v2942 = vpop.f32.mrf.mxu0
        %v2943 = vadd.f32 %v2782, %v2942
        %v2944 = vpop.f32.mrf.mxu0
        %v2945 = vpop.f32.mrf.mxu0
        %v2946 = vadd.f32 %v2785, %v2945
        %v2947 = vpop.f32.mrf.mxu0
        %2948 = vmatprep.mubr.bf16.mxu0 0
        %2949 = vmatmul.mubr.bf16.gmra.mxu0 %v2502
        %v2950 = vpop.f32.mrf.mxu0
        %v2951 = vadd.f32 %v2790, %v2950
        %v2952 = vpop.f32.mrf.mxu0
        %v2953 = vpop.f32.mrf.mxu0
        %v2954 = vadd.f32 %v2793, %v2953
        %v2955 = vpop.f32.mrf.mxu0
        %2956 = vmatprep.mubr.bf16.mxu0 0
        %2957 = vmatmul.mubr.bf16.gmra.mxu0 %v2505
        %v2958 = vpop.f32.mrf.mxu0
        %v2959 = vadd.f32 %v2798, %v2958
        %v2960 = vpop.f32.mrf.mxu0
        %v2961 = vpop.f32.mrf.mxu0
        %v2962 = vadd.f32 %v2801, %v2961
        %v2963 = vpop.f32.mrf.mxu0
        %2964 = vmatprep.mubr.bf16.mxu0 0
        %2965 = vmatmul.mubr.bf16.gmra.mxu0 %v2508
        %v2966 = vpop.f32.mrf.mxu0
        %v2967 = vadd.f32 %v2806, %v2966
        %v2968 = vpop.f32.mrf.mxu0
        %v2969 = vpop.f32.mrf.mxu0
        %v2970 = vadd.f32 %v2809, %v2969
        %v2971 = vpop.f32.mrf.mxu0
        %2972 = vmatprep.mubr.bf16.mxu0 0
        %2973 = vmatmul.mubr.bf16.gmra.mxu0 %v2511
        %v2974 = vpop.f32.mrf.mxu0
        %v2975 = vadd.f32 %v2814, %v2974
        %v2976 = vpop.f32.mrf.mxu0
        %v2977 = vpop.f32.mrf.mxu0
        %v2978 = vadd.f32 %v2817, %v2977
        %v2979 = vpop.f32.mrf.mxu0
        %2980 = vmatprep.mubr.bf16.mxu0 0
        %2981 = vmatmul.mubr.bf16.gmra.mxu0 %v2514
        %v2982 = vpop.f32.mrf.mxu0
        %v2983 = vadd.f32 %v2822, %v2982
        %v2984 = vpop.f32.mrf.mxu0
        %v2985 = vpop.f32.mrf.mxu0
        %v2986 = vadd.f32 %v2825, %v2985
        %v2987 = vpop.f32.mrf.mxu0
        %2988 = vmatprep.mubr.bf16.mxu0 0
        %2989 = vmatmul.mubr.bf16.gmra.mxu0 %v2517
        %v2990 = vpop.f32.mrf.mxu0
        %v2991 = vadd.f32 %v2830, %v2990
        %v2992 = vpop.f32.mrf.mxu0
        %v2993 = vpop.f32.mrf.mxu0
        %v2994 = vadd.f32 %v2833, %v2993
        %v2995 = vpop.f32.mrf.mxu0
        %2996 = vmatprep.mubr.bf16.mxu0 0
        %2997 = vmatmul.mubr.bf16.gmra.mxu0 %v2520
        %v2998 = vpop.f32.mrf.mxu0
        %v2999 = vadd.f32 %v2838, %v2998
        %v3000 = vpop.f32.mrf.mxu0
        %v3001 = vpop.f32.mrf.mxu0
        %v3002 = vadd.f32 %v2841, %v3001
        %v3003 = vpop.f32.mrf.mxu0
        %3004 = vmatprep.mubr.bf16.mxu0 0
        %3005 = vmatmul.mubr.bf16.gmra.mxu0 %v2523
        %v3006 = vpop.f32.mrf.mxu0
        %v3007 = vadd.f32 %v2846, %v3006
        %v3008 = vpop.f32.mrf.mxu0
        %v3009 = vpop.f32.mrf.mxu0
        %v3010 = vadd.f32 %v2849, %v3009
        %v3011 = vpop.f32.mrf.mxu0
        %3012 = vmatprep.mubr.bf16.mxu0 0
        %3013 = vmatmul.mubr.bf16.gmra.mxu0 %v2526
        %v3014 = vpop.f32.mrf.mxu0
        %v3015 = vadd.f32 %v2854, %v3014
        %v3016 = vpop.f32.mrf.mxu0
        %v3017 = vpop.f32.mrf.mxu0
        %v3018 = vadd.f32 %v2857, %v3017
        %v3019 = vpop.f32.mrf.mxu0
        %3020 = vmatprep.mubr.bf16.mxu0 0
        %3021 = vmatmul.mubr.bf16.gmra.mxu0 %v2529
        %v3022 = vpop.f32.mrf.mxu0
        %v3023 = vadd.f32 %v2862, %v3022
        %v3024 = vpop.f32.mrf.mxu0
        %v3025 = vpop.f32.mrf.mxu0
        %v3026 = vadd.f32 %v2865, %v3025
        %v3027 = vpop.f32.mrf.mxu0
        %3028 = vmatprep.mubr.bf16.mxu0 0
        %3029 = vmatmul.mubr.bf16.gmra.mxu0 %v2532
        %v3030 = vpop.f32.mrf.mxu0
        %v3031 = vadd.f32 %v2870, %v3030
        %v3032 = vpop.f32.mrf.mxu0
        %v3033 = vpop.f32.mrf.mxu0
        %v3034 = vadd.f32 %v2873, %v3033
        %v3035 = vpop.f32.mrf.mxu0
        %3036 = vmatprep.mubr.bf16.mxu0 0
        %3037 = vmatmul.mubr.bf16.gmra.mxu0 %v2535
        %v3038 = vpop.f32.mrf.mxu0
        %v3039 = vadd.f32 %v2878, %v3038
        %v3040 = vpop.f32.mrf.mxu0
        %v3041 = vpop.f32.mrf.mxu0
        %v3042 = vadd.f32 %v2881, %v3041
        %v3043 = vpop.f32.mrf.mxu0
        %3044 = vmatprep.mubr.bf16.mxu0 0
        %3045 = vmatmul.mubr.bf16.gmra.mxu0 %v2538
        %v3046 = vpop.f32.mrf.mxu0
        %v3047 = vadd.f32 %v2886, %v3046
        %v3048 = vpop.f32.mrf.mxu0
        %v3049 = vpop.f32.mrf.mxu0
        %v3050 = vadd.f32 %v2889, %v3049
        %v3051 = vpop.f32.mrf.mxu0
        %3052 = vdwg.mxu0
        %v3053 = vadd.f32 %v2092, %v2927
        %v3054 = vadd.f32 %v2095, %v2930
        %v3055 = vadd.f32 %v2100, %v2935
        %v3056 = vadd.f32 %v2103, %v2938
        %v3057 = vadd.f32 %v2108, %v2943
        %v3058 = vadd.f32 %v2111, %v2946
        %v3059 = vadd.f32 %v2116, %v2951
        %v3060 = vadd.f32 %v2119, %v2954
        %v3061 = vadd.f32 %v2124, %v2959
        %v3062 = vadd.f32 %v2127, %v2962
        %v3063 = vadd.f32 %v2132, %v2967
        %v3064 = vadd.f32 %v2135, %v2970
        %v3065 = vadd.f32 %v2140, %v2975
        %v3066 = vadd.f32 %v2143, %v2978
        %v3067 = vadd.f32 %v2148, %v2983
        %v3068 = vadd.f32 %v2151, %v2986
        %v3069 = vadd.f32 %v2156, %v2991
        %v3070 = vadd.f32 %v2159, %v2994
        %v3071 = vadd.f32 %v2164, %v2999
        %v3072 = vadd.f32 %v2167, %v3002
        %v3073 = vadd.f32 %v2172, %v3007
        %v3074 = vadd.f32 %v2175, %v3010
        %v3075 = vadd.f32 %v2180, %v3015
        %v3076 = vadd.f32 %v2183, %v3018
        %v3077 = vadd.f32 %v2188, %v3023
        %v3078 = vadd.f32 %v2191, %v3026
        %v3079 = vadd.f32 %v2196, %v3031
        %v3080 = vadd.f32 %v2199, %v3034
        %v3081 = vadd.f32 %v2204, %v3039
        %v3082 = vadd.f32 %v2207, %v3042
        %v3083 = vadd.f32 %v2212, %v3047
        %v3084 = vadd.f32 %v2215, %v3050
        %v3085 = vld [vmem:[%s2] sm:$0x1]
        %v3087 = vlaneseq
        %v3088 = vshrl.u32 %v3087, 7
        %v3089 = vsub.s32 0, %v3088
        %v3090 = vrot.slane %v3085, %v3089
        %v3092 = vadd.f32 %v3053, %v3090
        %v3093 = vadd.f32 %v3054, %v3090
        %v3094 = vadd.f32 %v3055, %v3090
        %v3095 = vadd.f32 %v3056, %v3090
        %v3096 = vadd.f32 %v3057, %v3090
        %v3097 = vadd.f32 %v3058, %v3090
        %v3098 = vadd.f32 %v3059, %v3090
        %v3099 = vadd.f32 %v3060, %v3090
        %v3100 = vadd.f32 %v3061, %v3090
        %v3101 = vadd.f32 %v3062, %v3090
        %v3102 = vadd.f32 %v3063, %v3090
        %v3103 = vadd.f32 %v3064, %v3090
        %v3104 = vadd.f32 %v3065, %v3090
        %v3105 = vadd.f32 %v3066, %v3090
        %v3106 = vadd.f32 %v3067, %v3090
        %v3107 = vadd.f32 %v3068, %v3090
        %v3108 = vadd.f32 %v3069, %v3090
        %v3109 = vadd.f32 %v3070, %v3090
        %v3110 = vadd.f32 %v3071, %v3090
        %v3111 = vadd.f32 %v3072, %v3090
        %v3112 = vadd.f32 %v3073, %v3090
        %v3113 = vadd.f32 %v3074, %v3090
        %v3114 = vadd.f32 %v3075, %v3090
        %v3115 = vadd.f32 %v3076, %v3090
        %v3116 = vadd.f32 %v3077, %v3090
        %v3117 = vadd.f32 %v3078, %v3090
        %v3118 = vadd.f32 %v3079, %v3090
        %v3119 = vadd.f32 %v3080, %v3090
        %v3120 = vadd.f32 %v3081, %v3090
        %v3121 = vadd.f32 %v3082, %v3090
        %v3122 = vadd.f32 %v3083, %v3090
        %v3123 = vadd.f32 %v3084, %v3090
        %v3124 = vmax.f32 %v3092, 0.0
        %v3125 = vmax.f32 %v3093, 0.0
        %v3126 = vmax.f32 %v3094, 0.0
        %v3127 = vmax.f32 %v3095, 0.0
        %v3128 = vmax.f32 %v3096, 0.0
        %v3129 = vmax.f32 %v3097, 0.0
        %v3130 = vmax.f32 %v3098, 0.0
        %v3131 = vmax.f32 %v3099, 0.0
        %v3132 = vmax.f32 %v3100, 0.0
        %v3133 = vmax.f32 %v3101, 0.0
        %v3134 = vmax.f32 %v3102, 0.0
        %v3135 = vmax.f32 %v3103, 0.0
        %v3136 = vmax.f32 %v3104, 0.0
        %v3137 = vmax.f32 %v3105, 0.0
        %v3138 = vmax.f32 %v3106, 0.0
        %v3139 = vmax.f32 %v3107, 0.0
        %v3140 = vmax.f32 %v3108, 0.0
        %v3141 = vmax.f32 %v3109, 0.0
        %v3142 = vmax.f32 %v3110, 0.0
        %v3143 = vmax.f32 %v3111, 0.0
        %v3144 = vmax.f32 %v3112, 0.0
        %v3145 = vmax.f32 %v3113, 0.0
        %v3146 = vmax.f32 %v3114, 0.0
        %v3147 = vmax.f32 %v3115, 0.0
        %v3148 = vmax.f32 %v3116, 0.0
        %v3149 = vmax.f32 %v3117, 0.0
        %v3150 = vmax.f32 %v3118, 0.0
        %v3151 = vmax.f32 %v3119, 0.0
        %v3152 = vmax.f32 %v3120, 0.0
        %v3153 = vmax.f32 %v3121, 0.0
        %v3154 = vmax.f32 %v3122, 0.0
        %v3155 = vmax.f32 %v3123, 0.0
        %v3156 = vpack.c.bf16 %v3125, %v3124
        %v3157 = vpack.c.bf16 %v3127, %v3126
        %v3158 = vpack.c.bf16 %v3129, %v3128
        %v3159 = vpack.c.bf16 %v3131, %v3130
        %v3160 = vpack.c.bf16 %v3133, %v3132
        %v3161 = vpack.c.bf16 %v3135, %v3134
        %v3162 = vpack.c.bf16 %v3137, %v3136
        %v3163 = vpack.c.bf16 %v3139, %v3138
        %v3164 = vpack.c.bf16 %v3141, %v3140
        %v3165 = vpack.c.bf16 %v3143, %v3142
        %v3166 = vpack.c.bf16 %v3145, %v3144
        %v3167 = vpack.c.bf16 %v3147, %v3146
        %v3168 = vpack.c.bf16 %v3149, %v3148
        %v3169 = vpack.c.bf16 %v3151, %v3150
        %v3170 = vpack.c.bf16 %v3153, %v3152
        %v3171 = vpack.c.bf16 %v3155, %v3154
        %v3188 = vunpack.c.l.b16 %v3156
        %v3189 = vunpack.c.h.b16 %v3156
        %v3190 = vunpack.c.l.b16 %v3157
        %v3191 = vunpack.c.h.b16 %v3157
        %v3192 = vunpack.c.l.b16 %v3158
        %v3193 = vunpack.c.h.b16 %v3158
        %v3194 = vunpack.c.l.b16 %v3159
        %v3195 = vunpack.c.h.b16 %v3159
        %v3196 = vunpack.c.l.b16 %v3160
        %v3197 = vunpack.c.h.b16 %v3160
        %v3198 = vunpack.c.l.b16 %v3161
        %v3199 = vunpack.c.h.b16 %v3161
        %v3200 = vunpack.c.l.b16 %v3162
        %v3201 = vunpack.c.h.b16 %v3162
        %v3202 = vunpack.c.l.b16 %v3163
        %v3203 = vunpack.c.h.b16 %v3163
        %v3204 = vunpack.c.l.b16 %v3164
        %v3205 = vunpack.c.h.b16 %v3164
        %v3206 = vunpack.c.l.b16 %v3165
        %v3207 = vunpack.c.h.b16 %v3165
        %v3208 = vunpack.c.l.b16 %v3166
        %v3209 = vunpack.c.h.b16 %v3166
        %v3210 = vunpack.c.l.b16 %v3167
        %v3211 = vunpack.c.h.b16 %v3167
        %v3212 = vunpack.c.l.b16 %v3168
        %v3213 = vunpack.c.h.b16 %v3168
        %v3214 = vunpack.c.l.b16 %v3169
        %v3215 = vunpack.c.h.b16 %v3169
        %v3216 = vunpack.c.l.b16 %v3170
        %v3217 = vunpack.c.h.b16 %v3170
        %v3218 = vunpack.c.l.b16 %v3171
        %v3219 = vunpack.c.h.b16 %v3171
        %v3220 = vpack.c.b16 %v3188, %v3188
        %v3221 = vpack.c.b16 %v3189, %v3189
        %v3222 = vpack.c.b16 %v3190, %v3190
        %v3223 = vpack.c.b16 %v3191, %v3191
        %v3224 = vpack.c.b16 %v3192, %v3192
        %v3225 = vpack.c.b16 %v3193, %v3193
        %v3226 = vpack.c.b16 %v3194, %v3194
        %v3227 = vpack.c.b16 %v3195, %v3195
        %v3228 = vpack.c.b16 %v3196, %v3196
        %v3229 = vpack.c.b16 %v3197, %v3197
        %v3230 = vpack.c.b16 %v3198, %v3198
        %v3231 = vpack.c.b16 %v3199, %v3199
        %v3232 = vpack.c.b16 %v3200, %v3200
        %v3233 = vpack.c.b16 %v3201, %v3201
        %v3234 = vpack.c.b16 %v3202, %v3202
        %v3235 = vpack.c.b16 %v3203, %v3203
        %v3236 = vpack.c.b16 %v3204, %v3204
        %v3237 = vpack.c.b16 %v3205, %v3205
        %v3238 = vpack.c.b16 %v3206, %v3206
        %v3239 = vpack.c.b16 %v3207, %v3207
        %v3240 = vpack.c.b16 %v3208, %v3208
        %v3241 = vpack.c.b16 %v3209, %v3209
        %v3242 = vpack.c.b16 %v3210, %v3210
        %v3243 = vpack.c.b16 %v3211, %v3211
        %v3244 = vpack.c.b16 %v3212, %v3212
        %v3245 = vpack.c.b16 %v3213, %v3213
        %v3246 = vpack.c.b16 %v3214, %v3214
        %v3247 = vpack.c.b16 %v3215, %v3215
        %v3248 = vpack.c.b16 %v3216, %v3216
        %v3249 = vpack.c.b16 %v3217, %v3217
        %v3250 = vpack.c.b16 %v3218, %v3218
        %v3251 = vpack.c.b16 %v3219, %v3219
        %3284 = vst [vmem:[#allocation2 + $0x1c] sm:$0xf] %v3220
        %3285 = vst [vmem:[#allocation2 + $0x28] sm:$0xf] %v3221
        %3286 = vst [vmem:[#allocation2 + $0x34] sm:$0xf] %v3222
        %3287 = vst [vmem:[#allocation2 + $0x40] sm:$0xf] %v3223
        %3288 = vst [vmem:[#allocation2 + $0x4c] sm:$0xf] %v3224
        %3289 = vst [vmem:[#allocation2 + $0x58] sm:$0xf] %v3225
        %3290 = vst [vmem:[#allocation2 + $0x64] sm:$0xf] %v3226
        %3291 = vst [vmem:[#allocation2 + $0x70] sm:$0xf] %v3227
        %3292 = vst [vmem:[#allocation2 + $0x7c] sm:$0xf] %v3228
        %3293 = vst [vmem:[#allocation2 + $0x88] sm:$0xf] %v3229
        %3294 = vst [vmem:[#allocation2 + $0x94] sm:$0xf] %v3230
        %3295 = vst [vmem:[#allocation2 + $0xa0] sm:$0xf] %v3231
        %3296 = vst [vmem:[#allocation2 + $0xac] sm:$0xf] %v3232
        %3297 = vst [vmem:[#allocation2 + $0xb8] sm:$0xf] %v3233
        %3298 = vst [vmem:[#allocation2 + $0xc4] sm:$0xf] %v3234
        %3299 = vst [vmem:[#allocation2 + $0xd0] sm:$0xf] %v3235
        %3300 = vst [vmem:[#allocation2 + $0xdc] sm:$0xf] %v3236
        %3301 = vst [vmem:[#allocation2 + $0xe8] sm:$0xf] %v3237
        %3302 = vst [vmem:[#allocation2 + $0xf4] sm:$0xf] %v3238
        %3303 = vst [vmem:[#allocation2 + $0x100] sm:$0xf] %v3239
        %3304 = vst [vmem:[#allocation2 + $0x10c] sm:$0xf] %v3240
        %3305 = vst [vmem:[#allocation2 + $0x118] sm:$0xf] %v3241
        %3306 = vst [vmem:[#allocation2 + $0x124] sm:$0xf] %v3242
        %3307 = vst [vmem:[#allocation2 + $0x130] sm:$0xf] %v3243
        %3308 = vst [vmem:[#allocation2 + $0x13c] sm:$0xf] %v3244
        %3309 = vst [vmem:[#allocation2 + $0x148] sm:$0xf] %v3245
        %3310 = vst [vmem:[#allocation2 + $0x154] sm:$0xf] %v3246
        %3311 = vst [vmem:[#allocation2 + $0x160] sm:$0xf] %v3247
        %3312 = vst [vmem:[#allocation2 + $0x16c] sm:$0xf] %v3248
        %3313 = vst [vmem:[#allocation2 + $0x178] sm:$0xf] %v3249
        %3314 = vst [vmem:[#allocation2 + $0x184] sm:$0xf] %v3250
        %3315 = vst [vmem:[#allocation2 + $0x190] sm:$0xf] %v3251
        %v3316 = vrot.slane %v3124, 7
        %v3317 = vrot.slane %v3125, 7
        %v3318 = vrot.slane %v3126, 7
        %v3319 = vrot.slane %v3127, 7
        %v3320 = vrot.slane %v3128, 7
        %v3321 = vrot.slane %v3129, 7
        %v3322 = vrot.slane %v3130, 7
        %v3323 = vrot.slane %v3131, 7
        %v3324 = vrot.slane %v3132, 7
        %v3325 = vrot.slane %v3133, 7
        %v3326 = vrot.slane %v3134, 7
        %v3327 = vrot.slane %v3135, 7
        %v3328 = vrot.slane %v3136, 7
        %v3329 = vrot.slane %v3137, 7
        %v3330 = vrot.slane %v3138, 7
        %v3331 = vrot.slane %v3139, 7
        %v3332 = vrot.slane %v3140, 7
        %v3333 = vrot.slane %v3141, 7
        %v3334 = vrot.slane %v3142, 7
        %v3335 = vrot.slane %v3143, 7
        %v3336 = vrot.slane %v3144, 7
        %v3337 = vrot.slane %v3145, 7
        %v3338 = vrot.slane %v3146, 7
        %v3339 = vrot.slane %v3147, 7
        %v3340 = vrot.slane %v3148, 7
        %v3341 = vrot.slane %v3149, 7
        %v3342 = vrot.slane %v3150, 7
        %v3343 = vrot.slane %v3151, 7
        %v3344 = vrot.slane %v3152, 7
        %v3345 = vrot.slane %v3153, 7
        %v3346 = vrot.slane %v3154, 7
        %v3347 = vrot.slane %v3155, 7
        %v3348 = vsel %vm363, %v3346, %v3347
        %v3349 = vsel %vm363, %v3345, %v3346
        %v3350 = vsel %vm363, %v3344, %v3345
        %v3351 = vsel %vm363, %v3343, %v3344
        %v3352 = vsel %vm363, %v3342, %v3343
        %v3353 = vsel %vm363, %v3341, %v3342
        %v3354 = vsel %vm363, %v3340, %v3341
        %v3355 = vsel %vm363, %v3339, %v3340
        %v3356 = vsel %vm363, %v3338, %v3339
        %v3357 = vsel %vm363, %v3337, %v3338
        %v3358 = vsel %vm363, %v3336, %v3337
        %v3359 = vsel %vm363, %v3335, %v3336
        %v3360 = vsel %vm363, %v3334, %v3335
        %v3361 = vsel %vm363, %v3333, %v3334
        %v3362 = vsel %vm363, %v3332, %v3333
        %v3363 = vsel %vm363, %v3331, %v3332
        %v3364 = vsel %vm363, %v3330, %v3331
        %v3365 = vsel %vm363, %v3329, %v3330
        %v3366 = vsel %vm363, %v3328, %v3329
        %v3367 = vsel %vm363, %v3327, %v3328
        %v3368 = vsel %vm363, %v3326, %v3327
        %v3369 = vsel %vm363, %v3325, %v3326
        %v3370 = vsel %vm363, %v3324, %v3325
        %v3371 = vsel %vm363, %v3323, %v3324
        %v3372 = vsel %vm363, %v3322, %v3323
        %v3373 = vsel %vm363, %v3321, %v3322
        %v3374 = vsel %vm363, %v3320, %v3321
        %v3375 = vsel %vm363, %v3319, %v3320
        %v3376 = vsel %vm363, %v3318, %v3319
        %v3377 = vsel %vm363, %v3317, %v3318
        %v3378 = vsel %vm363, %v3316, %v3317
        %v3379 = vsel %vm363, %v3347, %v3316
        %v3380 = vsel %vm396, %v3379, 0.0
        %v3381 = vsel %vm397, %v3378, 0.0
        %v3382 = vsel %vm396, %v3377, 0.0
        %v3383 = vsel %vm397, %v3376, 0.0
        %v3384 = vsel %vm396, %v3375, 0.0
        %v3385 = vsel %vm397, %v3374, 0.0
        %v3386 = vsel %vm396, %v3373, 0.0
        %v3387 = vsel %vm397, %v3372, 0.0
        %v3388 = vsel %vm396, %v3371, 0.0
        %v3389 = vsel %vm397, %v3370, 0.0
        %v3390 = vsel %vm396, %v3369, 0.0
        %v3391 = vsel %vm397, %v3368, 0.0
        %v3392 = vsel %vm396, %v3367, 0.0
        %v3393 = vsel %vm397, %v3366, 0.0
        %v3394 = vsel %vm396, %v3365, 0.0
        %v3395 = vsel %vm397, %v3364, 0.0
        %v3396 = vsel %vm396, %v3363, 0.0
        %v3397 = vsel %vm397, %v3362, 0.0
        %v3398 = vsel %vm396, %v3361, 0.0
        %v3399 = vsel %vm397, %v3360, 0.0
        %v3400 = vsel %vm396, %v3359, 0.0
        %v3401 = vsel %vm397, %v3358, 0.0
        %v3402 = vsel %vm396, %v3357, 0.0
        %v3403 = vsel %vm397, %v3356, 0.0
        %v3404 = vsel %vm396, %v3355, 0.0
        %v3405 = vsel %vm397, %v3354, 0.0
        %v3406 = vsel %vm396, %v3353, 0.0
        %v3407 = vsel %vm397, %v3352, 0.0
        %v3408 = vsel %vm396, %v3351, 0.0
        %v3409 = vsel %vm397, %v3350, 0.0
        %v3410 = vsel %vm396, %v3349, 0.0
        %v3411 = vsel %vm397, %v3348, 0.0
        %v3412 = vpack.c.bf16 %v3381, %v3380
        %v3413 = vpack.c.bf16 %v3383, %v3382
        %v3414 = vpack.c.bf16 %v3385, %v3384
        %v3415 = vpack.c.bf16 %v3387, %v3386
        %v3416 = vpack.c.bf16 %v3389, %v3388
        %v3417 = vpack.c.bf16 %v3391, %v3390
        %v3418 = vpack.c.bf16 %v3393, %v3392
        %v3419 = vpack.c.bf16 %v3395, %v3394
        %v3420 = vpack.c.bf16 %v3397, %v3396
        %v3421 = vpack.c.bf16 %v3399, %v3398
        %v3422 = vpack.c.bf16 %v3401, %v3400
        %v3423 = vpack.c.bf16 %v3403, %v3402
        %v3424 = vpack.c.bf16 %v3405, %v3404
        %v3425 = vpack.c.bf16 %v3407, %v3406
        %v3426 = vpack.c.bf16 %v3409, %v3408
        %v3427 = vpack.c.bf16 %v3411, %v3410
        %v3444 = vunpack.c.l.b16 %v3412
        %v3445 = vunpack.c.h.b16 %v3412
        %v3446 = vunpack.c.l.b16 %v3413
        %v3447 = vunpack.c.h.b16 %v3413
        %v3448 = vunpack.c.l.b16 %v3414
        %v3449 = vunpack.c.h.b16 %v3414
        %v3450 = vunpack.c.l.b16 %v3415
        %v3451 = vunpack.c.h.b16 %v3415
        %v3452 = vunpack.c.l.b16 %v3416
        %v3453 = vunpack.c.h.b16 %v3416
        %v3454 = vunpack.c.l.b16 %v3417
        %v3455 = vunpack.c.h.b16 %v3417
        %v3456 = vunpack.c.l.b16 %v3418
        %v3457 = vunpack.c.h.b16 %v3418
        %v3458 = vunpack.c.l.b16 %v3419
        %v3459 = vunpack.c.h.b16 %v3419
        %v3460 = vunpack.c.l.b16 %v3420
        %v3461 = vunpack.c.h.b16 %v3420
        %v3462 = vunpack.c.l.b16 %v3421
        %v3463 = vunpack.c.h.b16 %v3421
        %v3464 = vunpack.c.l.b16 %v3422
        %v3465 = vunpack.c.h.b16 %v3422
        %v3466 = vunpack.c.l.b16 %v3423
        %v3467 = vunpack.c.h.b16 %v3423
        %v3468 = vunpack.c.l.b16 %v3424
        %v3469 = vunpack.c.h.b16 %v3424
        %v3470 = vunpack.c.l.b16 %v3425
        %v3471 = vunpack.c.h.b16 %v3425
        %v3472 = vunpack.c.l.b16 %v3426
        %v3473 = vunpack.c.h.b16 %v3426
        %v3474 = vunpack.c.l.b16 %v3427
        %v3475 = vunpack.c.h.b16 %v3427
        %v3476 = vpack.c.b16 %v3444, %v3444
        %v3477 = vpack.c.b16 %v3445, %v3445
        %v3478 = vpack.c.b16 %v3446, %v3446
        %v3479 = vpack.c.b16 %v3447, %v3447
        %v3480 = vpack.c.b16 %v3448, %v3448
        %v3481 = vpack.c.b16 %v3449, %v3449
        %v3482 = vpack.c.b16 %v3450, %v3450
        %v3483 = vpack.c.b16 %v3451, %v3451
        %v3484 = vpack.c.b16 %v3452, %v3452
        %v3485 = vpack.c.b16 %v3453, %v3453
        %v3486 = vpack.c.b16 %v3454, %v3454
        %v3487 = vpack.c.b16 %v3455, %v3455
        %v3488 = vpack.c.b16 %v3456, %v3456
        %v3489 = vpack.c.b16 %v3457, %v3457
        %v3490 = vpack.c.b16 %v3458, %v3458
        %v3491 = vpack.c.b16 %v3459, %v3459
        %v3492 = vpack.c.b16 %v3460, %v3460
        %v3493 = vpack.c.b16 %v3461, %v3461
        %v3494 = vpack.c.b16 %v3462, %v3462
        %v3495 = vpack.c.b16 %v3463, %v3463
        %v3496 = vpack.c.b16 %v3464, %v3464
        %v3497 = vpack.c.b16 %v3465, %v3465
        %v3498 = vpack.c.b16 %v3466, %v3466
        %v3499 = vpack.c.b16 %v3467, %v3467
        %v3500 = vpack.c.b16 %v3468, %v3468
        %v3501 = vpack.c.b16 %v3469, %v3469
        %v3502 = vpack.c.b16 %v3470, %v3470
        %v3503 = vpack.c.b16 %v3471, %v3471
        %v3504 = vpack.c.b16 %v3472, %v3472
        %v3505 = vpack.c.b16 %v3473, %v3473
        %v3506 = vpack.c.b16 %v3474, %v3474
        %v3507 = vpack.c.b16 %v3475, %v3475
        %3540 = vst [vmem:[#allocation2 + $0x18] sm:$0xf] %v3476
        %3541 = vst [vmem:[#allocation2 + $0x24] sm:$0xf] %v3477
        %3542 = vst [vmem:[#allocation2 + $0x30] sm:$0xf] %v3478
        %3543 = vst [vmem:[#allocation2 + $0x3c] sm:$0xf] %v3479
        %3544 = vst [vmem:[#allocation2 + $0x48] sm:$0xf] %v3480
        %3545 = vst [vmem:[#allocation2 + $0x54] sm:$0xf] %v3481
        %3546 = vst [vmem:[#allocation2 + $0x60] sm:$0xf] %v3482
        %3547 = vst [vmem:[#allocation2 + $0x6c] sm:$0xf] %v3483
        %3548 = vst [vmem:[#allocation2 + $0x78] sm:$0xf] %v3484
        %3549 = vst [vmem:[#allocation2 + $0x84] sm:$0xf] %v3485
        %3550 = vst [vmem:[#allocation2 + $0x90] sm:$0xf] %v3486
        %3551 = vst [vmem:[#allocation2 + $0x9c] sm:$0xf] %v3487
        %3552 = vst [vmem:[#allocation2 + $0xa8] sm:$0xf] %v3488
        %3553 = vst [vmem:[#allocation2 + $0xb4] sm:$0xf] %v3489
        %3554 = vst [vmem:[#allocation2 + $0xc0] sm:$0xf] %v3490
        %3555 = vst [vmem:[#allocation2 + $0xcc] sm:$0xf] %v3491
        %3556 = vst [vmem:[#allocation2 + $0xd8] sm:$0xf] %v3492
        %3557 = vst [vmem:[#allocation2 + $0xe4] sm:$0xf] %v3493
        %3558 = vst [vmem:[#allocation2 + $0xf0] sm:$0xf] %v3494
        %3559 = vst [vmem:[#allocation2 + $0xfc] sm:$0xf] %v3495
        %3560 = vst [vmem:[#allocation2 + $0x108] sm:$0xf] %v3496
        %3561 = vst [vmem:[#allocation2 + $0x114] sm:$0xf] %v3497
        %3562 = vst [vmem:[#allocation2 + $0x120] sm:$0xf] %v3498
        %3563 = vst [vmem:[#allocation2 + $0x12c] sm:$0xf] %v3499
        %3564 = vst [vmem:[#allocation2 + $0x138] sm:$0xf] %v3500
        %3565 = vst [vmem:[#allocation2 + $0x144] sm:$0xf] %v3501
        %3566 = vst [vmem:[#allocation2 + $0x150] sm:$0xf] %v3502
        %3567 = vst [vmem:[#allocation2 + $0x15c] sm:$0xf] %v3503
        %3568 = vst [vmem:[#allocation2 + $0x168] sm:$0xf] %v3504
        %3569 = vst [vmem:[#allocation2 + $0x174] sm:$0xf] %v3505
        %3570 = vst [vmem:[#allocation2 + $0x180] sm:$0xf] %v3506
        %3571 = vst [vmem:[#allocation2 + $0x18c] sm:$0xf] %v3507
        %v3572 = vrot.slane %v3124, 1
        %v3573 = vrot.slane %v3125, 1
        %v3574 = vrot.slane %v3126, 1
        %v3575 = vrot.slane %v3127, 1
        %v3576 = vrot.slane %v3128, 1
        %v3577 = vrot.slane %v3129, 1
        %v3578 = vrot.slane %v3130, 1
        %v3579 = vrot.slane %v3131, 1
        %v3580 = vrot.slane %v3132, 1
        %v3581 = vrot.slane %v3133, 1
        %v3582 = vrot.slane %v3134, 1
        %v3583 = vrot.slane %v3135, 1
        %v3584 = vrot.slane %v3136, 1
        %v3585 = vrot.slane %v3137, 1
        %v3586 = vrot.slane %v3138, 1
        %v3587 = vrot.slane %v3139, 1
        %v3588 = vrot.slane %v3140, 1
        %v3589 = vrot.slane %v3141, 1
        %v3590 = vrot.slane %v3142, 1
        %v3591 = vrot.slane %v3143, 1
        %v3592 = vrot.slane %v3144, 1
        %v3593 = vrot.slane %v3145, 1
        %v3594 = vrot.slane %v3146, 1
        %v3595 = vrot.slane %v3147, 1
        %v3596 = vrot.slane %v3148, 1
        %v3597 = vrot.slane %v3149, 1
        %v3598 = vrot.slane %v3150, 1
        %v3599 = vrot.slane %v3151, 1
        %v3600 = vrot.slane %v3152, 1
        %v3601 = vrot.slane %v3153, 1
        %v3602 = vrot.slane %v3154, 1
        %v3603 = vrot.slane %v3155, 1
        %v3604 = vsel %vm622, %v3602, %v3603
        %v3605 = vsel %vm622, %v3601, %v3602
        %v3606 = vsel %vm622, %v3600, %v3601
        %v3607 = vsel %vm622, %v3599, %v3600
        %v3608 = vsel %vm622, %v3598, %v3599
        %v3609 = vsel %vm622, %v3597, %v3598
        %v3610 = vsel %vm622, %v3596, %v3597
        %v3611 = vsel %vm622, %v3595, %v3596
        %v3612 = vsel %vm622, %v3594, %v3595
        %v3613 = vsel %vm622, %v3593, %v3594
        %v3614 = vsel %vm622, %v3592, %v3593
        %v3615 = vsel %vm622, %v3591, %v3592
        %v3616 = vsel %vm622, %v3590, %v3591
        %v3617 = vsel %vm622, %v3589, %v3590
        %v3618 = vsel %vm622, %v3588, %v3589
        %v3619 = vsel %vm622, %v3587, %v3588
        %v3620 = vsel %vm622, %v3586, %v3587
        %v3621 = vsel %vm622, %v3585, %v3586
        %v3622 = vsel %vm622, %v3584, %v3585
        %v3623 = vsel %vm622, %v3583, %v3584
        %v3624 = vsel %vm622, %v3582, %v3583
        %v3625 = vsel %vm622, %v3581, %v3582
        %v3626 = vsel %vm622, %v3580, %v3581
        %v3627 = vsel %vm622, %v3579, %v3580
        %v3628 = vsel %vm622, %v3578, %v3579
        %v3629 = vsel %vm622, %v3577, %v3578
        %v3630 = vsel %vm622, %v3576, %v3577
        %v3631 = vsel %vm622, %v3575, %v3576
        %v3632 = vsel %vm622, %v3574, %v3575
        %v3633 = vsel %vm622, %v3573, %v3574
        %v3634 = vsel %vm622, %v3572, %v3573
        %v3635 = vsel %vm622, %v3603, %v3572
        %v3636 = vsel %vm655, %v3634, 0.0
        %v3637 = vsel %vm656, %v3633, 0.0
        %v3638 = vsel %vm655, %v3632, 0.0
        %v3639 = vsel %vm656, %v3631, 0.0
        %v3640 = vsel %vm655, %v3630, 0.0
        %v3641 = vsel %vm656, %v3629, 0.0
        %v3642 = vsel %vm655, %v3628, 0.0
        %v3643 = vsel %vm656, %v3627, 0.0
        %v3644 = vsel %vm655, %v3626, 0.0
        %v3645 = vsel %vm656, %v3625, 0.0
        %v3646 = vsel %vm655, %v3624, 0.0
        %v3647 = vsel %vm656, %v3623, 0.0
        %v3648 = vsel %vm655, %v3622, 0.0
        %v3649 = vsel %vm656, %v3621, 0.0
        %v3650 = vsel %vm655, %v3620, 0.0
        %v3651 = vsel %vm656, %v3619, 0.0
        %v3652 = vsel %vm655, %v3618, 0.0
        %v3653 = vsel %vm656, %v3617, 0.0
        %v3654 = vsel %vm655, %v3616, 0.0
        %v3655 = vsel %vm656, %v3615, 0.0
        %v3656 = vsel %vm655, %v3614, 0.0
        %v3657 = vsel %vm656, %v3613, 0.0
        %v3658 = vsel %vm655, %v3612, 0.0
        %v3659 = vsel %vm656, %v3611, 0.0
        %v3660 = vsel %vm655, %v3610, 0.0
        %v3661 = vsel %vm656, %v3609, 0.0
        %v3662 = vsel %vm655, %v3608, 0.0
        %v3663 = vsel %vm656, %v3607, 0.0
        %v3664 = vsel %vm655, %v3606, 0.0
        %v3665 = vsel %vm656, %v3605, 0.0
        %v3666 = vsel %vm655, %v3604, 0.0
        %v3667 = vsel %vm656, %v3635, 0.0
        %v3668 = vpack.c.bf16 %v3637, %v3636
        %v3669 = vpack.c.bf16 %v3639, %v3638
        %v3670 = vpack.c.bf16 %v3641, %v3640
        %v3671 = vpack.c.bf16 %v3643, %v3642
        %v3672 = vpack.c.bf16 %v3645, %v3644
        %v3673 = vpack.c.bf16 %v3647, %v3646
        %v3674 = vpack.c.bf16 %v3649, %v3648
        %v3675 = vpack.c.bf16 %v3651, %v3650
        %v3676 = vpack.c.bf16 %v3653, %v3652
        %v3677 = vpack.c.bf16 %v3655, %v3654
        %v3678 = vpack.c.bf16 %v3657, %v3656
        %v3679 = vpack.c.bf16 %v3659, %v3658
        %v3680 = vpack.c.bf16 %v3661, %v3660
        %v3681 = vpack.c.bf16 %v3663, %v3662
        %v3682 = vpack.c.bf16 %v3665, %v3664
        %v3683 = vpack.c.bf16 %v3667, %v3666
        %v3700 = vunpack.c.l.b16 %v3668
        %v3701 = vunpack.c.h.b16 %v3668
        %v3702 = vunpack.c.l.b16 %v3669
        %v3703 = vunpack.c.h.b16 %v3669
        %v3704 = vunpack.c.l.b16 %v3670
        %v3705 = vunpack.c.h.b16 %v3670
        %v3706 = vunpack.c.l.b16 %v3671
        %v3707 = vunpack.c.h.b16 %v3671
        %v3708 = vunpack.c.l.b16 %v3672
        %v3709 = vunpack.c.h.b16 %v3672
        %v3710 = vunpack.c.l.b16 %v3673
        %v3711 = vunpack.c.h.b16 %v3673
        %v3712 = vunpack.c.l.b16 %v3674
        %v3713 = vunpack.c.h.b16 %v3674
        %v3714 = vunpack.c.l.b16 %v3675
        %v3715 = vunpack.c.h.b16 %v3675
        %v3716 = vunpack.c.l.b16 %v3676
        %v3717 = vunpack.c.h.b16 %v3676
        %v3718 = vunpack.c.l.b16 %v3677
        %v3719 = vunpack.c.h.b16 %v3677
        %v3720 = vunpack.c.l.b16 %v3678
        %v3721 = vunpack.c.h.b16 %v3678
        %v3722 = vunpack.c.l.b16 %v3679
        %v3723 = vunpack.c.h.b16 %v3679
        %v3724 = vunpack.c.l.b16 %v3680
        %v3725 = vunpack.c.h.b16 %v3680
        %v3726 = vunpack.c.l.b16 %v3681
        %v3727 = vunpack.c.h.b16 %v3681
        %v3728 = vunpack.c.l.b16 %v3682
        %v3729 = vunpack.c.h.b16 %v3682
        %v3730 = vunpack.c.l.b16 %v3683
        %v3731 = vunpack.c.h.b16 %v3683
        %v3732 = vpack.c.b16 %v3700, %v3700
        %v3733 = vpack.c.b16 %v3701, %v3701
        %v3734 = vpack.c.b16 %v3702, %v3702
        %v3735 = vpack.c.b16 %v3703, %v3703
        %v3736 = vpack.c.b16 %v3704, %v3704
        %v3737 = vpack.c.b16 %v3705, %v3705
        %v3738 = vpack.c.b16 %v3706, %v3706
        %v3739 = vpack.c.b16 %v3707, %v3707
        %v3740 = vpack.c.b16 %v3708, %v3708
        %v3741 = vpack.c.b16 %v3709, %v3709
        %v3742 = vpack.c.b16 %v3710, %v3710
        %v3743 = vpack.c.b16 %v3711, %v3711
        %v3744 = vpack.c.b16 %v3712, %v3712
        %v3745 = vpack.c.b16 %v3713, %v3713
        %v3746 = vpack.c.b16 %v3714, %v3714
        %v3747 = vpack.c.b16 %v3715, %v3715
        %v3748 = vpack.c.b16 %v3716, %v3716
        %v3749 = vpack.c.b16 %v3717, %v3717
        %v3750 = vpack.c.b16 %v3718, %v3718
        %v3751 = vpack.c.b16 %v3719, %v3719
        %v3752 = vpack.c.b16 %v3720, %v3720
        %v3753 = vpack.c.b16 %v3721, %v3721
        %v3754 = vpack.c.b16 %v3722, %v3722
        %v3755 = vpack.c.b16 %v3723, %v3723
        %v3756 = vpack.c.b16 %v3724, %v3724
        %v3757 = vpack.c.b16 %v3725, %v3725
        %v3758 = vpack.c.b16 %v3726, %v3726
        %v3759 = vpack.c.b16 %v3727, %v3727
        %v3760 = vpack.c.b16 %v3728, %v3728
        %v3761 = vpack.c.b16 %v3729, %v3729
        %v3762 = vpack.c.b16 %v3730, %v3730
        %v3763 = vpack.c.b16 %v3731, %v3731
        %3796 = vst [vmem:[#allocation2 + $0x20] sm:$0xf] %v3732
        %3797 = vst [vmem:[#allocation2 + $0x2c] sm:$0xf] %v3733
        %3798 = vst [vmem:[#allocation2 + $0x38] sm:$0xf] %v3734
        %3799 = vst [vmem:[#allocation2 + $0x44] sm:$0xf] %v3735
        %3800 = vst [vmem:[#allocation2 + $0x50] sm:$0xf] %v3736
        %3801 = vst [vmem:[#allocation2 + $0x5c] sm:$0xf] %v3737
        %3802 = vst [vmem:[#allocation2 + $0x68] sm:$0xf] %v3738
        %3803 = vst [vmem:[#allocation2 + $0x74] sm:$0xf] %v3739
        %3804 = vst [vmem:[#allocation2 + $0x80] sm:$0xf] %v3740
        %3805 = vst [vmem:[#allocation2 + $0x8c] sm:$0xf] %v3741
        %3806 = vst [vmem:[#allocation2 + $0x98] sm:$0xf] %v3742
        %3807 = vst [vmem:[#allocation2 + $0xa4] sm:$0xf] %v3743
        %3808 = vst [vmem:[#allocation2 + $0xb0] sm:$0xf] %v3744
        %3809 = vst [vmem:[#allocation2 + $0xbc] sm:$0xf] %v3745
        %3810 = vst [vmem:[#allocation2 + $0xc8] sm:$0xf] %v3746
        %3811 = vst [vmem:[#allocation2 + $0xd4] sm:$0xf] %v3747
        %3812 = vst [vmem:[#allocation2 + $0xe0] sm:$0xf] %v3748
        %3813 = vst [vmem:[#allocation2 + $0xec] sm:$0xf] %v3749
        %3814 = vst [vmem:[#allocation2 + $0xf8] sm:$0xf] %v3750
        %3815 = vst [vmem:[#allocation2 + $0x104] sm:$0xf] %v3751
        %3816 = vst [vmem:[#allocation2 + $0x110] sm:$0xf] %v3752
        %3817 = vst [vmem:[#allocation2 + $0x11c] sm:$0xf] %v3753
        %3818 = vst [vmem:[#allocation2 + $0x128] sm:$0xf] %v3754
        %3819 = vst [vmem:[#allocation2 + $0x134] sm:$0xf] %v3755
        %3820 = vst [vmem:[#allocation2 + $0x140] sm:$0xf] %v3756
        %3821 = vst [vmem:[#allocation2 + $0x14c] sm:$0xf] %v3757
        %3822 = vst [vmem:[#allocation2 + $0x158] sm:$0xf] %v3758
        %3823 = vst [vmem:[#allocation2 + $0x164] sm:$0xf] %v3759
        %3824 = vst [vmem:[#allocation2 + $0x170] sm:$0xf] %v3760
        %3825 = vst [vmem:[#allocation2 + $0x17c] sm:$0xf] %v3761
        %3826 = vst [vmem:[#allocation2 + $0x188] sm:$0xf] %v3762
        %3827 = vst [vmem:[#allocation2 + $0x194] sm:$0xf] %v3763
        %v3828 = vld [vmem:[#allocation2] sm:$0xff]
        %v3829 = vld [vmem:[#allocation2 + $0x8] sm:$0xf]
        %v3830 = vld [vmem:[#allocation2 + $0xc] sm:$0xff]
        %v3831 = vld [vmem:[#allocation2 + $0x14] sm:$0xf]
        %v3832 = vld [vmem:[#allocation2 + $0x18] sm:$0xff]
        %v3833 = vld [vmem:[#allocation2 + $0x20] sm:$0xf]
        %v3834 = vld [vmem:[#allocation2 + $0x24] sm:$0xff]
        %v3835 = vld [vmem:[#allocation2 + $0x2c] sm:$0xf]
        %v3836 = vld [vmem:[#allocation2 + $0x30] sm:$0xff]
        %v3837 = vld [vmem:[#allocation2 + $0x38] sm:$0xf]
        %v3838 = vld [vmem:[#allocation2 + $0x3c] sm:$0xff]
        %v3839 = vld [vmem:[#allocation2 + $0x44] sm:$0xf]
        %v3840 = vld [vmem:[#allocation2 + $0x48] sm:$0xff]
        %v3841 = vld [vmem:[#allocation2 + $0x50] sm:$0xf]
        %v3842 = vld [vmem:[#allocation2 + $0x54] sm:$0xff]
        %v3843 = vld [vmem:[#allocation2 + $0x5c] sm:$0xf]
        %v3844 = vld [vmem:[#allocation2 + $0x60] sm:$0xff]
        %v3845 = vld [vmem:[#allocation2 + $0x68] sm:$0xf]
        %v3846 = vld [vmem:[#allocation2 + $0x6c] sm:$0xff]
        %v3847 = vld [vmem:[#allocation2 + $0x74] sm:$0xf]
        %v3848 = vld [vmem:[#allocation2 + $0x78] sm:$0xff]
        %v3849 = vld [vmem:[#allocation2 + $0x80] sm:$0xf]
        %v3850 = vld [vmem:[#allocation2 + $0x84] sm:$0xff]
        %v3851 = vld [vmem:[#allocation2 + $0x8c] sm:$0xf]
        %v3852 = vld [vmem:[#allocation2 + $0x90] sm:$0xff]
        %v3853 = vld [vmem:[#allocation2 + $0x98] sm:$0xf]
        %v3854 = vld [vmem:[#allocation2 + $0x9c] sm:$0xff]
        %v3855 = vld [vmem:[#allocation2 + $0xa4] sm:$0xf]
        %v3856 = vld [vmem:[#allocation2 + $0xa8] sm:$0xff]
        %v3857 = vld [vmem:[#allocation2 + $0xb0] sm:$0xf]
        %v3858 = vld [vmem:[#allocation2 + $0xb4] sm:$0xff]
        %v3859 = vld [vmem:[#allocation2 + $0xbc] sm:$0xf]
        %v3860 = vld [vmem:[#allocation2 + $0xc0] sm:$0xff]
        %v3861 = vld [vmem:[#allocation2 + $0xc8] sm:$0xf]
        %v3862 = vld [vmem:[#allocation2 + $0xcc] sm:$0xff]
        %v3863 = vld [vmem:[#allocation2 + $0xd4] sm:$0xf]
        %v3864 = vld [vmem:[#allocation2 + $0xd8] sm:$0xff]
        %v3865 = vld [vmem:[#allocation2 + $0xe0] sm:$0xf]
        %v3866 = vld [vmem:[#allocation2 + $0xe4] sm:$0xff]
        %v3867 = vld [vmem:[#allocation2 + $0xec] sm:$0xf]
        %v3868 = vld [vmem:[#allocation2 + $0xf0] sm:$0xff]
        %v3869 = vld [vmem:[#allocation2 + $0xf8] sm:$0xf]
        %v3870 = vld [vmem:[#allocation2 + $0xfc] sm:$0xff]
        %v3871 = vld [vmem:[#allocation2 + $0x104] sm:$0xf]
        %v3872 = vld [vmem:[#allocation2 + $0x108] sm:$0xff]
        %v3873 = vld [vmem:[#allocation2 + $0x110] sm:$0xf]
        %v3874 = vld [vmem:[#allocation2 + $0x114] sm:$0xff]
        %v3875 = vld [vmem:[#allocation2 + $0x11c] sm:$0xf]
        %v3876 = vld [vmem:[#allocation2 + $0x120] sm:$0xff]
        %v3877 = vld [vmem:[#allocation2 + $0x128] sm:$0xf]
        %v3878 = vld [vmem:[#allocation2 + $0x12c] sm:$0xff]
        %v3879 = vld [vmem:[#allocation2 + $0x134] sm:$0xf]
        %v3880 = vld [vmem:[#allocation2 + $0x138] sm:$0xff]
        %v3881 = vld [vmem:[#allocation2 + $0x140] sm:$0xf]
        %v3882 = vld [vmem:[#allocation2 + $0x144] sm:$0xff]
        %v3883 = vld [vmem:[#allocation2 + $0x14c] sm:$0xf]
        %v3884 = vld [vmem:[#allocation2 + $0x150] sm:$0xff]
        %v3885 = vld [vmem:[#allocation2 + $0x158] sm:$0xf]
        %v3886 = vld [vmem:[#allocation2 + $0x15c] sm:$0xff]
        %v3887 = vld [vmem:[#allocation2 + $0x164] sm:$0xf]
        %v3888 = vld [vmem:[#allocation2 + $0x168] sm:$0xff]
        %v3889 = vld [vmem:[#allocation2 + $0x170] sm:$0xf]
        %v3890 = vld [vmem:[#allocation2 + $0x174] sm:$0xff]
        %v3891 = vld [vmem:[#allocation2 + $0x17c] sm:$0xf]
        %v3892 = vld [vmem:[%s3] sm:$0xf]
        %v3893 = vld [vmem:[%s3 + $0x4] sm:$0xf]
        %v3894 = vld [vmem:[%s3 + $0x8] sm:$0xf]
        %v3895 = vld [vmem:[%s3 + $0xc] sm:$0xf]
        %v3896 = vld [vmem:[%s3 + $0x10] sm:$0xf]
        %v3897 = vld [vmem:[%s3 + $0x14] sm:$0xf]
        %v3898 = vld [vmem:[%s3 + $0x18] sm:$0xf]
        %v3899 = vld [vmem:[%s3 + $0x1c] sm:$0xf]
        %v3900 = vld [vmem:[%s3 + $0x20] sm:$0xf]
        %v3901 = vld [vmem:[%s3 + $0x24] sm:$0xf]
        %v3902 = vld [vmem:[%s3 + $0x28] sm:$0xf]
        %v3903 = vld [vmem:[%s3 + $0x2c] sm:$0xf]
        %v3904 = vld [vmem:[%s3 + $0x30] sm:$0xf]
        %v3905 = vld [vmem:[%s3 + $0x34] sm:$0xf]
        %v3906 = vld [vmem:[%s3 + $0x38] sm:$0xf]
        %v3907 = vld [vmem:[%s3 + $0x3c] sm:$0xf]
        %v3908 = vld [vmem:[%s3 + $0x40] sm:$0xf]
        %v3909 = vld [vmem:[%s3 + $0x44] sm:$0xf]
        %v3910 = vld [vmem:[%s3 + $0x48] sm:$0xf]
        %v3911 = vld [vmem:[%s3 + $0x4c] sm:$0xf]
        %v3912 = vld [vmem:[%s3 + $0x50] sm:$0xf]
        %v3913 = vld [vmem:[%s3 + $0x54] sm:$0xf]
        %v3914 = vld [vmem:[%s3 + $0x58] sm:$0xf]
        %v3915 = vld [vmem:[%s3 + $0x5c] sm:$0xf]
        %v3916 = vld [vmem:[%s3 + $0x60] sm:$0xf]
        %v3917 = vld [vmem:[%s3 + $0x64] sm:$0xf]
        %v3918 = vld [vmem:[%s3 + $0x68] sm:$0xf]
        %v3919 = vld [vmem:[%s3 + $0x6c] sm:$0xf]
        %v3920 = vld [vmem:[%s3 + $0x70] sm:$0xf]
        %v3921 = vld [vmem:[%s3 + $0x74] sm:$0xf]
        %v3922 = vld [vmem:[%s3 + $0x78] sm:$0xf]
        %v3923 = vld [vmem:[%s3 + $0x7c] sm:$0xf]
        %v3924 = vld [vmem:[%s3 + $0x80] sm:$0xf]
        %v3925 = vld [vmem:[%s3 + $0x84] sm:$0xf]
        %v3926 = vld [vmem:[%s3 + $0x88] sm:$0xf]
        %v3927 = vld [vmem:[%s3 + $0x8c] sm:$0xf]
        %v3928 = vld [vmem:[%s3 + $0x90] sm:$0xf]
        %v3929 = vld [vmem:[%s3 + $0x94] sm:$0xf]
        %v3930 = vld [vmem:[%s3 + $0x98] sm:$0xf]
        %v3931 = vld [vmem:[%s3 + $0x9c] sm:$0xf]
        %v3932 = vld [vmem:[%s3 + $0xa0] sm:$0xf]
        %v3933 = vld [vmem:[%s3 + $0xa4] sm:$0xf]
        %v3934 = vld [vmem:[%s3 + $0xa8] sm:$0xf]
        %v3935 = vld [vmem:[%s3 + $0xac] sm:$0xf]
        %v3936 = vld [vmem:[%s3 + $0xb0] sm:$0xf]
        %v3937 = vld [vmem:[%s3 + $0xb4] sm:$0xf]
        %v3938 = vld [vmem:[%s3 + $0xb8] sm:$0xf]
        %v3939 = vld [vmem:[%s3 + $0xbc] sm:$0xf]
        %v3940 = vld [vmem:[#allocation2 + $0x180] sm:$0xff]
        %v3941 = vld [vmem:[#allocation2 + $0x188] sm:$0xf]
        %v3942 = vld [vmem:[#allocation2 + $0x18c] sm:$0xff]
        %v3943 = vld [vmem:[#allocation2 + $0x194] sm:$0xf]
        %s3944 = scalar_lea.vmem %s3, 192
        %v3945 = vld [vmem:[%s3944] sm:$0xf]
        %v3946 = vld [vmem:[%s3944 + $0x4] sm:$0xf]
        %v3947 = vld [vmem:[%s3944 + $0x8] sm:$0xf]
        %v3948 = vld [vmem:[%s3944 + $0xc] sm:$0xf]
        %v3949 = vld [vmem:[%s3944 + $0x10] sm:$0xf]
        %v3950 = vld [vmem:[%s3944 + $0x14] sm:$0xf]
        %v3951 = vld [vmem:[%s3944 + $0x18] sm:$0xf]
        %v3952 = vld [vmem:[%s3944 + $0x1c] sm:$0xf]
        %v3953 = vld [vmem:[%s3944 + $0x20] sm:$0xf]
        %v3954 = vld [vmem:[%s3944 + $0x24] sm:$0xf]
        %v3955 = vld [vmem:[%s3944 + $0x28] sm:$0xf]
        %v3956 = vld [vmem:[%s3944 + $0x2c] sm:$0xf]
        %v3957 = vld [vmem:[%s3944 + $0x30] sm:$0xf]
        %v3958 = vld [vmem:[%s3944 + $0x34] sm:$0xf]
        %v3959 = vld [vmem:[%s3944 + $0x38] sm:$0xf]
        %v3960 = vld [vmem:[%s3944 + $0x3c] sm:$0xf]
        %v3961 = vld [vmem:[%s3944 + $0x40] sm:$0xf]
        %v3962 = vld [vmem:[%s3944 + $0x44] sm:$0xf]
        %v3963 = vld [vmem:[%s3944 + $0x48] sm:$0xf]
        %v3964 = vld [vmem:[%s3944 + $0x4c] sm:$0xf]
        %v3965 = vld [vmem:[%s3944 + $0x50] sm:$0xf]
        %v3966 = vld [vmem:[%s3944 + $0x54] sm:$0xf]
        %v3967 = vld [vmem:[%s3944 + $0x58] sm:$0xf]
        %v3968 = vld [vmem:[%s3944 + $0x5c] sm:$0xf]
        %v3969 = vld [vmem:[%s3944 + $0x60] sm:$0xf]
        %v3970 = vld [vmem:[%s3944 + $0x64] sm:$0xf]
        %v3971 = vld [vmem:[%s3944 + $0x68] sm:$0xf]
        %v3972 = vld [vmem:[%s3944 + $0x6c] sm:$0xf]
        %v3973 = vld [vmem:[%s3944 + $0x70] sm:$0xf]
        %v3974 = vld [vmem:[%s3944 + $0x74] sm:$0xf]
        %v3975 = vld [vmem:[%s3944 + $0x78] sm:$0xf]
        %v3976 = vld [vmem:[%s3944 + $0x7c] sm:$0xf]
        %v3977 = vld [vmem:[%s3944 + $0x80] sm:$0xf]
        %v3978 = vld [vmem:[%s3944 + $0x84] sm:$0xf]
        %v3979 = vld [vmem:[%s3944 + $0x88] sm:$0xf]
        %v3980 = vld [vmem:[%s3944 + $0x8c] sm:$0xf]
        %v3981 = vld [vmem:[%s3944 + $0x90] sm:$0xf]
        %v3982 = vld [vmem:[%s3944 + $0x94] sm:$0xf]
        %v3983 = vld [vmem:[%s3944 + $0x98] sm:$0xf]
        %v3984 = vld [vmem:[%s3944 + $0x9c] sm:$0xf]
        %v3985 = vld [vmem:[%s3944 + $0xa0] sm:$0xf]
        %v3986 = vld [vmem:[%s3944 + $0xa4] sm:$0xf]
        %v3987 = vld [vmem:[%s3944 + $0xa8] sm:$0xf]
        %v3988 = vld [vmem:[%s3944 + $0xac] sm:$0xf]
        %v3989 = vld [vmem:[%s3944 + $0xb0] sm:$0xf]
        %v3990 = vld [vmem:[%s3944 + $0xb4] sm:$0xf]
        %v3991 = vld [vmem:[%s3944 + $0xb8] sm:$0xf]
        %v3992 = vld [vmem:[%s3944 + $0xbc] sm:$0xf]
        %v4057 = vunpack.c.l.b16 %v3832
        %v4058 = vunpack.c.h.b16 %v3832
        %v4059 = vunpack.c.l.b16 %v3833
        %v4060 = vunpack.c.l.b16 %v3834
        %v4061 = vunpack.c.h.b16 %v3834
        %v4062 = vunpack.c.l.b16 %v3835
        %v4063 = vunpack.c.l.b16 %v3836
        %v4064 = vunpack.c.h.b16 %v3836
        %v4065 = vunpack.c.l.b16 %v3837
        %v4066 = vunpack.c.l.b16 %v3838
        %v4067 = vunpack.c.h.b16 %v3838
        %v4068 = vunpack.c.l.b16 %v3839
        %v4069 = vunpack.c.l.b16 %v3840
        %v4070 = vunpack.c.h.b16 %v3840
        %v4071 = vunpack.c.l.b16 %v3841
        %v4072 = vunpack.c.l.b16 %v3842
        %v4073 = vunpack.c.h.b16 %v3842
        %v4074 = vunpack.c.l.b16 %v3843
        %v4075 = vunpack.c.l.b16 %v3844
        %v4076 = vunpack.c.h.b16 %v3844
        %v4077 = vunpack.c.l.b16 %v3845
        %v4078 = vunpack.c.l.b16 %v3846
        %v4079 = vunpack.c.h.b16 %v3846
        %v4080 = vunpack.c.l.b16 %v3847
        %v4081 = vunpack.c.l.b16 %v3848
        %v4082 = vunpack.c.h.b16 %v3848
        %v4083 = vunpack.c.l.b16 %v3849
        %v4084 = vunpack.c.l.b16 %v3850
        %v4085 = vunpack.c.h.b16 %v3850
        %v4086 = vunpack.c.l.b16 %v3851
        %v4087 = vunpack.c.l.b16 %v3852
        %v4088 = vunpack.c.h.b16 %v3852
        %v4089 = vunpack.c.l.b16 %v3853
        %v4090 = vunpack.c.l.b16 %v3854
        %v4091 = vunpack.c.h.b16 %v3854
        %v4092 = vunpack.c.l.b16 %v3855
        %v4093 = vunpack.c.l.b16 %v3856
        %v4094 = vunpack.c.h.b16 %v3856
        %v4095 = vunpack.c.l.b16 %v3857
        %v4096 = vunpack.c.l.b16 %v3858
        %v4097 = vunpack.c.h.b16 %v3858
        %v4098 = vunpack.c.l.b16 %v3859
        %v4099 = vunpack.c.l.b16 %v3860
        %v4100 = vunpack.c.h.b16 %v3860
        %v4101 = vunpack.c.l.b16 %v3861
        %v4102 = vunpack.c.l.b16 %v3862
        %v4103 = vunpack.c.h.b16 %v3862
        %v4104 = vunpack.c.l.b16 %v3863
        %v4105 = vunpack.c.l.b16 %v3864
        %v4106 = vunpack.c.h.b16 %v3864
        %v4107 = vunpack.c.l.b16 %v3865
        %v4108 = vunpack.c.l.b16 %v3866
        %v4109 = vunpack.c.h.b16 %v3866
        %v4110 = vunpack.c.l.b16 %v3867
        %v4111 = vunpack.c.l.b16 %v3868
        %v4112 = vunpack.c.h.b16 %v3868
        %v4113 = vunpack.c.l.b16 %v3869
        %v4114 = vunpack.c.l.b16 %v3870
        %v4115 = vunpack.c.h.b16 %v3870
        %v4116 = vunpack.c.l.b16 %v3871
        %v4117 = vunpack.c.l.b16 %v3872
        %v4118 = vunpack.c.h.b16 %v3872
        %v4119 = vunpack.c.l.b16 %v3873
        %v4120 = vunpack.c.l.b16 %v3874
        %v4121 = vunpack.c.h.b16 %v3874
        %v4122 = vunpack.c.l.b16 %v3875
        %v4123 = vunpack.c.l.b16 %v3876
        %v4124 = vunpack.c.h.b16 %v3876
        %v4125 = vunpack.c.l.b16 %v3877
        %v4126 = vunpack.c.l.b16 %v3878
        %v4127 = vunpack.c.h.b16 %v3878
        %v4128 = vunpack.c.l.b16 %v3879
        %v4129 = vunpack.c.l.b16 %v3880
        %v4130 = vunpack.c.h.b16 %v3880
        %v4131 = vunpack.c.l.b16 %v3881
        %v4132 = vunpack.c.l.b16 %v3882
        %v4133 = vunpack.c.h.b16 %v3882
        %v4134 = vunpack.c.l.b16 %v3883
        %v4135 = vunpack.c.l.b16 %v3884
        %v4136 = vunpack.c.h.b16 %v3884
        %v4137 = vunpack.c.l.b16 %v3885
        %v4138 = vunpack.c.l.b16 %v3886
        %v4139 = vunpack.c.h.b16 %v3886
        %v4140 = vunpack.c.l.b16 %v3887
        %v4141 = vunpack.c.l.b16 %v3888
        %v4142 = vunpack.c.h.b16 %v3888
        %v4143 = vunpack.c.l.b16 %v3889
        %v4144 = vunpack.c.l.b16 %v3890
        %v4145 = vunpack.c.h.b16 %v3890
        %v4146 = vunpack.c.l.b16 %v3891
        %v4147 = vunpack.c.l.b16 %v3940
        %v4148 = vunpack.c.h.b16 %v3940
        %v4149 = vunpack.c.l.b16 %v3941
        %v4150 = vunpack.c.l.b16 %v3942
        %v4151 = vunpack.c.h.b16 %v3942
        %v4152 = vunpack.c.l.b16 %v3943
        %v4153 = vpack.c.b16 %v4060, %v4057
        %v4154 = vpack.c.b16 %v4061, %v4058
        %v4155 = vpack.c.b16 %v4062, %v4059
        %v4156 = vpack.c.b16 %v4066, %v4063
        %v4157 = vpack.c.b16 %v4067, %v4064
        %v4158 = vpack.c.b16 %v4068, %v4065
        %v4159 = vpack.c.b16 %v4072, %v4069
        %v4160 = vpack.c.b16 %v4073, %v4070
        %v4161 = vpack.c.b16 %v4074, %v4071
        %v4162 = vpack.c.b16 %v4078, %v4075
        %v4163 = vpack.c.b16 %v4079, %v4076
        %v4164 = vpack.c.b16 %v4080, %v4077
        %v4165 = vpack.c.b16 %v4084, %v4081
        %v4166 = vpack.c.b16 %v4085, %v4082
        %v4167 = vpack.c.b16 %v4086, %v4083
        %v4168 = vpack.c.b16 %v4090, %v4087
        %v4169 = vpack.c.b16 %v4091, %v4088
        %v4170 = vpack.c.b16 %v4092, %v4089
        %v4171 = vpack.c.b16 %v4096, %v4093
        %v4172 = vpack.c.b16 %v4097, %v4094
        %v4173 = vpack.c.b16 %v4098, %v4095
        %v4174 = vpack.c.b16 %v4102, %v4099
        %v4175 = vpack.c.b16 %v4103, %v4100
        %v4176 = vpack.c.b16 %v4104, %v4101
        %v4177 = vpack.c.b16 %v4108, %v4105
        %v4178 = vpack.c.b16 %v4109, %v4106
        %v4179 = vpack.c.b16 %v4110, %v4107
        %v4180 = vpack.c.b16 %v4114, %v4111
        %v4181 = vpack.c.b16 %v4115, %v4112
        %v4182 = vpack.c.b16 %v4116, %v4113
        %v4183 = vpack.c.b16 %v4120, %v4117
        %v4184 = vpack.c.b16 %v4121, %v4118
        %v4185 = vpack.c.b16 %v4122, %v4119
        %v4186 = vpack.c.b16 %v4126, %v4123
        %v4187 = vpack.c.b16 %v4127, %v4124
        %v4188 = vpack.c.b16 %v4128, %v4125
        %v4189 = vpack.c.b16 %v4132, %v4129
        %v4190 = vpack.c.b16 %v4133, %v4130
        %v4191 = vpack.c.b16 %v4134, %v4131
        %v4192 = vpack.c.b16 %v4138, %v4135
        %v4193 = vpack.c.b16 %v4139, %v4136
        %v4194 = vpack.c.b16 %v4140, %v4137
        %v4195 = vpack.c.b16 %v4144, %v4141
        %v4196 = vpack.c.b16 %v4145, %v4142
        %v4197 = vpack.c.b16 %v4146, %v4143
        %v4198 = vpack.c.b16 %v4150, %v4147
        %v4199 = vpack.c.b16 %v4151, %v4148
        %v4200 = vpack.c.b16 %v4152, %v4149
        %v4297 = vunpack.c.l.b16 %v3945
        %v4298 = vunpack.c.l.b16 %v3946
        %v4299 = vunpack.c.l.b16 %v3947
        %v4300 = vunpack.c.l.b16 %v3948
        %v4301 = vunpack.c.l.b16 %v3949
        %v4302 = vunpack.c.l.b16 %v3950
        %v4303 = vunpack.c.l.b16 %v3951
        %v4304 = vunpack.c.l.b16 %v3952
        %v4305 = vunpack.c.l.b16 %v3953
        %v4306 = vunpack.c.l.b16 %v3954
        %v4307 = vunpack.c.l.b16 %v3955
        %v4308 = vunpack.c.l.b16 %v3956
        %v4309 = vunpack.c.l.b16 %v3957
        %v4310 = vunpack.c.l.b16 %v3958
        %v4311 = vunpack.c.l.b16 %v3959
        %v4312 = vunpack.c.l.b16 %v3960
        %v4313 = vunpack.c.l.b16 %v3961
        %v4314 = vunpack.c.l.b16 %v3962
        %v4315 = vunpack.c.l.b16 %v3963
        %v4316 = vunpack.c.l.b16 %v3964
        %v4317 = vunpack.c.l.b16 %v3965
        %v4318 = vunpack.c.l.b16 %v3966
        %v4319 = vunpack.c.l.b16 %v3967
        %v4320 = vunpack.c.l.b16 %v3968
        %v4321 = vunpack.c.l.b16 %v3969
        %v4322 = vunpack.c.l.b16 %v3970
        %v4323 = vunpack.c.l.b16 %v3971
        %v4324 = vunpack.c.l.b16 %v3972
        %v4325 = vunpack.c.l.b16 %v3973
        %v4326 = vunpack.c.l.b16 %v3974
        %v4327 = vunpack.c.l.b16 %v3975
        %v4328 = vunpack.c.l.b16 %v3976
        %v4329 = vunpack.c.l.b16 %v3977
        %v4330 = vunpack.c.l.b16 %v3978
        %v4331 = vunpack.c.l.b16 %v3979
        %v4332 = vunpack.c.l.b16 %v3980
        %v4333 = vunpack.c.l.b16 %v3981
        %v4334 = vunpack.c.l.b16 %v3982
        %v4335 = vunpack.c.l.b16 %v3983
        %v4336 = vunpack.c.l.b16 %v3984
        %v4337 = vunpack.c.l.b16 %v3985
        %v4338 = vunpack.c.l.b16 %v3986
        %v4339 = vunpack.c.l.b16 %v3987
        %v4340 = vunpack.c.l.b16 %v3988
        %v4341 = vunpack.c.l.b16 %v3989
        %v4342 = vunpack.c.l.b16 %v3990
        %v4343 = vunpack.c.l.b16 %v3991
        %v4344 = vunpack.c.l.b16 %v3992
        %v4345 = vpack.c.b16 %v4298, %v4297
        %v4346 = vpack.c.b16 %v4300, %v4299
        %v4347 = vpack.c.b16 %v4302, %v4301
        %v4348 = vpack.c.b16 %v4304, %v4303
        %v4349 = vpack.c.b16 %v4306, %v4305
        %v4350 = vpack.c.b16 %v4308, %v4307
        %v4351 = vpack.c.b16 %v4310, %v4309
        %v4352 = vpack.c.b16 %v4312, %v4311
        %v4353 = vpack.c.b16 %v4314, %v4313
        %v4354 = vpack.c.b16 %v4316, %v4315
        %v4355 = vpack.c.b16 %v4318, %v4317
        %v4356 = vpack.c.b16 %v4320, %v4319
        %v4357 = vpack.c.b16 %v4322, %v4321
        %v4358 = vpack.c.b16 %v4324, %v4323
        %v4359 = vpack.c.b16 %v4326, %v4325
        %v4360 = vpack.c.b16 %v4328, %v4327
        %v4361 = vpack.c.b16 %v4330, %v4329
        %v4362 = vpack.c.b16 %v4332, %v4331
        %v4363 = vpack.c.b16 %v4334, %v4333
        %v4364 = vpack.c.b16 %v4336, %v4335
        %v4365 = vpack.c.b16 %v4338, %v4337
        %v4366 = vpack.c.b16 %v4340, %v4339
        %v4367 = vpack.c.b16 %v4342, %v4341
        %v4368 = vpack.c.b16 %v4344, %v4343
        %4393 = vmatprep.subr.bf16.mxu0 0
        %4394 = vmatpush1.bf16.msra.mxu0 %v4352
        %4395 = vmatprep.subr.bf16.mxu0 0
        %4396 = vmatpush1.bf16.msra.mxu0 %v4351
        %4397 = vmatprep.subr.bf16.mxu0 0
        %4398 = vmatpush1.bf16.msra.mxu0 %v4350
        %4399 = vmatprep.subr.bf16.mxu0 0
        %4400 = vmatpush1.bf16.msra.mxu0 %v4349
        %4401 = vmatprep.subr.bf16.mxu0 0
        %4402 = vmatpush1.bf16.msra.mxu0 %v4348
        %4403 = vmatprep.subr.bf16.mxu0 0
        %4404 = vmatpush1.bf16.msra.mxu0 %v4347
        %4405 = vmatprep.subr.bf16.mxu0 0
        %4406 = vmatpush1.bf16.msra.mxu0 %v4346
        %4407 = vmatprep.subr.bf16.mxu0 0
        %4408 = vmatpush1.bf16.msra.mxu0 %v4345
        %4409 = vmatprep.subr.bf16.mxu0 0
        %4410 = vmatpush2.bf16.msra.mxu0 %v4360
        %4411 = vmatprep.subr.bf16.mxu0 0
        %4412 = vmatpush2.bf16.msra.mxu0 %v4359
        %4413 = vmatprep.subr.bf16.mxu0 0
        %4414 = vmatpush2.bf16.msra.mxu0 %v4358
        %4415 = vmatprep.subr.bf16.mxu0 0
        %4416 = vmatpush2.bf16.msra.mxu0 %v4357
        %4417 = vmatprep.subr.bf16.mxu0 0
        %4418 = vmatpush2.bf16.msra.mxu0 %v4356
        %4419 = vmatprep.subr.bf16.mxu0 0
        %4420 = vmatpush2.bf16.msra.mxu0 %v4355
        %4421 = vmatprep.subr.bf16.mxu0 0
        %4422 = vmatpush2.bf16.msra.mxu0 %v4354
        %4423 = vmatprep.subr.bf16.mxu0 0
        %4424 = vmatpush2.bf16.msra.mxu0 %v4353
        %4425 = vmatprep.mubr.bf16.mxu0 %v4154
        %4426 = vmatmul.mubr.bf16.gmra.mxu0 %v4153
        %v4427 = vpop.f32.mrf.mxu0
        %v4428 = vadd.f32 0.0, %v4427
        %v4429 = vpop.f32.mrf.mxu0
        %v4430 = vpop.f32.mrf.mxu0
        %v4431 = vadd.f32 0.0, %v4430
        %v4432 = vpop.f32.mrf.mxu0
        %4433 = vmatprep.mubr.bf16.mxu0 %v4157
        %4434 = vmatmul.mubr.bf16.gmra.mxu0 %v4156
        %v4435 = vpop.f32.mrf.mxu0
        %v4436 = vadd.f32 0.0, %v4435
        %v4437 = vpop.f32.mrf.mxu0
        %v4438 = vpop.f32.mrf.mxu0
        %v4439 = vadd.f32 0.0, %v4438
        %v4440 = vpop.f32.mrf.mxu0
        %4441 = vmatprep.mubr.bf16.mxu0 %v4160
        %4442 = vmatmul.mubr.bf16.gmra.mxu0 %v4159
        %v4443 = vpop.f32.mrf.mxu0
        %v4444 = vadd.f32 0.0, %v4443
        %v4445 = vpop.f32.mrf.mxu0
        %v4446 = vpop.f32.mrf.mxu0
        %v4447 = vadd.f32 0.0, %v4446
        %v4448 = vpop.f32.mrf.mxu0
        %4449 = vmatprep.mubr.bf16.mxu0 %v4163
        %4450 = vmatmul.mubr.bf16.gmra.mxu0 %v4162
        %v4451 = vpop.f32.mrf.mxu0
        %v4452 = vadd.f32 0.0, %v4451
        %v4453 = vpop.f32.mrf.mxu0
        %v4454 = vpop.f32.mrf.mxu0
        %v4455 = vadd.f32 0.0, %v4454
        %v4456 = vpop.f32.mrf.mxu0
        %4457 = vmatprep.mubr.bf16.mxu0 %v4166
        %4458 = vmatmul.mubr.bf16.gmra.mxu0 %v4165
        %v4459 = vpop.f32.mrf.mxu0
        %v4460 = vadd.f32 0.0, %v4459
        %v4461 = vpop.f32.mrf.mxu0
        %v4462 = vpop.f32.mrf.mxu0
        %v4463 = vadd.f32 0.0, %v4462
        %v4464 = vpop.f32.mrf.mxu0
        %4465 = vmatprep.mubr.bf16.mxu0 %v4169
        %4466 = vmatmul.mubr.bf16.gmra.mxu0 %v4168
        %v4467 = vpop.f32.mrf.mxu0
        %v4468 = vadd.f32 0.0, %v4467
        %v4469 = vpop.f32.mrf.mxu0
        %v4470 = vpop.f32.mrf.mxu0
        %v4471 = vadd.f32 0.0, %v4470
        %v4472 = vpop.f32.mrf.mxu0
        %4473 = vmatprep.mubr.bf16.mxu0 %v4172
        %4474 = vmatmul.mubr.bf16.gmra.mxu0 %v4171
        %v4475 = vpop.f32.mrf.mxu0
        %v4476 = vadd.f32 0.0, %v4475
        %v4477 = vpop.f32.mrf.mxu0
        %v4478 = vpop.f32.mrf.mxu0
        %v4479 = vadd.f32 0.0, %v4478
        %v4480 = vpop.f32.mrf.mxu0
        %4481 = vmatprep.mubr.bf16.mxu0 %v4175
        %4482 = vmatmul.mubr.bf16.gmra.mxu0 %v4174
        %v4483 = vpop.f32.mrf.mxu0
        %v4484 = vadd.f32 0.0, %v4483
        %v4485 = vpop.f32.mrf.mxu0
        %v4486 = vpop.f32.mrf.mxu0
        %v4487 = vadd.f32 0.0, %v4486
        %v4488 = vpop.f32.mrf.mxu0
        %4489 = vmatprep.mubr.bf16.mxu0 %v4178
        %4490 = vmatmul.mubr.bf16.gmra.mxu0 %v4177
        %v4491 = vpop.f32.mrf.mxu0
        %v4492 = vadd.f32 0.0, %v4491
        %v4493 = vpop.f32.mrf.mxu0
        %v4494 = vpop.f32.mrf.mxu0
        %v4495 = vadd.f32 0.0, %v4494
        %v4496 = vpop.f32.mrf.mxu0
        %4497 = vmatprep.mubr.bf16.mxu0 %v4181
        %4498 = vmatmul.mubr.bf16.gmra.mxu0 %v4180
        %v4499 = vpop.f32.mrf.mxu0
        %v4500 = vadd.f32 0.0, %v4499
        %v4501 = vpop.f32.mrf.mxu0
        %v4502 = vpop.f32.mrf.mxu0
        %v4503 = vadd.f32 0.0, %v4502
        %v4504 = vpop.f32.mrf.mxu0
        %4505 = vmatprep.mubr.bf16.mxu0 %v4184
        %4506 = vmatmul.mubr.bf16.gmra.mxu0 %v4183
        %v4507 = vpop.f32.mrf.mxu0
        %v4508 = vadd.f32 0.0, %v4507
        %v4509 = vpop.f32.mrf.mxu0
        %v4510 = vpop.f32.mrf.mxu0
        %v4511 = vadd.f32 0.0, %v4510
        %v4512 = vpop.f32.mrf.mxu0
        %4513 = vmatprep.mubr.bf16.mxu0 %v4187
        %4514 = vmatmul.mubr.bf16.gmra.mxu0 %v4186
        %v4515 = vpop.f32.mrf.mxu0
        %v4516 = vadd.f32 0.0, %v4515
        %v4517 = vpop.f32.mrf.mxu0
        %v4518 = vpop.f32.mrf.mxu0
        %v4519 = vadd.f32 0.0, %v4518
        %v4520 = vpop.f32.mrf.mxu0
        %4521 = vmatprep.mubr.bf16.mxu0 %v4190
        %4522 = vmatmul.mubr.bf16.gmra.mxu0 %v4189
        %v4523 = vpop.f32.mrf.mxu0
        %v4524 = vadd.f32 0.0, %v4523
        %v4525 = vpop.f32.mrf.mxu0
        %v4526 = vpop.f32.mrf.mxu0
        %v4527 = vadd.f32 0.0, %v4526
        %v4528 = vpop.f32.mrf.mxu0
        %4529 = vmatprep.mubr.bf16.mxu0 %v4193
        %4530 = vmatmul.mubr.bf16.gmra.mxu0 %v4192
        %v4531 = vpop.f32.mrf.mxu0
        %v4532 = vadd.f32 0.0, %v4531
        %v4533 = vpop.f32.mrf.mxu0
        %v4534 = vpop.f32.mrf.mxu0
        %v4535 = vadd.f32 0.0, %v4534
        %v4536 = vpop.f32.mrf.mxu0
        %4537 = vmatprep.mubr.bf16.mxu0 %v4196
        %4538 = vmatmul.mubr.bf16.gmra.mxu0 %v4195
        %v4539 = vpop.f32.mrf.mxu0
        %v4540 = vadd.f32 0.0, %v4539
        %v4541 = vpop.f32.mrf.mxu0
        %v4542 = vpop.f32.mrf.mxu0
        %v4543 = vadd.f32 0.0, %v4542
        %v4544 = vpop.f32.mrf.mxu0
        %4545 = vmatprep.mubr.bf16.mxu0 %v4199
        %4546 = vmatmul.mubr.bf16.gmra.mxu0 %v4198
        %v4547 = vpop.f32.mrf.mxu0
        %v4548 = vadd.f32 0.0, %v4547
        %v4549 = vpop.f32.mrf.mxu0
        %v4550 = vpop.f32.mrf.mxu0
        %v4551 = vadd.f32 0.0, %v4550
        %v4552 = vpop.f32.mrf.mxu0
        %4553 = vdwg.mxu0
        %4554 = vmatprep.subr.bf16.mxu0 0
        %4555 = vmatpush1.bf16.msra.mxu0 %v4368
        %4556 = vmatprep.subr.bf16.mxu0 0
        %4557 = vmatpush1.bf16.msra.mxu0 %v4367
        %4558 = vmatprep.subr.bf16.mxu0 0
        %4559 = vmatpush1.bf16.msra.mxu0 %v4366
        %4560 = vmatprep.subr.bf16.mxu0 0
        %4561 = vmatpush1.bf16.msra.mxu0 %v4365
        %4562 = vmatprep.subr.bf16.mxu0 0
        %4563 = vmatpush1.bf16.msra.mxu0 %v4364
        %4564 = vmatprep.subr.bf16.mxu0 0
        %4565 = vmatpush1.bf16.msra.mxu0 %v4363
        %4566 = vmatprep.subr.bf16.mxu0 0
        %4567 = vmatpush1.bf16.msra.mxu0 %v4362
        %4568 = vmatprep.subr.bf16.mxu0 0
        %4569 = vmatpush1.bf16.msra.mxu0 %v4361
        %4570 = vmatprep.subr.bf16.mxu0 0
        %4571 = vmatpush2.bf16.msra.mxu0 0
        %4572 = vmatprep.subr.bf16.mxu0 0
        %4573 = vmatpush2.bf16.msra.mxu0 0
        %4574 = vmatprep.subr.bf16.mxu0 0
        %4575 = vmatpush2.bf16.msra.mxu0 0
        %4576 = vmatprep.subr.bf16.mxu0 0
        %4577 = vmatpush2.bf16.msra.mxu0 0
        %4578 = vmatprep.subr.bf16.mxu0 0
        %4579 = vmatpush2.bf16.msra.mxu0 0
        %4580 = vmatprep.subr.bf16.mxu0 0
        %4581 = vmatpush2.bf16.msra.mxu0 0
        %4582 = vmatprep.subr.bf16.mxu0 0
        %4583 = vmatpush2.bf16.msra.mxu0 0
        %4584 = vmatprep.subr.bf16.mxu0 0
        %4585 = vmatpush2.bf16.msra.mxu0 0
        %4586 = vmatprep.mubr.bf16.mxu0 0
        %4587 = vmatmul.mubr.bf16.gmra.mxu0 %v4155
        %v4588 = vpop.f32.mrf.mxu0
        %v4589 = vadd.f32 %v4428, %v4588
        %v4590 = vpop.f32.mrf.mxu0
        %v4591 = vpop.f32.mrf.mxu0
        %v4592 = vadd.f32 %v4431, %v4591
        %v4593 = vpop.f32.mrf.mxu0
        %4594 = vmatprep.mubr.bf16.mxu0 0
        %4595 = vmatmul.mubr.bf16.gmra.mxu0 %v4158
        %v4596 = vpop.f32.mrf.mxu0
        %v4597 = vadd.f32 %v4436, %v4596
        %v4598 = vpop.f32.mrf.mxu0
        %v4599 = vpop.f32.mrf.mxu0
        %v4600 = vadd.f32 %v4439, %v4599
        %v4601 = vpop.f32.mrf.mxu0
        %4602 = vmatprep.mubr.bf16.mxu0 0
        %4603 = vmatmul.mubr.bf16.gmra.mxu0 %v4161
        %v4604 = vpop.f32.mrf.mxu0
        %v4605 = vadd.f32 %v4444, %v4604
        %v4606 = vpop.f32.mrf.mxu0
        %v4607 = vpop.f32.mrf.mxu0
        %v4608 = vadd.f32 %v4447, %v4607
        %v4609 = vpop.f32.mrf.mxu0
        %4610 = vmatprep.mubr.bf16.mxu0 0
        %4611 = vmatmul.mubr.bf16.gmra.mxu0 %v4164
        %v4612 = vpop.f32.mrf.mxu0
        %v4613 = vadd.f32 %v4452, %v4612
        %v4614 = vpop.f32.mrf.mxu0
        %v4615 = vpop.f32.mrf.mxu0
        %v4616 = vadd.f32 %v4455, %v4615
        %v4617 = vpop.f32.mrf.mxu0
        %4618 = vmatprep.mubr.bf16.mxu0 0
        %4619 = vmatmul.mubr.bf16.gmra.mxu0 %v4167
        %v4620 = vpop.f32.mrf.mxu0
        %v4621 = vadd.f32 %v4460, %v4620
        %v4622 = vpop.f32.mrf.mxu0
        %v4623 = vpop.f32.mrf.mxu0
        %v4624 = vadd.f32 %v4463, %v4623
        %v4625 = vpop.f32.mrf.mxu0
        %4626 = vmatprep.mubr.bf16.mxu0 0
        %4627 = vmatmul.mubr.bf16.gmra.mxu0 %v4170
        %v4628 = vpop.f32.mrf.mxu0
        %v4629 = vadd.f32 %v4468, %v4628
        %v4630 = vpop.f32.mrf.mxu0
        %v4631 = vpop.f32.mrf.mxu0
        %v4632 = vadd.f32 %v4471, %v4631
        %v4633 = vpop.f32.mrf.mxu0
        %4634 = vmatprep.mubr.bf16.mxu0 0
        %4635 = vmatmul.mubr.bf16.gmra.mxu0 %v4173
        %v4636 = vpop.f32.mrf.mxu0
        %v4637 = vadd.f32 %v4476, %v4636
        %v4638 = vpop.f32.mrf.mxu0
        %v4639 = vpop.f32.mrf.mxu0
        %v4640 = vadd.f32 %v4479, %v4639
        %v4641 = vpop.f32.mrf.mxu0
        %4642 = vmatprep.mubr.bf16.mxu0 0
        %4643 = vmatmul.mubr.bf16.gmra.mxu0 %v4176
        %v4644 = vpop.f32.mrf.mxu0
        %v4645 = vadd.f32 %v4484, %v4644
        %v4646 = vpop.f32.mrf.mxu0
        %v4647 = vpop.f32.mrf.mxu0
        %v4648 = vadd.f32 %v4487, %v4647
        %v4649 = vpop.f32.mrf.mxu0
        %4650 = vmatprep.mubr.bf16.mxu0 0
        %4651 = vmatmul.mubr.bf16.gmra.mxu0 %v4179
        %v4652 = vpop.f32.mrf.mxu0
        %v4653 = vadd.f32 %v4492, %v4652
        %v4654 = vpop.f32.mrf.mxu0
        %v4655 = vpop.f32.mrf.mxu0
        %v4656 = vadd.f32 %v4495, %v4655
        %v4657 = vpop.f32.mrf.mxu0
        %4658 = vmatprep.mubr.bf16.mxu0 0
        %4659 = vmatmul.mubr.bf16.gmra.mxu0 %v4182
        %v4660 = vpop.f32.mrf.mxu0
        %v4661 = vadd.f32 %v4500, %v4660
        %v4662 = vpop.f32.mrf.mxu0
        %v4663 = vpop.f32.mrf.mxu0
        %v4664 = vadd.f32 %v4503, %v4663
        %v4665 = vpop.f32.mrf.mxu0
        %4666 = vmatprep.mubr.bf16.mxu0 0
        %4667 = vmatmul.mubr.bf16.gmra.mxu0 %v4185
        %v4668 = vpop.f32.mrf.mxu0
        %v4669 = vadd.f32 %v4508, %v4668
        %v4670 = vpop.f32.mrf.mxu0
        %v4671 = vpop.f32.mrf.mxu0
        %v4672 = vadd.f32 %v4511, %v4671
        %v4673 = vpop.f32.mrf.mxu0
        %4674 = vmatprep.mubr.bf16.mxu0 0
        %4675 = vmatmul.mubr.bf16.gmra.mxu0 %v4188
        %v4676 = vpop.f32.mrf.mxu0
        %v4677 = vadd.f32 %v4516, %v4676
        %v4678 = vpop.f32.mrf.mxu0
        %v4679 = vpop.f32.mrf.mxu0
        %v4680 = vadd.f32 %v4519, %v4679
        %v4681 = vpop.f32.mrf.mxu0
        %4682 = vmatprep.mubr.bf16.mxu0 0
        %4683 = vmatmul.mubr.bf16.gmra.mxu0 %v4191
        %v4684 = vpop.f32.mrf.mxu0
        %v4685 = vadd.f32 %v4524, %v4684
        %v4686 = vpop.f32.mrf.mxu0
        %v4687 = vpop.f32.mrf.mxu0
        %v4688 = vadd.f32 %v4527, %v4687
        %v4689 = vpop.f32.mrf.mxu0
        %4690 = vmatprep.mubr.bf16.mxu0 0
        %4691 = vmatmul.mubr.bf16.gmra.mxu0 %v4194
        %v4692 = vpop.f32.mrf.mxu0
        %v4693 = vadd.f32 %v4532, %v4692
        %v4694 = vpop.f32.mrf.mxu0
        %v4695 = vpop.f32.mrf.mxu0
        %v4696 = vadd.f32 %v4535, %v4695
        %v4697 = vpop.f32.mrf.mxu0
        %4698 = vmatprep.mubr.bf16.mxu0 0
        %4699 = vmatmul.mubr.bf16.gmra.mxu0 %v4197
        %v4700 = vpop.f32.mrf.mxu0
        %v4701 = vadd.f32 %v4540, %v4700
        %v4702 = vpop.f32.mrf.mxu0
        %v4703 = vpop.f32.mrf.mxu0
        %v4704 = vadd.f32 %v4543, %v4703
        %v4705 = vpop.f32.mrf.mxu0
        %4706 = vmatprep.mubr.bf16.mxu0 0
        %4707 = vmatmul.mubr.bf16.gmra.mxu0 %v4200
        %v4708 = vpop.f32.mrf.mxu0
        %v4709 = vadd.f32 %v4548, %v4708
        %v4710 = vpop.f32.mrf.mxu0
        %v4711 = vpop.f32.mrf.mxu0
        %v4712 = vadd.f32 %v4551, %v4711
        %v4713 = vpop.f32.mrf.mxu0
        %4714 = vdwg.mxu0
        %v4719 = vunpack.c.l.b16 %v3828
        %v4720 = vunpack.c.h.b16 %v3828
        %v4721 = vunpack.c.l.b16 %v3829
        %v4722 = vunpack.c.l.b16 %v3830
        %v4723 = vunpack.c.h.b16 %v3830
        %v4724 = vunpack.c.l.b16 %v3831
        %v4725 = vpack.c.b16 %v4722, %v4719
        %v4726 = vpack.c.b16 %v4723, %v4720
        %v4727 = vpack.c.b16 %v4724, %v4721
        %v4779 = vunpack.c.l.b16 %v3892
        %v4780 = vunpack.c.l.b16 %v3893
        %v4781 = vunpack.c.l.b16 %v3894
        %v4782 = vunpack.c.l.b16 %v3895
        %v4783 = vunpack.c.l.b16 %v3896
        %v4784 = vunpack.c.l.b16 %v3897
        %v4785 = vunpack.c.l.b16 %v3898
        %v4786 = vunpack.c.l.b16 %v3899
        %v4787 = vunpack.c.l.b16 %v3900
        %v4788 = vunpack.c.l.b16 %v3901
        %v4789 = vunpack.c.l.b16 %v3902
        %v4790 = vunpack.c.l.b16 %v3903
        %v4791 = vunpack.c.l.b16 %v3904
        %v4792 = vunpack.c.l.b16 %v3905
        %v4793 = vunpack.c.l.b16 %v3906
        %v4794 = vunpack.c.l.b16 %v3907
        %v4795 = vunpack.c.l.b16 %v3908
        %v4796 = vunpack.c.l.b16 %v3909
        %v4797 = vunpack.c.l.b16 %v3910
        %v4798 = vunpack.c.l.b16 %v3911
        %v4799 = vunpack.c.l.b16 %v3912
        %v4800 = vunpack.c.l.b16 %v3913
        %v4801 = vunpack.c.l.b16 %v3914
        %v4802 = vunpack.c.l.b16 %v3915
        %v4803 = vunpack.c.l.b16 %v3916
        %v4804 = vunpack.c.l.b16 %v3917
        %v4805 = vunpack.c.l.b16 %v3918
        %v4806 = vunpack.c.l.b16 %v3919
        %v4807 = vunpack.c.l.b16 %v3920
        %v4808 = vunpack.c.l.b16 %v3921
        %v4809 = vunpack.c.l.b16 %v3922
        %v4810 = vunpack.c.l.b16 %v3923
        %v4811 = vunpack.c.l.b16 %v3924
        %v4812 = vunpack.c.l.b16 %v3925
        %v4813 = vunpack.c.l.b16 %v3926
        %v4814 = vunpack.c.l.b16 %v3927
        %v4815 = vunpack.c.l.b16 %v3928
        %v4816 = vunpack.c.l.b16 %v3929
        %v4817 = vunpack.c.l.b16 %v3930
        %v4818 = vunpack.c.l.b16 %v3931
        %v4819 = vunpack.c.l.b16 %v3932
        %v4820 = vunpack.c.l.b16 %v3933
        %v4821 = vunpack.c.l.b16 %v3934
        %v4822 = vunpack.c.l.b16 %v3935
        %v4823 = vunpack.c.l.b16 %v3936
        %v4824 = vunpack.c.l.b16 %v3937
        %v4825 = vunpack.c.l.b16 %v3938
        %v4826 = vunpack.c.l.b16 %v3939
        %v4827 = vpack.c.b16 %v4780, %v4779
        %v4828 = vpack.c.b16 %v4782, %v4781
        %v4829 = vpack.c.b16 %v4784, %v4783
        %v4830 = vpack.c.b16 %v4786, %v4785
        %v4831 = vpack.c.b16 %v4788, %v4787
        %v4832 = vpack.c.b16 %v4790, %v4789
        %v4833 = vpack.c.b16 %v4792, %v4791
        %v4834 = vpack.c.b16 %v4794, %v4793
        %v4835 = vpack.c.b16 %v4796, %v4795
        %v4836 = vpack.c.b16 %v4798, %v4797
        %v4837 = vpack.c.b16 %v4800, %v4799
        %v4838 = vpack.c.b16 %v4802, %v4801
        %v4839 = vpack.c.b16 %v4804, %v4803
        %v4840 = vpack.c.b16 %v4806, %v4805
        %v4841 = vpack.c.b16 %v4808, %v4807
        %v4842 = vpack.c.b16 %v4810, %v4809
        %v4843 = vpack.c.b16 %v4812, %v4811
        %v4844 = vpack.c.b16 %v4814, %v4813
        %v4845 = vpack.c.b16 %v4816, %v4815
        %v4846 = vpack.c.b16 %v4818, %v4817
        %v4847 = vpack.c.b16 %v4820, %v4819
        %v4848 = vpack.c.b16 %v4822, %v4821
        %v4849 = vpack.c.b16 %v4824, %v4823
        %v4850 = vpack.c.b16 %v4826, %v4825
        %4875 = vmatprep.subr.bf16.mxu0 0
        %4876 = vmatpush1.bf16.msra.mxu0 %v4834
        %4877 = vmatprep.subr.bf16.mxu0 0
        %4878 = vmatpush1.bf16.msra.mxu0 %v4833
        %4879 = vmatprep.subr.bf16.mxu0 0
        %4880 = vmatpush1.bf16.msra.mxu0 %v4832
        %4881 = vmatprep.subr.bf16.mxu0 0
        %4882 = vmatpush1.bf16.msra.mxu0 %v4831
        %4883 = vmatprep.subr.bf16.mxu0 0
        %4884 = vmatpush1.bf16.msra.mxu0 %v4830
        %4885 = vmatprep.subr.bf16.mxu0 0
        %4886 = vmatpush1.bf16.msra.mxu0 %v4829
        %4887 = vmatprep.subr.bf16.mxu0 0
        %4888 = vmatpush1.bf16.msra.mxu0 %v4828
        %4889 = vmatprep.subr.bf16.mxu0 0
        %4890 = vmatpush1.bf16.msra.mxu0 %v4827
        %4891 = vmatprep.subr.bf16.mxu0 0
        %4892 = vmatpush2.bf16.msra.mxu0 %v4842
        %4893 = vmatprep.subr.bf16.mxu0 0
        %4894 = vmatpush2.bf16.msra.mxu0 %v4841
        %4895 = vmatprep.subr.bf16.mxu0 0
        %4896 = vmatpush2.bf16.msra.mxu0 %v4840
        %4897 = vmatprep.subr.bf16.mxu0 0
        %4898 = vmatpush2.bf16.msra.mxu0 %v4839
        %4899 = vmatprep.subr.bf16.mxu0 0
        %4900 = vmatpush2.bf16.msra.mxu0 %v4838
        %4901 = vmatprep.subr.bf16.mxu0 0
        %4902 = vmatpush2.bf16.msra.mxu0 %v4837
        %4903 = vmatprep.subr.bf16.mxu0 0
        %4904 = vmatpush2.bf16.msra.mxu0 %v4836
        %4905 = vmatprep.subr.bf16.mxu0 0
        %4906 = vmatpush2.bf16.msra.mxu0 %v4835
        %4907 = vmatprep.mubr.bf16.mxu0 %v4726
        %4908 = vmatmul.mubr.bf16.gmra.mxu0 %v4725
        %v4909 = vpop.f32.mrf.mxu0
        %v4910 = vadd.f32 %v4589, %v4909
        %v4911 = vpop.f32.mrf.mxu0
        %v4912 = vpop.f32.mrf.mxu0
        %v4913 = vadd.f32 %v4592, %v4912
        %v4914 = vpop.f32.mrf.mxu0
        %4915 = vmatprep.mubr.bf16.mxu0 %v4154
        %4916 = vmatmul.mubr.bf16.gmra.mxu0 %v4153
        %v4917 = vpop.f32.mrf.mxu0
        %v4918 = vadd.f32 %v4597, %v4917
        %v4919 = vpop.f32.mrf.mxu0
        %v4920 = vpop.f32.mrf.mxu0
        %v4921 = vadd.f32 %v4600, %v4920
        %v4922 = vpop.f32.mrf.mxu0
        %4923 = vmatprep.mubr.bf16.mxu0 %v4157
        %4924 = vmatmul.mubr.bf16.gmra.mxu0 %v4156
        %v4925 = vpop.f32.mrf.mxu0
        %v4926 = vadd.f32 %v4605, %v4925
        %v4927 = vpop.f32.mrf.mxu0
        %v4928 = vpop.f32.mrf.mxu0
        %v4929 = vadd.f32 %v4608, %v4928
        %v4930 = vpop.f32.mrf.mxu0
        %4931 = vmatprep.mubr.bf16.mxu0 %v4160
        %4932 = vmatmul.mubr.bf16.gmra.mxu0 %v4159
        %v4933 = vpop.f32.mrf.mxu0
        %v4934 = vadd.f32 %v4613, %v4933
        %v4935 = vpop.f32.mrf.mxu0
        %v4936 = vpop.f32.mrf.mxu0
        %v4937 = vadd.f32 %v4616, %v4936
        %v4938 = vpop.f32.mrf.mxu0
        %4939 = vmatprep.mubr.bf16.mxu0 %v4163
        %4940 = vmatmul.mubr.bf16.gmra.mxu0 %v4162
        %v4941 = vpop.f32.mrf.mxu0
        %v4942 = vadd.f32 %v4621, %v4941
        %v4943 = vpop.f32.mrf.mxu0
        %v4944 = vpop.f32.mrf.mxu0
        %v4945 = vadd.f32 %v4624, %v4944
        %v4946 = vpop.f32.mrf.mxu0
        %4947 = vmatprep.mubr.bf16.mxu0 %v4166
        %4948 = vmatmul.mubr.bf16.gmra.mxu0 %v4165
        %v4949 = vpop.f32.mrf.mxu0
        %v4950 = vadd.f32 %v4629, %v4949
        %v4951 = vpop.f32.mrf.mxu0
        %v4952 = vpop.f32.mrf.mxu0
        %v4953 = vadd.f32 %v4632, %v4952
        %v4954 = vpop.f32.mrf.mxu0
        %4955 = vmatprep.mubr.bf16.mxu0 %v4169
        %4956 = vmatmul.mubr.bf16.gmra.mxu0 %v4168
        %v4957 = vpop.f32.mrf.mxu0
        %v4958 = vadd.f32 %v4637, %v4957
        %v4959 = vpop.f32.mrf.mxu0
        %v4960 = vpop.f32.mrf.mxu0
        %v4961 = vadd.f32 %v4640, %v4960
        %v4962 = vpop.f32.mrf.mxu0
        %4963 = vmatprep.mubr.bf16.mxu0 %v4172
        %4964 = vmatmul.mubr.bf16.gmra.mxu0 %v4171
        %v4965 = vpop.f32.mrf.mxu0
        %v4966 = vadd.f32 %v4645, %v4965
        %v4967 = vpop.f32.mrf.mxu0
        %v4968 = vpop.f32.mrf.mxu0
        %v4969 = vadd.f32 %v4648, %v4968
        %v4970 = vpop.f32.mrf.mxu0
        %4971 = vmatprep.mubr.bf16.mxu0 %v4175
        %4972 = vmatmul.mubr.bf16.gmra.mxu0 %v4174
        %v4973 = vpop.f32.mrf.mxu0
        %v4974 = vadd.f32 %v4653, %v4973
        %v4975 = vpop.f32.mrf.mxu0
        %v4976 = vpop.f32.mrf.mxu0
        %v4977 = vadd.f32 %v4656, %v4976
        %v4978 = vpop.f32.mrf.mxu0
        %4979 = vmatprep.mubr.bf16.mxu0 %v4178
        %4980 = vmatmul.mubr.bf16.gmra.mxu0 %v4177
        %v4981 = vpop.f32.mrf.mxu0
        %v4982 = vadd.f32 %v4661, %v4981
        %v4983 = vpop.f32.mrf.mxu0
        %v4984 = vpop.f32.mrf.mxu0
        %v4985 = vadd.f32 %v4664, %v4984
        %v4986 = vpop.f32.mrf.mxu0
        %4987 = vmatprep.mubr.bf16.mxu0 %v4181
        %4988 = vmatmul.mubr.bf16.gmra.mxu0 %v4180
        %v4989 = vpop.f32.mrf.mxu0
        %v4990 = vadd.f32 %v4669, %v4989
        %v4991 = vpop.f32.mrf.mxu0
        %v4992 = vpop.f32.mrf.mxu0
        %v4993 = vadd.f32 %v4672, %v4992
        %v4994 = vpop.f32.mrf.mxu0
        %4995 = vmatprep.mubr.bf16.mxu0 %v4184
        %4996 = vmatmul.mubr.bf16.gmra.mxu0 %v4183
        %v4997 = vpop.f32.mrf.mxu0
        %v4998 = vadd.f32 %v4677, %v4997
        %v4999 = vpop.f32.mrf.mxu0
        %v5000 = vpop.f32.mrf.mxu0
        %v5001 = vadd.f32 %v4680, %v5000
        %v5002 = vpop.f32.mrf.mxu0
        %5003 = vmatprep.mubr.bf16.mxu0 %v4187
        %5004 = vmatmul.mubr.bf16.gmra.mxu0 %v4186
        %v5005 = vpop.f32.mrf.mxu0
        %v5006 = vadd.f32 %v4685, %v5005
        %v5007 = vpop.f32.mrf.mxu0
        %v5008 = vpop.f32.mrf.mxu0
        %v5009 = vadd.f32 %v4688, %v5008
        %v5010 = vpop.f32.mrf.mxu0
        %5011 = vmatprep.mubr.bf16.mxu0 %v4190
        %5012 = vmatmul.mubr.bf16.gmra.mxu0 %v4189
        %v5013 = vpop.f32.mrf.mxu0
        %v5014 = vadd.f32 %v4693, %v5013
        %v5015 = vpop.f32.mrf.mxu0
        %v5016 = vpop.f32.mrf.mxu0
        %v5017 = vadd.f32 %v4696, %v5016
        %v5018 = vpop.f32.mrf.mxu0
        %5019 = vmatprep.mubr.bf16.mxu0 %v4193
        %5020 = vmatmul.mubr.bf16.gmra.mxu0 %v4192
        %v5021 = vpop.f32.mrf.mxu0
        %v5022 = vadd.f32 %v4701, %v5021
        %v5023 = vpop.f32.mrf.mxu0
        %v5024 = vpop.f32.mrf.mxu0
        %v5025 = vadd.f32 %v4704, %v5024
        %v5026 = vpop.f32.mrf.mxu0
        %5027 = vmatprep.mubr.bf16.mxu0 %v4196
        %5028 = vmatmul.mubr.bf16.gmra.mxu0 %v4195
        %v5029 = vpop.f32.mrf.mxu0
        %v5030 = vadd.f32 %v4709, %v5029
        %v5031 = vpop.f32.mrf.mxu0
        %v5032 = vpop.f32.mrf.mxu0
        %v5033 = vadd.f32 %v4712, %v5032
        %v5034 = vpop.f32.mrf.mxu0
        %5035 = vdwg.mxu0
        %5036 = vmatprep.subr.bf16.mxu0 0
        %5037 = vmatpush1.bf16.msra.mxu0 %v4850
        %5038 = vmatprep.subr.bf16.mxu0 0
        %5039 = vmatpush1.bf16.msra.mxu0 %v4849
        %5040 = vmatprep.subr.bf16.mxu0 0
        %5041 = vmatpush1.bf16.msra.mxu0 %v4848
        %5042 = vmatprep.subr.bf16.mxu0 0
        %5043 = vmatpush1.bf16.msra.mxu0 %v4847
        %5044 = vmatprep.subr.bf16.mxu0 0
        %5045 = vmatpush1.bf16.msra.mxu0 %v4846
        %5046 = vmatprep.subr.bf16.mxu0 0
        %5047 = vmatpush1.bf16.msra.mxu0 %v4845
        %5048 = vmatprep.subr.bf16.mxu0 0
        %5049 = vmatpush1.bf16.msra.mxu0 %v4844
        %5050 = vmatprep.subr.bf16.mxu0 0
        %5051 = vmatpush1.bf16.msra.mxu0 %v4843
        %5052 = vmatprep.subr.bf16.mxu0 0
        %5053 = vmatpush2.bf16.msra.mxu0 0
        %5054 = vmatprep.subr.bf16.mxu0 0
        %5055 = vmatpush2.bf16.msra.mxu0 0
        %5056 = vmatprep.subr.bf16.mxu0 0
        %5057 = vmatpush2.bf16.msra.mxu0 0
        %5058 = vmatprep.subr.bf16.mxu0 0
        %5059 = vmatpush2.bf16.msra.mxu0 0
        %5060 = vmatprep.subr.bf16.mxu0 0
        %5061 = vmatpush2.bf16.msra.mxu0 0
        %5062 = vmatprep.subr.bf16.mxu0 0
        %5063 = vmatpush2.bf16.msra.mxu0 0
        %5064 = vmatprep.subr.bf16.mxu0 0
        %5065 = vmatpush2.bf16.msra.mxu0 0
        %5066 = vmatprep.subr.bf16.mxu0 0
        %5067 = vmatpush2.bf16.msra.mxu0 0
        %5068 = vmatprep.mubr.bf16.mxu0 0
        %5069 = vmatmul.mubr.bf16.gmra.mxu0 %v4727
        %v5070 = vpop.f32.mrf.mxu0
        %v5071 = vadd.f32 %v4910, %v5070
        %v5072 = vpop.f32.mrf.mxu0
        %v5073 = vpop.f32.mrf.mxu0
        %v5074 = vadd.f32 %v4913, %v5073
        %v5075 = vpop.f32.mrf.mxu0
        %5076 = vmatprep.mubr.bf16.mxu0 0
        %5077 = vmatmul.mubr.bf16.gmra.mxu0 %v4155
        %v5078 = vpop.f32.mrf.mxu0
        %v5079 = vadd.f32 %v4918, %v5078
        %v5080 = vpop.f32.mrf.mxu0
        %v5081 = vpop.f32.mrf.mxu0
        %v5082 = vadd.f32 %v4921, %v5081
        %v5083 = vpop.f32.mrf.mxu0
        %5084 = vmatprep.mubr.bf16.mxu0 0
        %5085 = vmatmul.mubr.bf16.gmra.mxu0 %v4158
        %v5086 = vpop.f32.mrf.mxu0
        %v5087 = vadd.f32 %v4926, %v5086
        %v5088 = vpop.f32.mrf.mxu0
        %v5089 = vpop.f32.mrf.mxu0
        %v5090 = vadd.f32 %v4929, %v5089
        %v5091 = vpop.f32.mrf.mxu0
        %5092 = vmatprep.mubr.bf16.mxu0 0
        %5093 = vmatmul.mubr.bf16.gmra.mxu0 %v4161
        %v5094 = vpop.f32.mrf.mxu0
        %v5095 = vadd.f32 %v4934, %v5094
        %v5096 = vpop.f32.mrf.mxu0
        %v5097 = vpop.f32.mrf.mxu0
        %v5098 = vadd.f32 %v4937, %v5097
        %v5099 = vpop.f32.mrf.mxu0
        %5100 = vmatprep.mubr.bf16.mxu0 0
        %5101 = vmatmul.mubr.bf16.gmra.mxu0 %v4164
        %v5102 = vpop.f32.mrf.mxu0
        %v5103 = vadd.f32 %v4942, %v5102
        %v5104 = vpop.f32.mrf.mxu0
        %v5105 = vpop.f32.mrf.mxu0
        %v5106 = vadd.f32 %v4945, %v5105
        %v5107 = vpop.f32.mrf.mxu0
        %5108 = vmatprep.mubr.bf16.mxu0 0
        %5109 = vmatmul.mubr.bf16.gmra.mxu0 %v4167
        %v5110 = vpop.f32.mrf.mxu0
        %v5111 = vadd.f32 %v4950, %v5110
        %v5112 = vpop.f32.mrf.mxu0
        %v5113 = vpop.f32.mrf.mxu0
        %v5114 = vadd.f32 %v4953, %v5113
        %v5115 = vpop.f32.mrf.mxu0
        %5116 = vmatprep.mubr.bf16.mxu0 0
        %5117 = vmatmul.mubr.bf16.gmra.mxu0 %v4170
        %v5118 = vpop.f32.mrf.mxu0
        %v5119 = vadd.f32 %v4958, %v5118
        %v5120 = vpop.f32.mrf.mxu0
        %v5121 = vpop.f32.mrf.mxu0
        %v5122 = vadd.f32 %v4961, %v5121
        %v5123 = vpop.f32.mrf.mxu0
        %5124 = vmatprep.mubr.bf16.mxu0 0
        %5125 = vmatmul.mubr.bf16.gmra.mxu0 %v4173
        %v5126 = vpop.f32.mrf.mxu0
        %v5127 = vadd.f32 %v4966, %v5126
        %v5128 = vpop.f32.mrf.mxu0
        %v5129 = vpop.f32.mrf.mxu0
        %v5130 = vadd.f32 %v4969, %v5129
        %v5131 = vpop.f32.mrf.mxu0
        %5132 = vmatprep.mubr.bf16.mxu0 0
        %5133 = vmatmul.mubr.bf16.gmra.mxu0 %v4176
        %v5134 = vpop.f32.mrf.mxu0
        %v5135 = vadd.f32 %v4974, %v5134
        %v5136 = vpop.f32.mrf.mxu0
        %v5137 = vpop.f32.mrf.mxu0
        %v5138 = vadd.f32 %v4977, %v5137
        %v5139 = vpop.f32.mrf.mxu0
        %5140 = vmatprep.mubr.bf16.mxu0 0
        %5141 = vmatmul.mubr.bf16.gmra.mxu0 %v4179
        %v5142 = vpop.f32.mrf.mxu0
        %v5143 = vadd.f32 %v4982, %v5142
        %v5144 = vpop.f32.mrf.mxu0
        %v5145 = vpop.f32.mrf.mxu0
        %v5146 = vadd.f32 %v4985, %v5145
        %v5147 = vpop.f32.mrf.mxu0
        %5148 = vmatprep.mubr.bf16.mxu0 0
        %5149 = vmatmul.mubr.bf16.gmra.mxu0 %v4182
        %v5150 = vpop.f32.mrf.mxu0
        %v5151 = vadd.f32 %v4990, %v5150
        %v5152 = vpop.f32.mrf.mxu0
        %v5153 = vpop.f32.mrf.mxu0
        %v5154 = vadd.f32 %v4993, %v5153
        %v5155 = vpop.f32.mrf.mxu0
        %5156 = vmatprep.mubr.bf16.mxu0 0
        %5157 = vmatmul.mubr.bf16.gmra.mxu0 %v4185
        %v5158 = vpop.f32.mrf.mxu0
        %v5159 = vadd.f32 %v4998, %v5158
        %v5160 = vpop.f32.mrf.mxu0
        %v5161 = vpop.f32.mrf.mxu0
        %v5162 = vadd.f32 %v5001, %v5161
        %v5163 = vpop.f32.mrf.mxu0
        %5164 = vmatprep.mubr.bf16.mxu0 0
        %5165 = vmatmul.mubr.bf16.gmra.mxu0 %v4188
        %v5166 = vpop.f32.mrf.mxu0
        %v5167 = vadd.f32 %v5006, %v5166
        %v5168 = vpop.f32.mrf.mxu0
        %v5169 = vpop.f32.mrf.mxu0
        %v5170 = vadd.f32 %v5009, %v5169
        %v5171 = vpop.f32.mrf.mxu0
        %5172 = vmatprep.mubr.bf16.mxu0 0
        %5173 = vmatmul.mubr.bf16.gmra.mxu0 %v4191
        %v5174 = vpop.f32.mrf.mxu0
        %v5175 = vadd.f32 %v5014, %v5174
        %v5176 = vpop.f32.mrf.mxu0
        %v5177 = vpop.f32.mrf.mxu0
        %v5178 = vadd.f32 %v5017, %v5177
        %v5179 = vpop.f32.mrf.mxu0
        %5180 = vmatprep.mubr.bf16.mxu0 0
        %5181 = vmatmul.mubr.bf16.gmra.mxu0 %v4194
        %v5182 = vpop.f32.mrf.mxu0
        %v5183 = vadd.f32 %v5022, %v5182
        %v5184 = vpop.f32.mrf.mxu0
        %v5185 = vpop.f32.mrf.mxu0
        %v5186 = vadd.f32 %v5025, %v5185
        %v5187 = vpop.f32.mrf.mxu0
        %5188 = vmatprep.mubr.bf16.mxu0 0
        %5189 = vmatmul.mubr.bf16.gmra.mxu0 %v4197
        %v5190 = vpop.f32.mrf.mxu0
        %v5191 = vadd.f32 %v5030, %v5190
        %v5192 = vpop.f32.mrf.mxu0
        %v5193 = vpop.f32.mrf.mxu0
        %v5194 = vadd.f32 %v5033, %v5193
        %v5195 = vpop.f32.mrf.mxu0
        %5196 = vdwg.mxu0
        %v5197 = vld [vmem:[#allocation2 + $0x30] sm:$0xff]
        %v5198 = vld [vmem:[#allocation2 + $0x38] sm:$0xf]
        %v5199 = vld [vmem:[#allocation2 + $0x3c] sm:$0xff]
        %v5200 = vld [vmem:[#allocation2 + $0x44] sm:$0xf]
        %v5201 = vld [vmem:[#allocation2 + $0x48] sm:$0xff]
        %v5202 = vld [vmem:[#allocation2 + $0x50] sm:$0xf]
        %v5203 = vld [vmem:[#allocation2 + $0x54] sm:$0xff]
        %v5204 = vld [vmem:[#allocation2 + $0x5c] sm:$0xf]
        %v5205 = vld [vmem:[#allocation2 + $0x60] sm:$0xff]
        %v5206 = vld [vmem:[#allocation2 + $0x68] sm:$0xf]
        %v5207 = vld [vmem:[#allocation2 + $0x6c] sm:$0xff]
        %v5208 = vld [vmem:[#allocation2 + $0x74] sm:$0xf]
        %v5209 = vld [vmem:[#allocation2 + $0x78] sm:$0xff]
        %v5210 = vld [vmem:[#allocation2 + $0x80] sm:$0xf]
        %v5211 = vld [vmem:[#allocation2 + $0x84] sm:$0xff]
        %v5212 = vld [vmem:[#allocation2 + $0x8c] sm:$0xf]
        %v5213 = vld [vmem:[#allocation2 + $0x90] sm:$0xff]
        %v5214 = vld [vmem:[#allocation2 + $0x98] sm:$0xf]
        %v5215 = vld [vmem:[#allocation2 + $0x9c] sm:$0xff]
        %v5216 = vld [vmem:[#allocation2 + $0xa4] sm:$0xf]
        %v5217 = vld [vmem:[#allocation2 + $0xa8] sm:$0xff]
        %v5218 = vld [vmem:[#allocation2 + $0xb0] sm:$0xf]
        %v5219 = vld [vmem:[#allocation2 + $0xb4] sm:$0xff]
        %v5220 = vld [vmem:[#allocation2 + $0xbc] sm:$0xf]
        %v5221 = vld [vmem:[#allocation2 + $0xc0] sm:$0xff]
        %v5222 = vld [vmem:[#allocation2 + $0xc8] sm:$0xf]
        %v5223 = vld [vmem:[#allocation2 + $0xcc] sm:$0xff]
        %v5224 = vld [vmem:[#allocation2 + $0xd4] sm:$0xf]
        %v5225 = vld [vmem:[#allocation2 + $0xd8] sm:$0xff]
        %v5226 = vld [vmem:[#allocation2 + $0xe0] sm:$0xf]
        %v5227 = vld [vmem:[#allocation2 + $0xe4] sm:$0xff]
        %v5228 = vld [vmem:[#allocation2 + $0xec] sm:$0xf]
        %v5229 = vld [vmem:[#allocation2 + $0xf0] sm:$0xff]
        %v5230 = vld [vmem:[#allocation2 + $0xf8] sm:$0xf]
        %v5231 = vld [vmem:[#allocation2 + $0xfc] sm:$0xff]
        %v5232 = vld [vmem:[#allocation2 + $0x104] sm:$0xf]
        %v5233 = vld [vmem:[#allocation2 + $0x108] sm:$0xff]
        %v5234 = vld [vmem:[#allocation2 + $0x110] sm:$0xf]
        %v5235 = vld [vmem:[#allocation2 + $0x114] sm:$0xff]
        %v5236 = vld [vmem:[#allocation2 + $0x11c] sm:$0xf]
        %v5237 = vld [vmem:[#allocation2 + $0x120] sm:$0xff]
        %v5238 = vld [vmem:[#allocation2 + $0x128] sm:$0xf]
        %v5239 = vld [vmem:[#allocation2 + $0x12c] sm:$0xff]
        %v5240 = vld [vmem:[#allocation2 + $0x134] sm:$0xf]
        %v5241 = vld [vmem:[#allocation2 + $0x138] sm:$0xff]
        %v5242 = vld [vmem:[#allocation2 + $0x140] sm:$0xf]
        %v5243 = vld [vmem:[#allocation2 + $0x144] sm:$0xff]
        %v5244 = vld [vmem:[#allocation2 + $0x14c] sm:$0xf]
        %v5245 = vld [vmem:[#allocation2 + $0x150] sm:$0xff]
        %v5246 = vld [vmem:[#allocation2 + $0x158] sm:$0xf]
        %v5247 = vld [vmem:[#allocation2 + $0x15c] sm:$0xff]
        %v5248 = vld [vmem:[#allocation2 + $0x164] sm:$0xf]
        %v5249 = vld [vmem:[#allocation2 + $0x168] sm:$0xff]
        %v5250 = vld [vmem:[#allocation2 + $0x170] sm:$0xf]
        %v5251 = vld [vmem:[#allocation2 + $0x174] sm:$0xff]
        %v5252 = vld [vmem:[#allocation2 + $0x17c] sm:$0xf]
        %v5253 = vld [vmem:[#allocation2 + $0x180] sm:$0xff]
        %v5254 = vld [vmem:[#allocation2 + $0x188] sm:$0xf]
        %v5255 = vld [vmem:[#allocation2 + $0x18c] sm:$0xff]
        %v5256 = vld [vmem:[#allocation2 + $0x194] sm:$0xf]
        %v5257 = vld [vmem:[#allocation2 + $0x198] sm:$0xff]
        %v5258 = vld [vmem:[#allocation2 + $0x1a0] sm:$0xf]
        %v5259 = vld [vmem:[#allocation2 + $0x1a4] sm:$0xff]
        %v5260 = vld [vmem:[#allocation2 + $0x1ac] sm:$0xf]
        %s5261 = scalar_lea.vmem %s3, 384
        %v5262 = vld [vmem:[%s5261] sm:$0xf]
        %v5263 = vld [vmem:[%s5261 + $0x4] sm:$0xf]
        %v5264 = vld [vmem:[%s5261 + $0x8] sm:$0xf]
        %v5265 = vld [vmem:[%s5261 + $0xc] sm:$0xf]
        %v5266 = vld [vmem:[%s5261 + $0x10] sm:$0xf]
        %v5267 = vld [vmem:[%s5261 + $0x14] sm:$0xf]
        %v5268 = vld [vmem:[%s5261 + $0x18] sm:$0xf]
        %v5269 = vld [vmem:[%s5261 + $0x1c] sm:$0xf]
        %v5270 = vld [vmem:[%s5261 + $0x20] sm:$0xf]
        %v5271 = vld [vmem:[%s5261 + $0x24] sm:$0xf]
        %v5272 = vld [vmem:[%s5261 + $0x28] sm:$0xf]
        %v5273 = vld [vmem:[%s5261 + $0x2c] sm:$0xf]
        %v5274 = vld [vmem:[%s5261 + $0x30] sm:$0xf]
        %v5275 = vld [vmem:[%s5261 + $0x34] sm:$0xf]
        %v5276 = vld [vmem:[%s5261 + $0x38] sm:$0xf]
        %v5277 = vld [vmem:[%s5261 + $0x3c] sm:$0xf]
        %v5278 = vld [vmem:[%s5261 + $0x40] sm:$0xf]
        %v5279 = vld [vmem:[%s5261 + $0x44] sm:$0xf]
        %v5280 = vld [vmem:[%s5261 + $0x48] sm:$0xf]
        %v5281 = vld [vmem:[%s5261 + $0x4c] sm:$0xf]
        %v5282 = vld [vmem:[%s5261 + $0x50] sm:$0xf]
        %v5283 = vld [vmem:[%s5261 + $0x54] sm:$0xf]
        %v5284 = vld [vmem:[%s5261 + $0x58] sm:$0xf]
        %v5285 = vld [vmem:[%s5261 + $0x5c] sm:$0xf]
        %v5286 = vld [vmem:[%s5261 + $0x60] sm:$0xf]
        %v5287 = vld [vmem:[%s5261 + $0x64] sm:$0xf]
        %v5288 = vld [vmem:[%s5261 + $0x68] sm:$0xf]
        %v5289 = vld [vmem:[%s5261 + $0x6c] sm:$0xf]
        %v5290 = vld [vmem:[%s5261 + $0x70] sm:$0xf]
        %v5291 = vld [vmem:[%s5261 + $0x74] sm:$0xf]
        %v5292 = vld [vmem:[%s5261 + $0x78] sm:$0xf]
        %v5293 = vld [vmem:[%s5261 + $0x7c] sm:$0xf]
        %v5294 = vld [vmem:[%s5261 + $0x80] sm:$0xf]
        %v5295 = vld [vmem:[%s5261 + $0x84] sm:$0xf]
        %v5296 = vld [vmem:[%s5261 + $0x88] sm:$0xf]
        %v5297 = vld [vmem:[%s5261 + $0x8c] sm:$0xf]
        %v5298 = vld [vmem:[%s5261 + $0x90] sm:$0xf]
        %v5299 = vld [vmem:[%s5261 + $0x94] sm:$0xf]
        %v5300 = vld [vmem:[%s5261 + $0x98] sm:$0xf]
        %v5301 = vld [vmem:[%s5261 + $0x9c] sm:$0xf]
        %v5302 = vld [vmem:[%s5261 + $0xa0] sm:$0xf]
        %v5303 = vld [vmem:[%s5261 + $0xa4] sm:$0xf]
        %v5304 = vld [vmem:[%s5261 + $0xa8] sm:$0xf]
        %v5305 = vld [vmem:[%s5261 + $0xac] sm:$0xf]
        %v5306 = vld [vmem:[%s5261 + $0xb0] sm:$0xf]
        %v5307 = vld [vmem:[%s5261 + $0xb4] sm:$0xf]
        %v5308 = vld [vmem:[%s5261 + $0xb8] sm:$0xf]
        %v5309 = vld [vmem:[%s5261 + $0xbc] sm:$0xf]
        %v5374 = vunpack.c.l.b16 %v5197
        %v5375 = vunpack.c.h.b16 %v5197
        %v5376 = vunpack.c.l.b16 %v5198
        %v5377 = vunpack.c.l.b16 %v5199
        %v5378 = vunpack.c.h.b16 %v5199
        %v5379 = vunpack.c.l.b16 %v5200
        %v5380 = vunpack.c.l.b16 %v5201
        %v5381 = vunpack.c.h.b16 %v5201
        %v5382 = vunpack.c.l.b16 %v5202
        %v5383 = vunpack.c.l.b16 %v5203
        %v5384 = vunpack.c.h.b16 %v5203
        %v5385 = vunpack.c.l.b16 %v5204
        %v5386 = vunpack.c.l.b16 %v5205
        %v5387 = vunpack.c.h.b16 %v5205
        %v5388 = vunpack.c.l.b16 %v5206
        %v5389 = vunpack.c.l.b16 %v5207
        %v5390 = vunpack.c.h.b16 %v5207
        %v5391 = vunpack.c.l.b16 %v5208
        %v5392 = vunpack.c.l.b16 %v5209
        %v5393 = vunpack.c.h.b16 %v5209
        %v5394 = vunpack.c.l.b16 %v5210
        %v5395 = vunpack.c.l.b16 %v5211
        %v5396 = vunpack.c.h.b16 %v5211
        %v5397 = vunpack.c.l.b16 %v5212
        %v5398 = vunpack.c.l.b16 %v5213
        %v5399 = vunpack.c.h.b16 %v5213
        %v5400 = vunpack.c.l.b16 %v5214
        %v5401 = vunpack.c.l.b16 %v5215
        %v5402 = vunpack.c.h.b16 %v5215
        %v5403 = vunpack.c.l.b16 %v5216
        %v5404 = vunpack.c.l.b16 %v5217
        %v5405 = vunpack.c.h.b16 %v5217
        %v5406 = vunpack.c.l.b16 %v5218
        %v5407 = vunpack.c.l.b16 %v5219
        %v5408 = vunpack.c.h.b16 %v5219
        %v5409 = vunpack.c.l.b16 %v5220
        %v5410 = vunpack.c.l.b16 %v5221
        %v5411 = vunpack.c.h.b16 %v5221
        %v5412 = vunpack.c.l.b16 %v5222
        %v5413 = vunpack.c.l.b16 %v5223
        %v5414 = vunpack.c.h.b16 %v5223
        %v5415 = vunpack.c.l.b16 %v5224
        %v5416 = vunpack.c.l.b16 %v5225
        %v5417 = vunpack.c.h.b16 %v5225
        %v5418 = vunpack.c.l.b16 %v5226
        %v5419 = vunpack.c.l.b16 %v5227
        %v5420 = vunpack.c.h.b16 %v5227
        %v5421 = vunpack.c.l.b16 %v5228
        %v5422 = vunpack.c.l.b16 %v5229
        %v5423 = vunpack.c.h.b16 %v5229
        %v5424 = vunpack.c.l.b16 %v5230
        %v5425 = vunpack.c.l.b16 %v5231
        %v5426 = vunpack.c.h.b16 %v5231
        %v5427 = vunpack.c.l.b16 %v5232
        %v5428 = vunpack.c.l.b16 %v5233
        %v5429 = vunpack.c.h.b16 %v5233
        %v5430 = vunpack.c.l.b16 %v5234
        %v5431 = vunpack.c.l.b16 %v5235
        %v5432 = vunpack.c.h.b16 %v5235
        %v5433 = vunpack.c.l.b16 %v5236
        %v5434 = vunpack.c.l.b16 %v5237
        %v5435 = vunpack.c.h.b16 %v5237
        %v5436 = vunpack.c.l.b16 %v5238
        %v5437 = vunpack.c.l.b16 %v5239
        %v5438 = vunpack.c.h.b16 %v5239
        %v5439 = vunpack.c.l.b16 %v5240
        %v5440 = vunpack.c.l.b16 %v5241
        %v5441 = vunpack.c.h.b16 %v5241
        %v5442 = vunpack.c.l.b16 %v5242
        %v5443 = vunpack.c.l.b16 %v5243
        %v5444 = vunpack.c.h.b16 %v5243
        %v5445 = vunpack.c.l.b16 %v5244
        %v5446 = vunpack.c.l.b16 %v5245
        %v5447 = vunpack.c.h.b16 %v5245
        %v5448 = vunpack.c.l.b16 %v5246
        %v5449 = vunpack.c.l.b16 %v5247
        %v5450 = vunpack.c.h.b16 %v5247
        %v5451 = vunpack.c.l.b16 %v5248
        %v5452 = vunpack.c.l.b16 %v5249
        %v5453 = vunpack.c.h.b16 %v5249
        %v5454 = vunpack.c.l.b16 %v5250
        %v5455 = vunpack.c.l.b16 %v5251
        %v5456 = vunpack.c.h.b16 %v5251
        %v5457 = vunpack.c.l.b16 %v5252
        %v5458 = vunpack.c.l.b16 %v5253
        %v5459 = vunpack.c.h.b16 %v5253
        %v5460 = vunpack.c.l.b16 %v5254
        %v5461 = vunpack.c.l.b16 %v5255
        %v5462 = vunpack.c.h.b16 %v5255
        %v5463 = vunpack.c.l.b16 %v5256
        %v5464 = vunpack.c.l.b16 %v5257
        %v5465 = vunpack.c.h.b16 %v5257
        %v5466 = vunpack.c.l.b16 %v5258
        %v5467 = vunpack.c.l.b16 %v5259
        %v5468 = vunpack.c.h.b16 %v5259
        %v5469 = vunpack.c.l.b16 %v5260
        %v5470 = vpack.c.b16 %v5377, %v5374
        %v5471 = vpack.c.b16 %v5378, %v5375
        %v5472 = vpack.c.b16 %v5379, %v5376
        %v5473 = vpack.c.b16 %v5383, %v5380
        %v5474 = vpack.c.b16 %v5384, %v5381
        %v5475 = vpack.c.b16 %v5385, %v5382
        %v5476 = vpack.c.b16 %v5389, %v5386
        %v5477 = vpack.c.b16 %v5390, %v5387
        %v5478 = vpack.c.b16 %v5391, %v5388
        %v5479 = vpack.c.b16 %v5395, %v5392
        %v5480 = vpack.c.b16 %v5396, %v5393
        %v5481 = vpack.c.b16 %v5397, %v5394
        %v5482 = vpack.c.b16 %v5401, %v5398
        %v5483 = vpack.c.b16 %v5402, %v5399
        %v5484 = vpack.c.b16 %v5403, %v5400
        %v5485 = vpack.c.b16 %v5407, %v5404
        %v5486 = vpack.c.b16 %v5408, %v5405
        %v5487 = vpack.c.b16 %v5409, %v5406
        %v5488 = vpack.c.b16 %v5413, %v5410
        %v5489 = vpack.c.b16 %v5414, %v5411
        %v5490 = vpack.c.b16 %v5415, %v5412
        %v5491 = vpack.c.b16 %v5419, %v5416
        %v5492 = vpack.c.b16 %v5420, %v5417
        %v5493 = vpack.c.b16 %v5421, %v5418
        %v5494 = vpack.c.b16 %v5425, %v5422
        %v5495 = vpack.c.b16 %v5426, %v5423
        %v5496 = vpack.c.b16 %v5427, %v5424
        %v5497 = vpack.c.b16 %v5431, %v5428
        %v5498 = vpack.c.b16 %v5432, %v5429
        %v5499 = vpack.c.b16 %v5433, %v5430
        %v5500 = vpack.c.b16 %v5437, %v5434
        %v5501 = vpack.c.b16 %v5438, %v5435
        %v5502 = vpack.c.b16 %v5439, %v5436
        %v5503 = vpack.c.b16 %v5443, %v5440
        %v5504 = vpack.c.b16 %v5444, %v5441
        %v5505 = vpack.c.b16 %v5445, %v5442
        %v5506 = vpack.c.b16 %v5449, %v5446
        %v5507 = vpack.c.b16 %v5450, %v5447
        %v5508 = vpack.c.b16 %v5451, %v5448
        %v5509 = vpack.c.b16 %v5455, %v5452
        %v5510 = vpack.c.b16 %v5456, %v5453
        %v5511 = vpack.c.b16 %v5457, %v5454
        %v5512 = vpack.c.b16 %v5461, %v5458
        %v5513 = vpack.c.b16 %v5462, %v5459
        %v5514 = vpack.c.b16 %v5463, %v5460
        %v5515 = vpack.c.b16 %v5467, %v5464
        %v5516 = vpack.c.b16 %v5468, %v5465
        %v5517 = vpack.c.b16 %v5469, %v5466
        %v5614 = vunpack.c.l.b16 %v5262
        %v5615 = vunpack.c.l.b16 %v5263
        %v5616 = vunpack.c.l.b16 %v5264
        %v5617 = vunpack.c.l.b16 %v5265
        %v5618 = vunpack.c.l.b16 %v5266
        %v5619 = vunpack.c.l.b16 %v5267
        %v5620 = vunpack.c.l.b16 %v5268
        %v5621 = vunpack.c.l.b16 %v5269
        %v5622 = vunpack.c.l.b16 %v5270
        %v5623 = vunpack.c.l.b16 %v5271
        %v5624 = vunpack.c.l.b16 %v5272
        %v5625 = vunpack.c.l.b16 %v5273
        %v5626 = vunpack.c.l.b16 %v5274
        %v5627 = vunpack.c.l.b16 %v5275
        %v5628 = vunpack.c.l.b16 %v5276
        %v5629 = vunpack.c.l.b16 %v5277
        %v5630 = vunpack.c.l.b16 %v5278
        %v5631 = vunpack.c.l.b16 %v5279
        %v5632 = vunpack.c.l.b16 %v5280
        %v5633 = vunpack.c.l.b16 %v5281
        %v5634 = vunpack.c.l.b16 %v5282
        %v5635 = vunpack.c.l.b16 %v5283
        %v5636 = vunpack.c.l.b16 %v5284
        %v5637 = vunpack.c.l.b16 %v5285
        %v5638 = vunpack.c.l.b16 %v5286
        %v5639 = vunpack.c.l.b16 %v5287
        %v5640 = vunpack.c.l.b16 %v5288
        %v5641 = vunpack.c.l.b16 %v5289
        %v5642 = vunpack.c.l.b16 %v5290
        %v5643 = vunpack.c.l.b16 %v5291
        %v5644 = vunpack.c.l.b16 %v5292
        %v5645 = vunpack.c.l.b16 %v5293
        %v5646 = vunpack.c.l.b16 %v5294
        %v5647 = vunpack.c.l.b16 %v5295
        %v5648 = vunpack.c.l.b16 %v5296
        %v5649 = vunpack.c.l.b16 %v5297
        %v5650 = vunpack.c.l.b16 %v5298
        %v5651 = vunpack.c.l.b16 %v5299
        %v5652 = vunpack.c.l.b16 %v5300
        %v5653 = vunpack.c.l.b16 %v5301
        %v5654 = vunpack.c.l.b16 %v5302
        %v5655 = vunpack.c.l.b16 %v5303
        %v5656 = vunpack.c.l.b16 %v5304
        %v5657 = vunpack.c.l.b16 %v5305
        %v5658 = vunpack.c.l.b16 %v5306
        %v5659 = vunpack.c.l.b16 %v5307
        %v5660 = vunpack.c.l.b16 %v5308
        %v5661 = vunpack.c.l.b16 %v5309
        %v5662 = vpack.c.b16 %v5615, %v5614
        %v5663 = vpack.c.b16 %v5617, %v5616
        %v5664 = vpack.c.b16 %v5619, %v5618
        %v5665 = vpack.c.b16 %v5621, %v5620
        %v5666 = vpack.c.b16 %v5623, %v5622
        %v5667 = vpack.c.b16 %v5625, %v5624
        %v5668 = vpack.c.b16 %v5627, %v5626
        %v5669 = vpack.c.b16 %v5629, %v5628
        %v5670 = vpack.c.b16 %v5631, %v5630
        %v5671 = vpack.c.b16 %v5633, %v5632
        %v5672 = vpack.c.b16 %v5635, %v5634
        %v5673 = vpack.c.b16 %v5637, %v5636
        %v5674 = vpack.c.b16 %v5639, %v5638
        %v5675 = vpack.c.b16 %v5641, %v5640
        %v5676 = vpack.c.b16 %v5643, %v5642
        %v5677 = vpack.c.b16 %v5645, %v5644
        %v5678 = vpack.c.b16 %v5647, %v5646
        %v5679 = vpack.c.b16 %v5649, %v5648
        %v5680 = vpack.c.b16 %v5651, %v5650
        %v5681 = vpack.c.b16 %v5653, %v5652
        %v5682 = vpack.c.b16 %v5655, %v5654
        %v5683 = vpack.c.b16 %v5657, %v5656
        %v5684 = vpack.c.b16 %v5659, %v5658
        %v5685 = vpack.c.b16 %v5661, %v5660
        %5710 = vmatprep.subr.bf16.mxu0 0
        %5711 = vmatpush1.bf16.msra.mxu0 %v5669
        %5712 = vmatprep.subr.bf16.mxu0 0
        %5713 = vmatpush1.bf16.msra.mxu0 %v5668
        %5714 = vmatprep.subr.bf16.mxu0 0
        %5715 = vmatpush1.bf16.msra.mxu0 %v5667
        %5716 = vmatprep.subr.bf16.mxu0 0
        %5717 = vmatpush1.bf16.msra.mxu0 %v5666
        %5718 = vmatprep.subr.bf16.mxu0 0
        %5719 = vmatpush1.bf16.msra.mxu0 %v5665
        %5720 = vmatprep.subr.bf16.mxu0 0
        %5721 = vmatpush1.bf16.msra.mxu0 %v5664
        %5722 = vmatprep.subr.bf16.mxu0 0
        %5723 = vmatpush1.bf16.msra.mxu0 %v5663
        %5724 = vmatprep.subr.bf16.mxu0 0
        %5725 = vmatpush1.bf16.msra.mxu0 %v5662
        %5726 = vmatprep.subr.bf16.mxu0 0
        %5727 = vmatpush2.bf16.msra.mxu0 %v5677
        %5728 = vmatprep.subr.bf16.mxu0 0
        %5729 = vmatpush2.bf16.msra.mxu0 %v5676
        %5730 = vmatprep.subr.bf16.mxu0 0
        %5731 = vmatpush2.bf16.msra.mxu0 %v5675
        %5732 = vmatprep.subr.bf16.mxu0 0
        %5733 = vmatpush2.bf16.msra.mxu0 %v5674
        %5734 = vmatprep.subr.bf16.mxu0 0
        %5735 = vmatpush2.bf16.msra.mxu0 %v5673
        %5736 = vmatprep.subr.bf16.mxu0 0
        %5737 = vmatpush2.bf16.msra.mxu0 %v5672
        %5738 = vmatprep.subr.bf16.mxu0 0
        %5739 = vmatpush2.bf16.msra.mxu0 %v5671
        %5740 = vmatprep.subr.bf16.mxu0 0
        %5741 = vmatpush2.bf16.msra.mxu0 %v5670
        %5742 = vmatprep.mubr.bf16.mxu0 %v5471
        %5743 = vmatmul.mubr.bf16.gmra.mxu0 %v5470
        %v5744 = vpop.f32.mrf.mxu0
        %v5745 = vadd.f32 0.0, %v5744
        %v5746 = vpop.f32.mrf.mxu0
        %v5747 = vpop.f32.mrf.mxu0
        %v5748 = vadd.f32 0.0, %v5747
        %v5749 = vpop.f32.mrf.mxu0
        %5750 = vmatprep.mubr.bf16.mxu0 %v5474
        %5751 = vmatmul.mubr.bf16.gmra.mxu0 %v5473
        %v5752 = vpop.f32.mrf.mxu0
        %v5753 = vadd.f32 0.0, %v5752
        %v5754 = vpop.f32.mrf.mxu0
        %v5755 = vpop.f32.mrf.mxu0
        %v5756 = vadd.f32 0.0, %v5755
        %v5757 = vpop.f32.mrf.mxu0
        %5758 = vmatprep.mubr.bf16.mxu0 %v5477
        %5759 = vmatmul.mubr.bf16.gmra.mxu0 %v5476
        %v5760 = vpop.f32.mrf.mxu0
        %v5761 = vadd.f32 0.0, %v5760
        %v5762 = vpop.f32.mrf.mxu0
        %v5763 = vpop.f32.mrf.mxu0
        %v5764 = vadd.f32 0.0, %v5763
        %v5765 = vpop.f32.mrf.mxu0
        %5766 = vmatprep.mubr.bf16.mxu0 %v5480
        %5767 = vmatmul.mubr.bf16.gmra.mxu0 %v5479
        %v5768 = vpop.f32.mrf.mxu0
        %v5769 = vadd.f32 0.0, %v5768
        %v5770 = vpop.f32.mrf.mxu0
        %v5771 = vpop.f32.mrf.mxu0
        %v5772 = vadd.f32 0.0, %v5771
        %v5773 = vpop.f32.mrf.mxu0
        %5774 = vmatprep.mubr.bf16.mxu0 %v5483
        %5775 = vmatmul.mubr.bf16.gmra.mxu0 %v5482
        %v5776 = vpop.f32.mrf.mxu0
        %v5777 = vadd.f32 0.0, %v5776
        %v5778 = vpop.f32.mrf.mxu0
        %v5779 = vpop.f32.mrf.mxu0
        %v5780 = vadd.f32 0.0, %v5779
        %v5781 = vpop.f32.mrf.mxu0
        %5782 = vmatprep.mubr.bf16.mxu0 %v5486
        %5783 = vmatmul.mubr.bf16.gmra.mxu0 %v5485
        %v5784 = vpop.f32.mrf.mxu0
        %v5785 = vadd.f32 0.0, %v5784
        %v5786 = vpop.f32.mrf.mxu0
        %v5787 = vpop.f32.mrf.mxu0
        %v5788 = vadd.f32 0.0, %v5787
        %v5789 = vpop.f32.mrf.mxu0
        %5790 = vmatprep.mubr.bf16.mxu0 %v5489
        %5791 = vmatmul.mubr.bf16.gmra.mxu0 %v5488
        %v5792 = vpop.f32.mrf.mxu0
        %v5793 = vadd.f32 0.0, %v5792
        %v5794 = vpop.f32.mrf.mxu0
        %v5795 = vpop.f32.mrf.mxu0
        %v5796 = vadd.f32 0.0, %v5795
        %v5797 = vpop.f32.mrf.mxu0
        %5798 = vmatprep.mubr.bf16.mxu0 %v5492
        %5799 = vmatmul.mubr.bf16.gmra.mxu0 %v5491
        %v5800 = vpop.f32.mrf.mxu0
        %v5801 = vadd.f32 0.0, %v5800
        %v5802 = vpop.f32.mrf.mxu0
        %v5803 = vpop.f32.mrf.mxu0
        %v5804 = vadd.f32 0.0, %v5803
        %v5805 = vpop.f32.mrf.mxu0
        %5806 = vmatprep.mubr.bf16.mxu0 %v5495
        %5807 = vmatmul.mubr.bf16.gmra.mxu0 %v5494
        %v5808 = vpop.f32.mrf.mxu0
        %v5809 = vadd.f32 0.0, %v5808
        %v5810 = vpop.f32.mrf.mxu0
        %v5811 = vpop.f32.mrf.mxu0
        %v5812 = vadd.f32 0.0, %v5811
        %v5813 = vpop.f32.mrf.mxu0
        %5814 = vmatprep.mubr.bf16.mxu0 %v5498
        %5815 = vmatmul.mubr.bf16.gmra.mxu0 %v5497
        %v5816 = vpop.f32.mrf.mxu0
        %v5817 = vadd.f32 0.0, %v5816
        %v5818 = vpop.f32.mrf.mxu0
        %v5819 = vpop.f32.mrf.mxu0
        %v5820 = vadd.f32 0.0, %v5819
        %v5821 = vpop.f32.mrf.mxu0
        %5822 = vmatprep.mubr.bf16.mxu0 %v5501
        %5823 = vmatmul.mubr.bf16.gmra.mxu0 %v5500
        %v5824 = vpop.f32.mrf.mxu0
        %v5825 = vadd.f32 0.0, %v5824
        %v5826 = vpop.f32.mrf.mxu0
        %v5827 = vpop.f32.mrf.mxu0
        %v5828 = vadd.f32 0.0, %v5827
        %v5829 = vpop.f32.mrf.mxu0
        %5830 = vmatprep.mubr.bf16.mxu0 %v5504
        %5831 = vmatmul.mubr.bf16.gmra.mxu0 %v5503
        %v5832 = vpop.f32.mrf.mxu0
        %v5833 = vadd.f32 0.0, %v5832
        %v5834 = vpop.f32.mrf.mxu0
        %v5835 = vpop.f32.mrf.mxu0
        %v5836 = vadd.f32 0.0, %v5835
        %v5837 = vpop.f32.mrf.mxu0
        %5838 = vmatprep.mubr.bf16.mxu0 %v5507
        %5839 = vmatmul.mubr.bf16.gmra.mxu0 %v5506
        %v5840 = vpop.f32.mrf.mxu0
        %v5841 = vadd.f32 0.0, %v5840
        %v5842 = vpop.f32.mrf.mxu0
        %v5843 = vpop.f32.mrf.mxu0
        %v5844 = vadd.f32 0.0, %v5843
        %v5845 = vpop.f32.mrf.mxu0
        %5846 = vmatprep.mubr.bf16.mxu0 %v5510
        %5847 = vmatmul.mubr.bf16.gmra.mxu0 %v5509
        %v5848 = vpop.f32.mrf.mxu0
        %v5849 = vadd.f32 0.0, %v5848
        %v5850 = vpop.f32.mrf.mxu0
        %v5851 = vpop.f32.mrf.mxu0
        %v5852 = vadd.f32 0.0, %v5851
        %v5853 = vpop.f32.mrf.mxu0
        %5854 = vmatprep.mubr.bf16.mxu0 %v5513
        %5855 = vmatmul.mubr.bf16.gmra.mxu0 %v5512
        %v5856 = vpop.f32.mrf.mxu0
        %v5857 = vadd.f32 0.0, %v5856
        %v5858 = vpop.f32.mrf.mxu0
        %v5859 = vpop.f32.mrf.mxu0
        %v5860 = vadd.f32 0.0, %v5859
        %v5861 = vpop.f32.mrf.mxu0
        %5862 = vmatprep.mubr.bf16.mxu0 %v5516
        %5863 = vmatmul.mubr.bf16.gmra.mxu0 %v5515
        %v5864 = vpop.f32.mrf.mxu0
        %v5865 = vadd.f32 0.0, %v5864
        %v5866 = vpop.f32.mrf.mxu0
        %v5867 = vpop.f32.mrf.mxu0
        %v5868 = vadd.f32 0.0, %v5867
        %v5869 = vpop.f32.mrf.mxu0
        %5870 = vdwg.mxu0
        %5871 = vmatprep.subr.bf16.mxu0 0
        %5872 = vmatpush1.bf16.msra.mxu0 %v5685
        %5873 = vmatprep.subr.bf16.mxu0 0
        %5874 = vmatpush1.bf16.msra.mxu0 %v5684
        %5875 = vmatprep.subr.bf16.mxu0 0
        %5876 = vmatpush1.bf16.msra.mxu0 %v5683
        %5877 = vmatprep.subr.bf16.mxu0 0
        %5878 = vmatpush1.bf16.msra.mxu0 %v5682
        %5879 = vmatprep.subr.bf16.mxu0 0
        %5880 = vmatpush1.bf16.msra.mxu0 %v5681
        %5881 = vmatprep.subr.bf16.mxu0 0
        %5882 = vmatpush1.bf16.msra.mxu0 %v5680
        %5883 = vmatprep.subr.bf16.mxu0 0
        %5884 = vmatpush1.bf16.msra.mxu0 %v5679
        %5885 = vmatprep.subr.bf16.mxu0 0
        %5886 = vmatpush1.bf16.msra.mxu0 %v5678
        %5887 = vmatprep.subr.bf16.mxu0 0
        %5888 = vmatpush2.bf16.msra.mxu0 0
        %5889 = vmatprep.subr.bf16.mxu0 0
        %5890 = vmatpush2.bf16.msra.mxu0 0
        %5891 = vmatprep.subr.bf16.mxu0 0
        %5892 = vmatpush2.bf16.msra.mxu0 0
        %5893 = vmatprep.subr.bf16.mxu0 0
        %5894 = vmatpush2.bf16.msra.mxu0 0
        %5895 = vmatprep.subr.bf16.mxu0 0
        %5896 = vmatpush2.bf16.msra.mxu0 0
        %5897 = vmatprep.subr.bf16.mxu0 0
        %5898 = vmatpush2.bf16.msra.mxu0 0
        %5899 = vmatprep.subr.bf16.mxu0 0
        %5900 = vmatpush2.bf16.msra.mxu0 0
        %5901 = vmatprep.subr.bf16.mxu0 0
        %5902 = vmatpush2.bf16.msra.mxu0 0
        %5903 = vmatprep.mubr.bf16.mxu0 0
        %5904 = vmatmul.mubr.bf16.gmra.mxu0 %v5472
        %v5905 = vpop.f32.mrf.mxu0
        %v5906 = vadd.f32 %v5745, %v5905
        %v5907 = vpop.f32.mrf.mxu0
        %v5908 = vpop.f32.mrf.mxu0
        %v5909 = vadd.f32 %v5748, %v5908
        %v5910 = vpop.f32.mrf.mxu0
        %5911 = vmatprep.mubr.bf16.mxu0 0
        %5912 = vmatmul.mubr.bf16.gmra.mxu0 %v5475
        %v5913 = vpop.f32.mrf.mxu0
        %v5914 = vadd.f32 %v5753, %v5913
        %v5915 = vpop.f32.mrf.mxu0
        %v5916 = vpop.f32.mrf.mxu0
        %v5917 = vadd.f32 %v5756, %v5916
        %v5918 = vpop.f32.mrf.mxu0
        %5919 = vmatprep.mubr.bf16.mxu0 0
        %5920 = vmatmul.mubr.bf16.gmra.mxu0 %v5478
        %v5921 = vpop.f32.mrf.mxu0
        %v5922 = vadd.f32 %v5761, %v5921
        %v5923 = vpop.f32.mrf.mxu0
        %v5924 = vpop.f32.mrf.mxu0
        %v5925 = vadd.f32 %v5764, %v5924
        %v5926 = vpop.f32.mrf.mxu0
        %5927 = vmatprep.mubr.bf16.mxu0 0
        %5928 = vmatmul.mubr.bf16.gmra.mxu0 %v5481
        %v5929 = vpop.f32.mrf.mxu0
        %v5930 = vadd.f32 %v5769, %v5929
        %v5931 = vpop.f32.mrf.mxu0
        %v5932 = vpop.f32.mrf.mxu0
        %v5933 = vadd.f32 %v5772, %v5932
        %v5934 = vpop.f32.mrf.mxu0
        %5935 = vmatprep.mubr.bf16.mxu0 0
        %5936 = vmatmul.mubr.bf16.gmra.mxu0 %v5484
        %v5937 = vpop.f32.mrf.mxu0
        %v5938 = vadd.f32 %v5777, %v5937
        %v5939 = vpop.f32.mrf.mxu0
        %v5940 = vpop.f32.mrf.mxu0
        %v5941 = vadd.f32 %v5780, %v5940
        %v5942 = vpop.f32.mrf.mxu0
        %5943 = vmatprep.mubr.bf16.mxu0 0
        %5944 = vmatmul.mubr.bf16.gmra.mxu0 %v5487
        %v5945 = vpop.f32.mrf.mxu0
        %v5946 = vadd.f32 %v5785, %v5945
        %v5947 = vpop.f32.mrf.mxu0
        %v5948 = vpop.f32.mrf.mxu0
        %v5949 = vadd.f32 %v5788, %v5948
        %v5950 = vpop.f32.mrf.mxu0
        %5951 = vmatprep.mubr.bf16.mxu0 0
        %5952 = vmatmul.mubr.bf16.gmra.mxu0 %v5490
        %v5953 = vpop.f32.mrf.mxu0
        %v5954 = vadd.f32 %v5793, %v5953
        %v5955 = vpop.f32.mrf.mxu0
        %v5956 = vpop.f32.mrf.mxu0
        %v5957 = vadd.f32 %v5796, %v5956
        %v5958 = vpop.f32.mrf.mxu0
        %5959 = vmatprep.mubr.bf16.mxu0 0
        %5960 = vmatmul.mubr.bf16.gmra.mxu0 %v5493
        %v5961 = vpop.f32.mrf.mxu0
        %v5962 = vadd.f32 %v5801, %v5961
        %v5963 = vpop.f32.mrf.mxu0
        %v5964 = vpop.f32.mrf.mxu0
        %v5965 = vadd.f32 %v5804, %v5964
        %v5966 = vpop.f32.mrf.mxu0
        %5967 = vmatprep.mubr.bf16.mxu0 0
        %5968 = vmatmul.mubr.bf16.gmra.mxu0 %v5496
        %v5969 = vpop.f32.mrf.mxu0
        %v5970 = vadd.f32 %v5809, %v5969
        %v5971 = vpop.f32.mrf.mxu0
        %v5972 = vpop.f32.mrf.mxu0
        %v5973 = vadd.f32 %v5812, %v5972
        %v5974 = vpop.f32.mrf.mxu0
        %5975 = vmatprep.mubr.bf16.mxu0 0
        %5976 = vmatmul.mubr.bf16.gmra.mxu0 %v5499
        %v5977 = vpop.f32.mrf.mxu0
        %v5978 = vadd.f32 %v5817, %v5977
        %v5979 = vpop.f32.mrf.mxu0
        %v5980 = vpop.f32.mrf.mxu0
        %v5981 = vadd.f32 %v5820, %v5980
        %v5982 = vpop.f32.mrf.mxu0
        %5983 = vmatprep.mubr.bf16.mxu0 0
        %5984 = vmatmul.mubr.bf16.gmra.mxu0 %v5502
        %v5985 = vpop.f32.mrf.mxu0
        %v5986 = vadd.f32 %v5825, %v5985
        %v5987 = vpop.f32.mrf.mxu0
        %v5988 = vpop.f32.mrf.mxu0
        %v5989 = vadd.f32 %v5828, %v5988
        %v5990 = vpop.f32.mrf.mxu0
        %5991 = vmatprep.mubr.bf16.mxu0 0
        %5992 = vmatmul.mubr.bf16.gmra.mxu0 %v5505
        %v5993 = vpop.f32.mrf.mxu0
        %v5994 = vadd.f32 %v5833, %v5993
        %v5995 = vpop.f32.mrf.mxu0
        %v5996 = vpop.f32.mrf.mxu0
        %v5997 = vadd.f32 %v5836, %v5996
        %v5998 = vpop.f32.mrf.mxu0
        %5999 = vmatprep.mubr.bf16.mxu0 0
        %6000 = vmatmul.mubr.bf16.gmra.mxu0 %v5508
        %v6001 = vpop.f32.mrf.mxu0
        %v6002 = vadd.f32 %v5841, %v6001
        %v6003 = vpop.f32.mrf.mxu0
        %v6004 = vpop.f32.mrf.mxu0
        %v6005 = vadd.f32 %v5844, %v6004
        %v6006 = vpop.f32.mrf.mxu0
        %6007 = vmatprep.mubr.bf16.mxu0 0
        %6008 = vmatmul.mubr.bf16.gmra.mxu0 %v5511
        %v6009 = vpop.f32.mrf.mxu0
        %v6010 = vadd.f32 %v5849, %v6009
        %v6011 = vpop.f32.mrf.mxu0
        %v6012 = vpop.f32.mrf.mxu0
        %v6013 = vadd.f32 %v5852, %v6012
        %v6014 = vpop.f32.mrf.mxu0
        %6015 = vmatprep.mubr.bf16.mxu0 0
        %6016 = vmatmul.mubr.bf16.gmra.mxu0 %v5514
        %v6017 = vpop.f32.mrf.mxu0
        %v6018 = vadd.f32 %v5857, %v6017
        %v6019 = vpop.f32.mrf.mxu0
        %v6020 = vpop.f32.mrf.mxu0
        %v6021 = vadd.f32 %v5860, %v6020
        %v6022 = vpop.f32.mrf.mxu0
        %6023 = vmatprep.mubr.bf16.mxu0 0
        %6024 = vmatmul.mubr.bf16.gmra.mxu0 %v5517
        %v6025 = vpop.f32.mrf.mxu0
        %v6026 = vadd.f32 %v5865, %v6025
        %v6027 = vpop.f32.mrf.mxu0
        %v6028 = vpop.f32.mrf.mxu0
        %v6029 = vadd.f32 %v5868, %v6028
        %v6030 = vpop.f32.mrf.mxu0
        %6031 = vdwg.mxu0
        %v6032 = vadd.f32 %v5071, %v5906
        %v6033 = vadd.f32 %v5074, %v5909
        %v6034 = vadd.f32 %v5079, %v5914
        %v6035 = vadd.f32 %v5082, %v5917
        %v6036 = vadd.f32 %v5087, %v5922
        %v6037 = vadd.f32 %v5090, %v5925
        %v6038 = vadd.f32 %v5095, %v5930
        %v6039 = vadd.f32 %v5098, %v5933
        %v6040 = vadd.f32 %v5103, %v5938
        %v6041 = vadd.f32 %v5106, %v5941
        %v6042 = vadd.f32 %v5111, %v5946
        %v6043 = vadd.f32 %v5114, %v5949
        %v6044 = vadd.f32 %v5119, %v5954
        %v6045 = vadd.f32 %v5122, %v5957
        %v6046 = vadd.f32 %v5127, %v5962
        %v6047 = vadd.f32 %v5130, %v5965
        %v6048 = vadd.f32 %v5135, %v5970
        %v6049 = vadd.f32 %v5138, %v5973
        %v6050 = vadd.f32 %v5143, %v5978
        %v6051 = vadd.f32 %v5146, %v5981
        %v6052 = vadd.f32 %v5151, %v5986
        %v6053 = vadd.f32 %v5154, %v5989
        %v6054 = vadd.f32 %v5159, %v5994
        %v6055 = vadd.f32 %v5162, %v5997
        %v6056 = vadd.f32 %v5167, %v6002
        %v6057 = vadd.f32 %v5170, %v6005
        %v6058 = vadd.f32 %v5175, %v6010
        %v6059 = vadd.f32 %v5178, %v6013
        %v6060 = vadd.f32 %v5183, %v6018
        %v6061 = vadd.f32 %v5186, %v6021
        %v6062 = vadd.f32 %v5191, %v6026
        %v6063 = vadd.f32 %v5194, %v6029
        %v6064 = vld [vmem:[%s4] sm:$0x1]
        %v6066 = vlaneseq
        %v6067 = vshrl.u32 %v6066, 7
        %v6068 = vsub.s32 0, %v6067
        %v6069 = vrot.slane %v6064, %v6068
        %v6071 = vadd.f32 %v6032, %v6069
        %v6072 = vadd.f32 %v6033, %v6069
        %v6073 = vadd.f32 %v6034, %v6069
        %v6074 = vadd.f32 %v6035, %v6069
        %v6075 = vadd.f32 %v6036, %v6069
        %v6076 = vadd.f32 %v6037, %v6069
        %v6077 = vadd.f32 %v6038, %v6069
        %v6078 = vadd.f32 %v6039, %v6069
        %v6079 = vadd.f32 %v6040, %v6069
        %v6080 = vadd.f32 %v6041, %v6069
        %v6081 = vadd.f32 %v6042, %v6069
        %v6082 = vadd.f32 %v6043, %v6069
        %v6083 = vadd.f32 %v6044, %v6069
        %v6084 = vadd.f32 %v6045, %v6069
        %v6085 = vadd.f32 %v6046, %v6069
        %v6086 = vadd.f32 %v6047, %v6069
        %v6087 = vadd.f32 %v6048, %v6069
        %v6088 = vadd.f32 %v6049, %v6069
        %v6089 = vadd.f32 %v6050, %v6069
        %v6090 = vadd.f32 %v6051, %v6069
        %v6091 = vadd.f32 %v6052, %v6069
        %v6092 = vadd.f32 %v6053, %v6069
        %v6093 = vadd.f32 %v6054, %v6069
        %v6094 = vadd.f32 %v6055, %v6069
        %v6095 = vadd.f32 %v6056, %v6069
        %v6096 = vadd.f32 %v6057, %v6069
        %v6097 = vadd.f32 %v6058, %v6069
        %v6098 = vadd.f32 %v6059, %v6069
        %v6099 = vadd.f32 %v6060, %v6069
        %v6100 = vadd.f32 %v6061, %v6069
        %v6101 = vadd.f32 %v6062, %v6069
        %v6102 = vadd.f32 %v6063, %v6069
        %v6103 = vld [vmem:[%s222] sm:$0xf]
        %v6104 = vld [vmem:[%s222 + $0x4] sm:$0xf]
        %v6105 = vld [vmem:[%s222 + $0x8] sm:$0xf]
        %v6106 = vld [vmem:[%s222 + $0xc] sm:$0xf]
        %v6107 = vld [vmem:[%s222 + $0x10] sm:$0xf]
        %v6108 = vld [vmem:[%s222 + $0x14] sm:$0xf]
        %v6109 = vld [vmem:[%s222 + $0x18] sm:$0xf]
        %v6110 = vld [vmem:[%s222 + $0x1c] sm:$0xf]
        %v6111 = vld [vmem:[%s222 + $0x20] sm:$0xf]
        %v6112 = vld [vmem:[%s222 + $0x24] sm:$0xf]
        %v6113 = vld [vmem:[%s222 + $0x28] sm:$0xf]
        %v6114 = vld [vmem:[%s222 + $0x2c] sm:$0xf]
        %v6115 = vld [vmem:[%s222 + $0x30] sm:$0xf]
        %v6116 = vld [vmem:[%s222 + $0x34] sm:$0xf]
        %v6117 = vld [vmem:[%s222 + $0x38] sm:$0xf]
        %v6118 = vld [vmem:[%s222 + $0x3c] sm:$0xf]
        %v6119 = vld [vmem:[%s222 + $0x40] sm:$0xf]
        %v6120 = vld [vmem:[%s222 + $0x44] sm:$0xf]
        %v6121 = vld [vmem:[%s222 + $0x48] sm:$0xf]
        %v6122 = vld [vmem:[%s222 + $0x4c] sm:$0xf]
        %v6123 = vld [vmem:[%s222 + $0x50] sm:$0xf]
        %v6124 = vld [vmem:[%s222 + $0x54] sm:$0xf]
        %v6125 = vld [vmem:[%s222 + $0x58] sm:$0xf]
        %v6126 = vld [vmem:[%s222 + $0x5c] sm:$0xf]
        %v6127 = vld [vmem:[%s222 + $0x60] sm:$0xf]
        %v6128 = vld [vmem:[%s222 + $0x64] sm:$0xf]
        %v6129 = vld [vmem:[%s222 + $0x68] sm:$0xf]
        %v6130 = vld [vmem:[%s222 + $0x6c] sm:$0xf]
        %v6131 = vld [vmem:[%s222 + $0x70] sm:$0xf]
        %v6132 = vld [vmem:[%s222 + $0x74] sm:$0xf]
        %v6133 = vld [vmem:[%s222 + $0x78] sm:$0xf]
        %v6134 = vld [vmem:[%s222 + $0x7c] sm:$0xf]
        %v6135 = vunpack.c.l.bf16 %v6103
        %v6136 = vunpack.c.l.bf16 %v6104
        %v6137 = vunpack.c.l.bf16 %v6105
        %v6138 = vunpack.c.l.bf16 %v6106
        %v6139 = vunpack.c.l.bf16 %v6107
        %v6140 = vunpack.c.l.bf16 %v6108
        %v6141 = vunpack.c.l.bf16 %v6109
        %v6142 = vunpack.c.l.bf16 %v6110
        %v6143 = vunpack.c.l.bf16 %v6111
        %v6144 = vunpack.c.l.bf16 %v6112
        %v6145 = vunpack.c.l.bf16 %v6113
        %v6146 = vunpack.c.l.bf16 %v6114
        %v6147 = vunpack.c.l.bf16 %v6115
        %v6148 = vunpack.c.l.bf16 %v6116
        %v6149 = vunpack.c.l.bf16 %v6117
        %v6150 = vunpack.c.l.bf16 %v6118
        %v6151 = vunpack.c.l.bf16 %v6119
        %v6152 = vunpack.c.l.bf16 %v6120
        %v6153 = vunpack.c.l.bf16 %v6121
        %v6154 = vunpack.c.l.bf16 %v6122
        %v6155 = vunpack.c.l.bf16 %v6123
        %v6156 = vunpack.c.l.bf16 %v6124
        %v6157 = vunpack.c.l.bf16 %v6125
        %v6158 = vunpack.c.l.bf16 %v6126
        %v6159 = vunpack.c.l.bf16 %v6127
        %v6160 = vunpack.c.l.bf16 %v6128
        %v6161 = vunpack.c.l.bf16 %v6129
        %v6162 = vunpack.c.l.bf16 %v6130
        %v6163 = vunpack.c.l.bf16 %v6131
        %v6164 = vunpack.c.l.bf16 %v6132
        %v6165 = vunpack.c.l.bf16 %v6133
        %v6166 = vunpack.c.l.bf16 %v6134
        %v6167 = vadd.f32 %v6071, %v6135
        %v6168 = vadd.f32 %v6072, %v6136
        %v6169 = vadd.f32 %v6073, %v6137
        %v6170 = vadd.f32 %v6074, %v6138
        %v6171 = vadd.f32 %v6075, %v6139
        %v6172 = vadd.f32 %v6076, %v6140
        %v6173 = vadd.f32 %v6077, %v6141
        %v6174 = vadd.f32 %v6078, %v6142
        %v6175 = vadd.f32 %v6079, %v6143
        %v6176 = vadd.f32 %v6080, %v6144
        %v6177 = vadd.f32 %v6081, %v6145
        %v6178 = vadd.f32 %v6082, %v6146
        %v6179 = vadd.f32 %v6083, %v6147
        %v6180 = vadd.f32 %v6084, %v6148
        %v6181 = vadd.f32 %v6085, %v6149
        %v6182 = vadd.f32 %v6086, %v6150
        %v6183 = vadd.f32 %v6087, %v6151
        %v6184 = vadd.f32 %v6088, %v6152
        %v6185 = vadd.f32 %v6089, %v6153
        %v6186 = vadd.f32 %v6090, %v6154
        %v6187 = vadd.f32 %v6091, %v6155
        %v6188 = vadd.f32 %v6092, %v6156
        %v6189 = vadd.f32 %v6093, %v6157
        %v6190 = vadd.f32 %v6094, %v6158
        %v6191 = vadd.f32 %v6095, %v6159
        %v6192 = vadd.f32 %v6096, %v6160
        %v6193 = vadd.f32 %v6097, %v6161
        %v6194 = vadd.f32 %v6098, %v6162
        %v6195 = vadd.f32 %v6099, %v6163
        %v6196 = vadd.f32 %v6100, %v6164
        %v6197 = vadd.f32 %v6101, %v6165
        %v6198 = vadd.f32 %v6102, %v6166
        %v6199 = vmax.f32 %v6167, 0.0
        %v6200 = vmax.f32 %v6168, 0.0
        %v6201 = vmax.f32 %v6169, 0.0
        %v6202 = vmax.f32 %v6170, 0.0
        %v6203 = vmax.f32 %v6171, 0.0
        %v6204 = vmax.f32 %v6172, 0.0
        %v6205 = vmax.f32 %v6173, 0.0
        %v6206 = vmax.f32 %v6174, 0.0
        %v6207 = vmax.f32 %v6175, 0.0
        %v6208 = vmax.f32 %v6176, 0.0
        %v6209 = vmax.f32 %v6177, 0.0
        %v6210 = vmax.f32 %v6178, 0.0
        %v6211 = vmax.f32 %v6179, 0.0
        %v6212 = vmax.f32 %v6180, 0.0
        %v6213 = vmax.f32 %v6181, 0.0
        %v6214 = vmax.f32 %v6182, 0.0
        %v6215 = vmax.f32 %v6183, 0.0
        %v6216 = vmax.f32 %v6184, 0.0
        %v6217 = vmax.f32 %v6185, 0.0
        %v6218 = vmax.f32 %v6186, 0.0
        %v6219 = vmax.f32 %v6187, 0.0
        %v6220 = vmax.f32 %v6188, 0.0
        %v6221 = vmax.f32 %v6189, 0.0
        %v6222 = vmax.f32 %v6190, 0.0
        %v6223 = vmax.f32 %v6191, 0.0
        %v6224 = vmax.f32 %v6192, 0.0
        %v6225 = vmax.f32 %v6193, 0.0
        %v6226 = vmax.f32 %v6194, 0.0
        %v6227 = vmax.f32 %v6195, 0.0
        %v6228 = vmax.f32 %v6196, 0.0
        %v6229 = vmax.f32 %v6197, 0.0
        %v6230 = vmax.f32 %v6198, 0.0
        %v6231 = vpack.c.bf16 %v6200, %v6199
        %v6232 = vpack.c.bf16 %v6202, %v6201
        %v6233 = vpack.c.bf16 %v6204, %v6203
        %v6234 = vpack.c.bf16 %v6206, %v6205
        %v6235 = vpack.c.bf16 %v6208, %v6207
        %v6236 = vpack.c.bf16 %v6210, %v6209
        %v6237 = vpack.c.bf16 %v6212, %v6211
        %v6238 = vpack.c.bf16 %v6214, %v6213
        %v6239 = vpack.c.bf16 %v6216, %v6215
        %v6240 = vpack.c.bf16 %v6218, %v6217
        %v6241 = vpack.c.bf16 %v6220, %v6219
        %v6242 = vpack.c.bf16 %v6222, %v6221
        %v6243 = vpack.c.bf16 %v6224, %v6223
        %v6244 = vpack.c.bf16 %v6226, %v6225
        %v6245 = vpack.c.bf16 %v6228, %v6227
        %v6246 = vpack.c.bf16 %v6230, %v6229
        %v6263 = vunpack.c.l.b16 %v6231
        %v6264 = vunpack.c.h.b16 %v6231
        %v6265 = vunpack.c.l.b16 %v6232
        %v6266 = vunpack.c.h.b16 %v6232
        %v6267 = vunpack.c.l.b16 %v6233
        %v6268 = vunpack.c.h.b16 %v6233
        %v6269 = vunpack.c.l.b16 %v6234
        %v6270 = vunpack.c.h.b16 %v6234
        %v6271 = vunpack.c.l.b16 %v6235
        %v6272 = vunpack.c.h.b16 %v6235
        %v6273 = vunpack.c.l.b16 %v6236
        %v6274 = vunpack.c.h.b16 %v6236
        %v6275 = vunpack.c.l.b16 %v6237
        %v6276 = vunpack.c.h.b16 %v6237
        %v6277 = vunpack.c.l.b16 %v6238
        %v6278 = vunpack.c.h.b16 %v6238
        %v6279 = vunpack.c.l.b16 %v6239
        %v6280 = vunpack.c.h.b16 %v6239
        %v6281 = vunpack.c.l.b16 %v6240
        %v6282 = vunpack.c.h.b16 %v6240
        %v6283 = vunpack.c.l.b16 %v6241
        %v6284 = vunpack.c.h.b16 %v6241
        %v6285 = vunpack.c.l.b16 %v6242
        %v6286 = vunpack.c.h.b16 %v6242
        %v6287 = vunpack.c.l.b16 %v6243
        %v6288 = vunpack.c.h.b16 %v6243
        %v6289 = vunpack.c.l.b16 %v6244
        %v6290 = vunpack.c.h.b16 %v6244
        %v6291 = vunpack.c.l.b16 %v6245
        %v6292 = vunpack.c.h.b16 %v6245
        %v6293 = vunpack.c.l.b16 %v6246
        %v6294 = vunpack.c.h.b16 %v6246
        %v6295 = vpack.c.b16 %v6263, %v6263
        %v6296 = vpack.c.b16 %v6264, %v6264
        %v6297 = vpack.c.b16 %v6265, %v6265
        %v6298 = vpack.c.b16 %v6266, %v6266
        %v6299 = vpack.c.b16 %v6267, %v6267
        %v6300 = vpack.c.b16 %v6268, %v6268
        %v6301 = vpack.c.b16 %v6269, %v6269
        %v6302 = vpack.c.b16 %v6270, %v6270
        %v6303 = vpack.c.b16 %v6271, %v6271
        %v6304 = vpack.c.b16 %v6272, %v6272
        %v6305 = vpack.c.b16 %v6273, %v6273
        %v6306 = vpack.c.b16 %v6274, %v6274
        %v6307 = vpack.c.b16 %v6275, %v6275
        %v6308 = vpack.c.b16 %v6276, %v6276
        %v6309 = vpack.c.b16 %v6277, %v6277
        %v6310 = vpack.c.b16 %v6278, %v6278
        %v6311 = vpack.c.b16 %v6279, %v6279
        %v6312 = vpack.c.b16 %v6280, %v6280
        %v6313 = vpack.c.b16 %v6281, %v6281
        %v6314 = vpack.c.b16 %v6282, %v6282
        %v6315 = vpack.c.b16 %v6283, %v6283
        %v6316 = vpack.c.b16 %v6284, %v6284
        %v6317 = vpack.c.b16 %v6285, %v6285
        %v6318 = vpack.c.b16 %v6286, %v6286
        %v6319 = vpack.c.b16 %v6287, %v6287
        %v6320 = vpack.c.b16 %v6288, %v6288
        %v6321 = vpack.c.b16 %v6289, %v6289
        %v6322 = vpack.c.b16 %v6290, %v6290
        %v6323 = vpack.c.b16 %v6291, %v6291
        %v6324 = vpack.c.b16 %v6292, %v6292
        %v6325 = vpack.c.b16 %v6293, %v6293
        %v6326 = vpack.c.b16 %v6294, %v6294
        %6359 = vst [vmem:[%s217] sm:$0xf] %v6295
        %6360 = vst [vmem:[%s217 + $0x4] sm:$0xf] %v6296
        %6361 = vst [vmem:[%s217 + $0x8] sm:$0xf] %v6297
        %6362 = vst [vmem:[%s217 + $0xc] sm:$0xf] %v6298
        %6363 = vst [vmem:[%s217 + $0x10] sm:$0xf] %v6299
        %6364 = vst [vmem:[%s217 + $0x14] sm:$0xf] %v6300
        %6365 = vst [vmem:[%s217 + $0x18] sm:$0xf] %v6301
        %6366 = vst [vmem:[%s217 + $0x1c] sm:$0xf] %v6302
        %6367 = vst [vmem:[%s217 + $0x20] sm:$0xf] %v6303
        %6368 = vst [vmem:[%s217 + $0x24] sm:$0xf] %v6304
        %6369 = vst [vmem:[%s217 + $0x28] sm:$0xf] %v6305
        %6370 = vst [vmem:[%s217 + $0x2c] sm:$0xf] %v6306
        %6371 = vst [vmem:[%s217 + $0x30] sm:$0xf] %v6307
        %6372 = vst [vmem:[%s217 + $0x34] sm:$0xf] %v6308
        %6373 = vst [vmem:[%s217 + $0x38] sm:$0xf] %v6309
        %6374 = vst [vmem:[%s217 + $0x3c] sm:$0xf] %v6310
        %6375 = vst [vmem:[%s217 + $0x40] sm:$0xf] %v6311
        %6376 = vst [vmem:[%s217 + $0x44] sm:$0xf] %v6312
        %6377 = vst [vmem:[%s217 + $0x48] sm:$0xf] %v6313
        %6378 = vst [vmem:[%s217 + $0x4c] sm:$0xf] %v6314
        %6379 = vst [vmem:[%s217 + $0x50] sm:$0xf] %v6315
        %6380 = vst [vmem:[%s217 + $0x54] sm:$0xf] %v6316
        %6381 = vst [vmem:[%s217 + $0x58] sm:$0xf] %v6317
        %6382 = vst [vmem:[%s217 + $0x5c] sm:$0xf] %v6318
        %6383 = vst [vmem:[%s217 + $0x60] sm:$0xf] %v6319
        %6384 = vst [vmem:[%s217 + $0x64] sm:$0xf] %v6320
        %6385 = vst [vmem:[%s217 + $0x68] sm:$0xf] %v6321
        %6386 = vst [vmem:[%s217 + $0x6c] sm:$0xf] %v6322
        %6387 = vst [vmem:[%s217 + $0x70] sm:$0xf] %v6323
        %6388 = vst [vmem:[%s217 + $0x74] sm:$0xf] %v6324
        %6389 = vst [vmem:[%s217 + $0x78] sm:$0xf] %v6325
        %6390 = vst [vmem:[%s217 + $0x7c] sm:$0xf] %v6326
        %s6391 = sand.u32 %s137, 1
        %s6392 = scalar_lea.sflag [#allocation4], %s6391
        %s6393 = sand.u32 %s137, 1
        %s6394 = smul.addr %s6393, 128
        %s6395 = scalar_lea.vmem [#allocation3], %s6394
        // Predicated region
        $region41: #{sphere_basic_block_nhwc.1} parent=39 // pred_check
          %p6396 = pneg %p147
        $region42: #{sphere_basic_block_nhwc.1} parent=39 // pred_check_branch
          %6398 = sbr.rel (%p6396) target = $region44
        $region43: #{sphere_basic_block_nhwc.1} parent=39 // pred_region
          %s6400 = ssub.s32 2048, 2048
          %6401 = vsyncadd %s6392, %s6400
          %s6402 = smul.addr %s19, 32
          %s6403 = smul.addr %s6402, 64
          %s6404 = scalar_lea.hbm %s5, %s6403
          %s6405 = sshll.u32 %s6395, 4
          %s6406 = int_to_ptr.vmem [resolvable:$true] %s6405
          %6411 = dma.vmem_to_hbm [thread:$0]  %s6406, 2048, %s6404, %s6392, 64, 64, 4
        $region44: #{sphere_basic_block_nhwc.1} parent=39 // pred_fallthru
          _
      $region40: #{sphere_basic_block_nhwc.1} parent=5 // pred_fallthru
        _
      %p6412 = scmp.le.s32.totalorder 2, %s14
      // Predicated region
      $region45: #{sphere_basic_block_nhwc.1} parent=5 // pred_check
        %p6413 = pneg %p6412
      $region46: #{sphere_basic_block_nhwc.1} parent=5 // pred_check_branch
        %6415 = sbr.rel (%p6413) target = $region48
      $region47: #{sphere_basic_block_nhwc.1} parent=5 // pred_region
        %s6416 = ssub.s32 %s14, 2
        // Predicated region
        $region49: #{sphere_basic_block_nhwc.1} parent=47 // pred_check
          %p6417 = pneg %p153
        $region50: #{sphere_basic_block_nhwc.1} parent=47 // pred_check_branch
          %6419 = sbr.rel (%p6417) target = $region52
        $region51: #{sphere_basic_block_nhwc.1} parent=47 // pred_region
          %s6420 = sand.u32 %s138, 1
          %s6421 = scalar_lea.sflag [#allocation4], %s6420
          %s6422 = sand.u32 %s138, 1
          %s6423 = smul.addr %s6422, 128
          %s6424 = scalar_lea.vmem [#allocation3], %s6423
          %6425 = dma.done %s6421, 2048
        $region52: #{sphere_basic_block_nhwc.1} parent=47 // pred_fallthru
          _
      $region48: #{sphere_basic_block_nhwc.1} parent=5 // pred_fallthru
        _
    $region6: #{sphere_basic_block_nhwc.1} parent=1 // loop_footer
      %s18 = sadd.s32 1, %s14
    $region7: #{sphere_basic_block_nhwc.1} parent=1 // loop_footer_branch
      %13 = sbr.rel target = $region3
    $region8: #{sphere_basic_block_nhwc.1} parent=1 // loop_exit
      _
    %6426 = vsyncpa [#allocation4], 1
    %s6427 = scalar_lea.sflag [#allocation4], 1
    %6428 = vsyncpa %s6427, 1

</llo_original>
